<compile_context>
chip_gen: v6e
topology: v6e:2x2x1
jax: 0.10.0
libtpu: 0.0.40
codegen_flags: <defaults>
</compile_context>

<pallas_src>
import functools

import jax
import jax.numpy as jnp
from jax.experimental import pallas as pl
from jax.experimental.pallas import tpu as pltpu


# --------------------------------------------------------------------------
# Fused bidirectional pairing kernel (per batch element, grid=(B,)):
#   make_pairs (both directions) + fine pairing InfoNCE + coarse pairing
#   InfoNCE (with neutral masking) + top-1 pairing accuracy, reduced to 8
#   per-batch partial sums.
# --------------------------------------------------------------------------
def _fused_pairing_kernel(tau, thr2,
                          src_coor_ref,    # (1, S, 3)   src coords, channel-last
                          dst_coor_ref,    # (1, 3, D)   dst coords, channel-first
                          src_valid_ref,   # (1, S, 1)   1.0 = not padding
                          dst_valid_ref,   # (1, 1, D)   1.0 = not padding
                          src_fea_ref,     # (1, S, C)
                          dst_fea_ref,     # (1, C, D)
                          src_cfea_ref,    # (1, S, Cc)
                          dst_cfea_ref,    # (1, Cc, D)
                          out_ref):        # (1, 1, 8)   per-batch partial sums
    f32 = jnp.float32
    inv_tau = 1.0 / tau
    NEG = -100000000.0

    sc = src_coor_ref[0].astype(f32)     # (S, 3)
    dc = dst_coor_ref[0].astype(f32)     # (3, D)
    sv = src_valid_ref[0]                # (S, 1)
    dv = dst_valid_ref[0]                # (1, D)

    S = sc.shape[0]
    D = dc.shape[1]

    col_ids = jax.lax.broadcasted_iota(jnp.int32, (S, D), 1)
    row_ids = jax.lax.broadcasted_iota(jnp.int32, (S, D), 0)

    # ---- pairwise squared distances (shared by both directions) ------------
    # ||a - b||^2 = ||a||^2 + ||b||^2 - 2 a.b ; cross term on the MXU.
    cross = jnp.dot(sc, dc, preferred_element_type=f32)          # (S, D)
    src_sq = jnp.sum(sc * sc, axis=-1, keepdims=True)            # (S, 1)
    dst_sq = jnp.sum(dc * dc, axis=0, keepdims=True)             # (1, D)
    dis = src_sq + dst_sq - 2.0 * cross                          # (S, D)
    dis_close = dis <= thr2                                      # (S, D)

    # ---- normalized features + similarity logits (shared) ------------------
    def _norm_last(x):   # rows are points, normalize along last axis
        x = x.astype(f32)
        ss = jnp.sum(x * x, axis=-1, keepdims=True)
        return x * jax.lax.rsqrt(jnp.maximum(ss, 1e-24))

    def _norm_first(x):  # cols are points, normalize along axis 0 (channels)
        x = x.astype(f32)
        ss = jnp.sum(x * x, axis=0, keepdims=True)
        return x * jax.lax.rsqrt(jnp.maximum(ss, 1e-24))

    fa = _norm_last(src_fea_ref[0])                              # (S, C)
    fb = _norm_first(dst_fea_ref[0])                             # (C, D)
    logits = jnp.dot(fa, fb, preferred_element_type=f32)         # (S, D)

    ca = _norm_last(src_cfea_ref[0])                             # (S, Cc)
    cb = _norm_first(dst_cfea_ref[0])                            # (Cc, D)
    clogits = jnp.dot(ca, cb, preferred_element_type=f32)        # (S, D)

    lg = logits * inv_tau                                        # (S, D) shared fine logits

    # =========================== direction src -> dst =======================
    # (row-wise over S, reductions over D = lane axis)
    min_dis_1 = jnp.min(dis, axis=-1, keepdims=True)                               # (S,1)
    corr_1 = jnp.min(jnp.where(dis == min_dis_1, col_ids, D),
                     axis=-1, keepdims=True)                                       # (S,1)
    corr_mask_1 = min_dis_1 <= thr2                                                # (S,1)
    valid_1 = sv * corr_mask_1.astype(f32)                                         # (S,1)
    is_corr_col = col_ids == corr_1                                                # (S,D)
    neutral_1 = dis_close & jnp.logical_not(is_corr_col)                           # (S,D)

    # top-1 accuracy (first-occurrence argmax over D on unscaled similarities)
    max_1 = jnp.max(logits, axis=-1, keepdims=True)                                # (S,1)
    pred_1 = jnp.min(jnp.where(logits == max_1, col_ids, D),
                     axis=-1, keepdims=True)                                       # (S,1)
    correct_1 = (pred_1 == corr_1).astype(f32)                                     # (S,1)

    # fine InfoNCE (no neutral masking) -- row log-softmax NLL at corr column
    m1 = max_1 * inv_tau
    lse1 = m1 + jnp.log(jnp.sum(jnp.exp(lg - m1), axis=-1, keepdims=True))
    picked_f1 = jnp.sum(jnp.where(is_corr_col, lg, 0.0), axis=-1, keepdims=True)
    nll_fine_1 = lse1 - picked_f1                                                  # (S,1)

    # coarse InfoNCE (neutral columns masked to -1e8 before scaling, as in torch)
    clg1 = jnp.where(neutral_1, NEG, clogits) * inv_tau
    cm1 = jnp.max(clg1, axis=-1, keepdims=True)
    clse1 = cm1 + jnp.log(jnp.sum(jnp.exp(clg1 - cm1), axis=-1, keepdims=True))
    picked_c1 = jnp.sum(jnp.where(is_corr_col, clg1, 0.0), axis=-1, keepdims=True)
    nll_coarse_1 = clse1 - picked_c1                                               # (S,1)

    sum_p1 = jnp.sum(nll_fine_1 * valid_1, keepdims=True)                          # (1,1)
    sum_c1 = jnp.sum(nll_coarse_1 * valid_1, keepdims=True)
    sum_a1 = jnp.sum(correct_1 * valid_1, keepdims=True)
    cnt_1 = jnp.sum(valid_1, keepdims=True)

    # =========================== direction dst -> src =======================
    # (column-wise over D, reductions over S = sublane axis; reuses dis/logits)
    min_dis_2 = jnp.min(dis, axis=0, keepdims=True)                                # (1,D)
    corr_2 = jnp.min(jnp.where(dis == min_dis_2, row_ids, S),
                     axis=0, keepdims=True)                                        # (1,D)
    corr_mask_2 = min_dis_2 <= thr2                                                # (1,D)
    valid_2 = dv * corr_mask_2.astype(f32)                                         # (1,D)
    is_corr_row = row_ids == corr_2                                                # (S,D)
    neutral_2 = dis_close & jnp.logical_not(is_corr_row)                           # (S,D)

    max_2 = jnp.max(logits, axis=0, keepdims=True)                                 # (1,D)
    pred_2 = jnp.min(jnp.where(logits == max_2, row_ids, S),
                     axis=0, keepdims=True)                                        # (1,D)
    correct_2 = (pred_2 == corr_2).astype(f32)                                     # (1,D)

    m2 = max_2 * inv_tau
    lse2 = m2 + jnp.log(jnp.sum(jnp.exp(lg - m2), axis=0, keepdims=True))
    picked_f2 = jnp.sum(jnp.where(is_corr_row, lg, 0.0), axis=0, keepdims=True)
    nll_fine_2 = lse2 - picked_f2                                                  # (1,D)

    clg2 = jnp.where(neutral_2, NEG, clogits) * inv_tau
    cm2 = jnp.max(clg2, axis=0, keepdims=True)
    clse2 = cm2 + jnp.log(jnp.sum(jnp.exp(clg2 - cm2), axis=0, keepdims=True))
    picked_c2 = jnp.sum(jnp.where(is_corr_row, clg2, 0.0), axis=0, keepdims=True)
    nll_coarse_2 = clse2 - picked_c2                                               # (1,D)

    sum_p2 = jnp.sum(nll_fine_2 * valid_2, keepdims=True)                          # (1,1)
    sum_c2 = jnp.sum(nll_coarse_2 * valid_2, keepdims=True)
    sum_a2 = jnp.sum(correct_2 * valid_2, keepdims=True)
    cnt_2 = jnp.sum(valid_2, keepdims=True)

    # ---- pack the 8 per-batch partial sums into one lane-major row ----------
    lane = jax.lax.broadcasted_iota(jnp.int32, (1, 8), 1)

    def place(k, v):  # v: (1,1)
        return jnp.where(lane == k, v, 0.0)

    row = (place(0, sum_p1) + place(1, sum_c1) + place(2, sum_a1) + place(3, cnt_1)
           + place(4, sum_p2) + place(5, sum_c2) + place(6, sum_a2) + place(7, cnt_2))
    out_ref[0] = row


def _fused_bidirectional_pairing(src_coor_t, dst_coor, src_valid, dst_valid,
                                 src_fea_t, dst_fea, src_cfea_t, dst_cfea,
                                 tau, eps_positive):
    B, S, _ = src_coor_t.shape
    D = dst_coor.shape[-1]
    C = src_fea_t.shape[-1]
    Cc = src_cfea_t.shape[-1]

    kernel = functools.partial(_fused_pairing_kernel,
                               float(tau), float(eps_positive) * float(eps_positive))

    out = pl.pallas_call(
        kernel,
        out_shape=jax.ShapeDtypeStruct((B, 1, 8), jnp.float32),
        grid_spec=pltpu.PrefetchScalarGridSpec(
            num_scalar_prefetch=0,
            grid=(B,),
            in_specs=[
                pl.BlockSpec((1, S, 3), lambda b: (b, 0, 0)),
                pl.BlockSpec((1, 3, D), lambda b: (b, 0, 0)),
                pl.BlockSpec((1, S, 1), lambda b: (b, 0, 0)),
                pl.BlockSpec((1, 1, D), lambda b: (b, 0, 0)),
                pl.BlockSpec((1, S, C), lambda b: (b, 0, 0)),
                pl.BlockSpec((1, C, D), lambda b: (b, 0, 0)),
                pl.BlockSpec((1, S, Cc), lambda b: (b, 0, 0)),
                pl.BlockSpec((1, Cc, D), lambda b: (b, 0, 0)),
            ],
            out_specs=pl.BlockSpec((1, 1, 8), lambda b: (b, 0, 0)),
        ),
        compiler_params=pltpu.CompilerParams(
            dimension_semantics=("parallel",)),   # per-batch outputs -> megacore-safe
    )(src_coor_t, dst_coor, src_valid, dst_valid,
      src_fea_t, dst_fea, src_cfea_t, dst_cfea)
    return out  # (B, 1, 8)


# --------------------------------------------------------------------------
# Offset loss: a (K, 3) reduction -- plain JAX (a dedicated pallas_call would
# cost more in dispatch than the compute).
# --------------------------------------------------------------------------
def _offset_loss(offset_res, offset_value):
    # offset_res: (K, 3, 1); torch does transpose(1,2).squeeze(1) -> (K, 3)
    off = offset_res[..., 0].astype(jnp.float32)
    if offset_value == "manhattan":
        err = jnp.sum(jnp.abs(off), axis=-1)
    elif offset_value == "euclidean":
        err = jnp.sqrt(jnp.sum(off * off, axis=-1))
    else:
        # TODO(synk): 'mahalanobis' needs a 3x3 covariance inverse with a singularity
        # fallback (torch.linalg.inv + try/except); not implemented here.
        raise ValueError("unsupported offset_value")
    K = off.shape[0]
    return jnp.sum(err) / max(K, 1.0)


# --------------------------------------------------------------------------
# Module-equivalent wrapper
# --------------------------------------------------------------------------
class _NS:
    def __init__(self, **kw):
        self.__dict__.update(kw)


class RegistrationLoss:
    """L = lambda_p * L_p + lambda_c * L_c + lambda_o * L_o + label_loss."""

    def __init__(self, args):
        self.args = args
        cfg = args.loss
        self.tau = cfg.tau
        self.offset_value = cfg.offset_value
        self.eps_positive = cfg.eps_positive
        self.eps_offset = cfg.eps_offset
        self.lambda_p = cfg.lambda_p
        self.lambda_c = cfg.lambda_c
        self.lambda_o = cfg.lambda_o

    def __call__(self, src_global_coor, dst_global_coor,
                 src_padding_mask, dst_padding_mask,
                 src_pairing_fea, dst_pairing_fea,
                 src_coarse_pairing_fea, dst_coarse_pairing_fea,
                 src_offset_res, dst_offset_res, label_loss):
        f32 = jnp.float32
        B = src_global_coor.shape[0]

        # Only the src ("query") side is presented channel-last so all in-kernel
        # contractions are plain NN MXU matmuls; dst side is passed as-is (no copies).
        src_coor_t = jnp.transpose(src_global_coor, (0, 2, 1))           # (B, S, 3)
        src_fea_t = jnp.transpose(src_pairing_fea, (0, 2, 1))            # (B, S, C)
        src_cfea_t = jnp.transpose(src_coarse_pairing_fea, (0, 2, 1))    # (B, S, Cc)
        src_valid = (~src_padding_mask).astype(f32)[..., None]           # (B, S, 1)
        dst_valid = (~dst_padding_mask).astype(f32)[:, None, :]          # (B, 1, D)

        part = _fused_bidirectional_pairing(
            src_coor_t, dst_global_coor, src_valid, dst_valid,
            src_fea_t, dst_pairing_fea, src_cfea_t, dst_coarse_pairing_fea,
            self.tau, self.eps_positive)                                 # (B, 1, 8)

        sums = jnp.sum(part.reshape(B, 8), axis=0)
        sp1, sc1, sa1, n1 = sums[0], sums[1], sums[2], sums[3]
        sp2, sc2, sa2, n2 = sums[4], sums[5], sums[6], sums[7]

        d1 = jnp.maximum(n1, 1.0)
        d2 = jnp.maximum(n2, 1.0)
        lp1 = jnp.where(n1 > 0, sp1 / d1, 0.0)
        lc1 = jnp.where(n1 > 0, sc1 / d1, 0.0)
        lp2 = jnp.where(n2 > 0, sp2 / d2, 0.0)
        lc2 = jnp.where(n2 > 0, sc2 / d2, 0.0)
        acc1 = sa1 / d1
        acc2 = sa2 / d2

        lo1 = _offset_loss(src_offset_res, self.offset_value)
        lo2 = _offset_loss(dst_offset_res, self.offset_value)

        loss_pairing = (lp1 + lp2) / 2
        loss_coarse_pairing = (lc1 + lc2) / 2
        loss_offset = (lo1 + lo2) / 2
        top1_pairing_acc = (acc1 + acc2) / 2

        loss = (self.lambda_p * loss_pairing
                + self.lambda_c * loss_coarse_pairing
                + self.lambda_o * loss_offset
                + label_loss * 1)
        return loss, top1_pairing_acc, loss_pairing, loss_coarse_pairing, loss_offset


# --------------------------------------------------------------------------
if __name__ == "__main__":
    # deterministic synthetic config + inputs
    args = _NS(loss=_NS(tau=0.1, offset_value="euclidean", eps_positive=1.0,
                        eps_offset=0.1, lambda_p=1.0, lambda_c=1.0, lambda_o=1.0))
    loss_fn = RegistrationLoss(args)

    B, S, D, C, Cc, K = 2, 128, 128, 64, 32, 16
    key = jax.random.PRNGKey(0)
    keys = jax.random.split(key, 10)

    src_global_coor = jax.random.uniform(keys[0], (B, 3, S), jnp.float32, 0.0, 5.0)
    dst_global_coor = jax.random.uniform(keys[1], (B, 3, D), jnp.float32, 0.0, 5.0)
    # padding masks: last 8 points of each cloud are padding (True = padding)
    src_padding_mask = jnp.arange(S)[None, :].repeat(B, axis=0) >= (S - 8)
    dst_padding_mask = jnp.arange(D)[None, :].repeat(B, axis=0) >= (D - 8)

    src_pairing_fea = jax.random.normal(keys[2], (B, C, S), jnp.float32)
    dst_pairing_fea = jax.random.normal(keys[3], (B, C, D), jnp.float32)
    src_coarse_pairing_fea = jax.random.normal(keys[4], (B, Cc, S), jnp.float32)
    dst_coarse_pairing_fea = jax.random.normal(keys[5], (B, Cc, D), jnp.float32)

    src_offset_res = 0.1 * jax.random.normal(keys[6], (K, 3, 1), jnp.float32)
    dst_offset_res = 0.1 * jax.random.normal(keys[7], (K, 3, 1), jnp.float32)
    label_loss = jnp.float32(0.5)

    outs = loss_fn(src_global_coor, dst_global_coor,
                   src_padding_mask, dst_padding_mask,
                   src_pairing_fea, dst_pairing_fea,
                   src_coarse_pairing_fea, dst_coarse_pairing_fea,
                   src_offset_res, dst_offset_res, label_loss)
    outs = jax.block_until_ready(outs)
    print("KERNEL_OK")
</pallas_src>

<mosaic_0001>
module attributes {stable_mosaic.version = 11 : i64} {
  func.func @_fused_pairing_kernel(%arg0: i32, %arg1: memref<1x128x3xf32, #tpu.memory_space<vmem>>, %arg2: memref<1x3x128xf32, #tpu.memory_space<vmem>>, %arg3: memref<1x128x1xf32, #tpu.memory_space<vmem>>, %arg4: memref<1x1x128xf32, #tpu.memory_space<vmem>>, %arg5: memref<1x128x64xf32, #tpu.memory_space<vmem>>, %arg6: memref<1x64x128xf32, #tpu.memory_space<vmem>>, %arg7: memref<1x128x32xf32, #tpu.memory_space<vmem>>, %arg8: memref<1x32x128xf32, #tpu.memory_space<vmem>>, %arg9: memref<1x1x8xf32, #tpu.memory_space<vmem>>) attributes {dimension_semantics = [#tpu.dimension_semantics<parallel>], iteration_bounds = array<i64: 2>, scalar_prefetch = 0 : i64, scratch_operands = 0 : i64, tpu.core_type = #tpu.core_type<tc>, window_params = [{transform_indices = @transform_0, window_bounds = array<i64: 1, 128, 3>}, {transform_indices = @transform_1, window_bounds = array<i64: 1, 3, 128>}, {transform_indices = @transform_2, window_bounds = array<i64: 1, 128, 1>}, {transform_indices = @transform_3, window_bounds = array<i64: 1, 1, 128>}, {transform_indices = @transform_4, window_bounds = array<i64: 1, 128, 64>}, {transform_indices = @transform_5, window_bounds = array<i64: 1, 64, 128>}, {transform_indices = @transform_6, window_bounds = array<i64: 1, 128, 32>}, {transform_indices = @transform_7, window_bounds = array<i64: 1, 32, 128>}, {transform_indices = @transform_8, window_bounds = array<i64: 1, 1, 8>}]} {
    %c0 = arith.constant 0 : index
    %c0_0 = arith.constant 0 : index
    %c0_1 = arith.constant 0 : index
    %0 = vector.load %arg1[%c0, %c0_0, %c0_1] : memref<1x128x3xf32, #tpu.memory_space<vmem>>, vector<1x128x3xf32>
    %1 = vector.shape_cast %0 : vector<1x128x3xf32> to vector<128x3xf32>
    %c0_2 = arith.constant 0 : index
    %c0_3 = arith.constant 0 : index
    %c0_4 = arith.constant 0 : index
    %2 = vector.load %arg2[%c0_2, %c0_3, %c0_4] : memref<1x3x128xf32, #tpu.memory_space<vmem>>, vector<1x3x128xf32>
    %3 = vector.shape_cast %2 : vector<1x3x128xf32> to vector<3x128xf32>
    %c0_5 = arith.constant 0 : index
    %c0_6 = arith.constant 0 : index
    %c0_7 = arith.constant 0 : index
    %4 = vector.load %arg3[%c0_5, %c0_6, %c0_7] : memref<1x128x1xf32, #tpu.memory_space<vmem>>, vector<1x128x1xf32>
    %5 = vector.shape_cast %4 : vector<1x128x1xf32> to vector<128x1xf32>
    %c0_8 = arith.constant 0 : index
    %c0_9 = arith.constant 0 : index
    %c0_10 = arith.constant 0 : index
    %6 = vector.load %arg4[%c0_8, %c0_9, %c0_10] : memref<1x1x128xf32, #tpu.memory_space<vmem>>, vector<1x1x128xf32>
    %7 = vector.shape_cast %6 : vector<1x1x128xf32> to vector<1x128xf32>
    %8 = tpu.iota {dimensions = array<i32: 1>} : vector<128x128xi32>
    %9 = tpu.iota {dimensions = array<i32: 0>} : vector<128x128xi32>
    %cst = arith.constant dense<0.000000e+00> : vector<128x128xf32>
    %10 = tpu.matmul %1, %3, %cst {dimension_numbers = #tpu.dot_dimension_numbers<[1], [0], [0], [1], [0, 0, 1, 1], [], []>} : vector<128x3xf32>, vector<3x128xf32>, vector<128x128xf32> -> vector<128x128xf32>
    %11 = arith.mulf %1, %1 : vector<128x3xf32>
    %cst_11 = arith.constant dense<0.000000e+00> : vector<128xf32>
    %12 = vector.multi_reduction <add>, %11, %cst_11 [1] : vector<128x3xf32> to vector<128xf32>
    %13 = vector.shape_cast %12 : vector<128xf32> to vector<128x1xf32>
    %14 = arith.mulf %3, %3 : vector<3x128xf32>
    %cst_12 = arith.constant dense<0.000000e+00> : vector<128xf32>
    %15 = vector.multi_reduction <add>, %14, %cst_12 [0] : vector<3x128xf32> to vector<128xf32>
    %16 = vector.shape_cast %15 : vector<128xf32> to vector<1x128xf32>
    %17 = vector.broadcast %13 : vector<128x1xf32> to vector<128x128xf32>
    %18 = vector.broadcast %16 : vector<1x128xf32> to vector<128x128xf32>
    %19 = arith.addf %17, %18 : vector<128x128xf32>
    %cst_13 = arith.constant 2.000000e+00 : f32
    %20 = vector.broadcast %cst_13 : f32 to vector<128x128xf32>
    %21 = arith.mulf %20, %10 : vector<128x128xf32>
    %22 = arith.subf %19, %21 : vector<128x128xf32>
    %cst_14 = arith.constant 1.000000e+00 : f32
    %23 = vector.broadcast %cst_14 : f32 to vector<128x128xf32>
    %24 = arith.cmpf ole, %22, %23 : vector<128x128xf32>
    %c0_15 = arith.constant 0 : index
    %c0_16 = arith.constant 0 : index
    %c0_17 = arith.constant 0 : index
    %25 = vector.load %arg5[%c0_15, %c0_16, %c0_17] : memref<1x128x64xf32, #tpu.memory_space<vmem>>, vector<1x128x64xf32>
    %26 = vector.shape_cast %25 : vector<1x128x64xf32> to vector<128x64xf32>
    %27 = arith.mulf %26, %26 : vector<128x64xf32>
    %cst_18 = arith.constant dense<0.000000e+00> : vector<128xf32>
    %28 = vector.multi_reduction <add>, %27, %cst_18 [1] : vector<128x64xf32> to vector<128xf32>
    %29 = vector.shape_cast %28 : vector<128xf32> to vector<128x1xf32>
    %cst_19 = arith.constant 1.000000e-24 : f32
    %30 = vector.broadcast %cst_19 : f32 to vector<128x1xf32>
    %31 = arith.maximumf %29, %30 : vector<128x1xf32>
    %32 = math.rsqrt %31 : vector<128x1xf32>
    %33 = vector.broadcast %32 : vector<128x1xf32> to vector<128x64xf32>
    %34 = arith.mulf %26, %33 : vector<128x64xf32>
    %c0_20 = arith.constant 0 : index
    %c0_21 = arith.constant 0 : index
    %c0_22 = arith.constant 0 : index
    %35 = vector.load %arg6[%c0_20, %c0_21, %c0_22] : memref<1x64x128xf32, #tpu.memory_space<vmem>>, vector<1x64x128xf32>
    %36 = vector.shape_cast %35 : vector<1x64x128xf32> to vector<64x128xf32>
    %37 = arith.mulf %36, %36 : vector<64x128xf32>
    %cst_23 = arith.constant dense<0.000000e+00> : vector<128xf32>
    %38 = vector.multi_reduction <add>, %37, %cst_23 [0] : vector<64x128xf32> to vector<128xf32>
    %39 = vector.shape_cast %38 : vector<128xf32> to vector<1x128xf32>
    %cst_24 = arith.constant 1.000000e-24 : f32
    %40 = vector.broadcast %cst_24 : f32 to vector<1x128xf32>
    %41 = arith.maximumf %39, %40 : vector<1x128xf32>
    %42 = math.rsqrt %41 : vector<1x128xf32>
    %43 = vector.broadcast %42 : vector<1x128xf32> to vector<64x128xf32>
    %44 = arith.mulf %36, %43 : vector<64x128xf32>
    %cst_25 = arith.constant dense<0.000000e+00> : vector<128x128xf32>
    %45 = tpu.matmul %34, %44, %cst_25 {dimension_numbers = #tpu.dot_dimension_numbers<[1], [0], [0], [1], [0, 0, 1, 1], [], []>} : vector<128x64xf32>, vector<64x128xf32>, vector<128x128xf32> -> vector<128x128xf32>
    %c0_26 = arith.constant 0 : index
    %c0_27 = arith.constant 0 : index
    %c0_28 = arith.constant 0 : index
    %46 = vector.load %arg7[%c0_26, %c0_27, %c0_28] : memref<1x128x32xf32, #tpu.memory_space<vmem>>, vector<1x128x32xf32>
    %47 = vector.shape_cast %46 : vector<1x128x32xf32> to vector<128x32xf32>
    %48 = arith.mulf %47, %47 : vector<128x32xf32>
    %cst_29 = arith.constant dense<0.000000e+00> : vector<128xf32>
    %49 = vector.multi_reduction <add>, %48, %cst_29 [1] : vector<128x32xf32> to vector<128xf32>
    %50 = vector.shape_cast %49 : vector<128xf32> to vector<128x1xf32>
    %cst_30 = arith.constant 1.000000e-24 : f32
    %51 = vector.broadcast %cst_30 : f32 to vector<128x1xf32>
    %52 = arith.maximumf %50, %51 : vector<128x1xf32>
    %53 = math.rsqrt %52 : vector<128x1xf32>
    %54 = vector.broadcast %53 : vector<128x1xf32> to vector<128x32xf32>
    %55 = arith.mulf %47, %54 : vector<128x32xf32>
    %c0_31 = arith.constant 0 : index
    %c0_32 = arith.constant 0 : index
    %c0_33 = arith.constant 0 : index
    %56 = vector.load %arg8[%c0_31, %c0_32, %c0_33] : memref<1x32x128xf32, #tpu.memory_space<vmem>>, vector<1x32x128xf32>
    %57 = vector.shape_cast %56 : vector<1x32x128xf32> to vector<32x128xf32>
    %58 = arith.mulf %57, %57 : vector<32x128xf32>
    %cst_34 = arith.constant dense<0.000000e+00> : vector<128xf32>
    %59 = vector.multi_reduction <add>, %58, %cst_34 [0] : vector<32x128xf32> to vector<128xf32>
    %60 = vector.shape_cast %59 : vector<128xf32> to vector<1x128xf32>
    %cst_35 = arith.constant 1.000000e-24 : f32
    %61 = vector.broadcast %cst_35 : f32 to vector<1x128xf32>
    %62 = arith.maximumf %60, %61 : vector<1x128xf32>
    %63 = math.rsqrt %62 : vector<1x128xf32>
    %64 = vector.broadcast %63 : vector<1x128xf32> to vector<32x128xf32>
    %65 = arith.mulf %57, %64 : vector<32x128xf32>
    %cst_36 = arith.constant dense<0.000000e+00> : vector<128x128xf32>
    %66 = tpu.matmul %55, %65, %cst_36 {dimension_numbers = #tpu.dot_dimension_numbers<[1], [0], [0], [1], [0, 0, 1, 1], [], []>} : vector<128x32xf32>, vector<32x128xf32>, vector<128x128xf32> -> vector<128x128xf32>
    %cst_37 = arith.constant 1.000000e+01 : f32
    %67 = vector.broadcast %cst_37 : f32 to vector<128x128xf32>
    %68 = arith.mulf %45, %67 : vector<128x128xf32>
    %cst_38 = arith.constant dense<0x7F800000> : vector<128xf32>
    %69 = vector.multi_reduction <minimumf>, %22, %cst_38 [1] : vector<128x128xf32> to vector<128xf32>
    %70 = vector.shape_cast %69 : vector<128xf32> to vector<128x1xf32>
    %71 = vector.broadcast %70 : vector<128x1xf32> to vector<128x128xf32>
    %72 = arith.cmpf oeq, %22, %71 : vector<128x128xf32>
    %c128_i32 = arith.constant 128 : i32
    %73 = vector.broadcast %c128_i32 : i32 to vector<128x128xi32>
    %74 = arith.select %72, %8, %73 : vector<128x128xi1>, vector<128x128xi32>
    %cst_39 = arith.constant dense<2147483647> : vector<128xi32>
    %75 = vector.multi_reduction <minsi>, %74, %cst_39 [1] : vector<128x128xi32> to vector<128xi32>
    %76 = vector.shape_cast %75 : vector<128xi32> to vector<128x1xi32>
    %cst_40 = arith.constant 1.000000e+00 : f32
    %77 = vector.broadcast %cst_40 : f32 to vector<128x1xf32>
    %78 = arith.cmpf ole, %70, %77 : vector<128x1xf32>
    %79 = arith.extui %78 : vector<128x1xi1> to vector<128x1xi32>
    %80 = arith.sitofp %79 : vector<128x1xi32> to vector<128x1xf32>
    %81 = arith.mulf %5, %80 : vector<128x1xf32>
    %82 = vector.broadcast %76 : vector<128x1xi32> to vector<128x128xi32>
    %83 = arith.cmpi eq, %8, %82 : vector<128x128xi32>
    %cst_41 = arith.constant dense<true> : vector<128x128xi1>
    %84 = arith.xori %83, %cst_41 : vector<128x128xi1>
    %85 = arith.andi %24, %84 : vector<128x128xi1>
    %cst_42 = arith.constant dense<0xFF800000> : vector<128xf32>
    %86 = vector.multi_reduction <maximumf>, %45, %cst_42 [1] : vector<128x128xf32> to vector<128xf32>
    %87 = vector.shape_cast %86 : vector<128xf32> to vector<128x1xf32>
    %88 = vector.broadcast %87 : vector<128x1xf32> to vector<128x128xf32>
    %89 = arith.cmpf oeq, %45, %88 : vector<128x128xf32>
    %c128_i32_43 = arith.constant 128 : i32
    %90 = vector.broadcast %c128_i32_43 : i32 to vector<128x128xi32>
    %91 = arith.select %89, %8, %90 : vector<128x128xi1>, vector<128x128xi32>
    %cst_44 = arith.constant dense<2147483647> : vector<128xi32>
    %92 = vector.multi_reduction <minsi>, %91, %cst_44 [1] : vector<128x128xi32> to vector<128xi32>
    %93 = vector.shape_cast %92 : vector<128xi32> to vector<128x1xi32>
    %94 = arith.cmpi eq, %93, %76 : vector<128x1xi32>
    %95 = arith.extui %94 : vector<128x1xi1> to vector<128x1xi32>
    %96 = arith.sitofp %95 : vector<128x1xi32> to vector<128x1xf32>
    %cst_45 = arith.constant 1.000000e+01 : f32
    %97 = vector.broadcast %cst_45 : f32 to vector<128x1xf32>
    %98 = arith.mulf %87, %97 : vector<128x1xf32>
    %99 = vector.broadcast %98 : vector<128x1xf32> to vector<128x128xf32>
    %100 = arith.subf %68, %99 : vector<128x128xf32>
    %101 = math.exp %100 : vector<128x128xf32>
    %cst_46 = arith.constant dense<0.000000e+00> : vector<128xf32>
    %102 = vector.multi_reduction <add>, %101, %cst_46 [1] : vector<128x128xf32> to vector<128xf32>
    %103 = vector.shape_cast %102 : vector<128xf32> to vector<128x1xf32>
    %104 = math.log %103 : vector<128x1xf32>
    %105 = arith.addf %98, %104 : vector<128x1xf32>
    %cst_47 = arith.constant 0.000000e+00 : f32
    %106 = vector.broadcast %cst_47 : f32 to vector<128x128xf32>
    %107 = arith.select %83, %68, %106 : vector<128x128xi1>, vector<128x128xf32>
    %cst_48 = arith.constant dense<0.000000e+00> : vector<128xf32>
    %108 = vector.multi_reduction <add>, %107, %cst_48 [1] : vector<128x128xf32> to vector<128xf32>
    %109 = vector.shape_cast %108 : vector<128xf32> to vector<128x1xf32>
    %110 = arith.subf %105, %109 : vector<128x1xf32>
    %cst_49 = arith.constant -1.000000e+08 : f32
    %111 = vector.broadcast %cst_49 : f32 to vector<128x128xf32>
    %112 = arith.select %85, %111, %66 : vector<128x128xi1>, vector<128x128xf32>
    %cst_50 = arith.constant 1.000000e+01 : f32
    %113 = vector.broadcast %cst_50 : f32 to vector<128x128xf32>
    %114 = arith.mulf %112, %113 : vector<128x128xf32>
    %cst_51 = arith.constant dense<0xFF800000> : vector<128xf32>
    %115 = vector.multi_reduction <maximumf>, %114, %cst_51 [1] : vector<128x128xf32> to vector<128xf32>
    %116 = vector.shape_cast %115 : vector<128xf32> to vector<128x1xf32>
    %117 = vector.broadcast %116 : vector<128x1xf32> to vector<128x128xf32>
    %118 = arith.subf %114, %117 : vector<128x128xf32>
    %119 = math.exp %118 : vector<128x128xf32>
    %cst_52 = arith.constant dense<0.000000e+00> : vector<128xf32>
    %120 = vector.multi_reduction <add>, %119, %cst_52 [1] : vector<128x128xf32> to vector<128xf32>
    %121 = vector.shape_cast %120 : vector<128xf32> to vector<128x1xf32>
    %122 = math.log %121 : vector<128x1xf32>
    %123 = arith.addf %116, %122 : vector<128x1xf32>
    %cst_53 = arith.constant 0.000000e+00 : f32
    %124 = vector.broadcast %cst_53 : f32 to vector<128x128xf32>
    %125 = arith.select %83, %114, %124 : vector<128x128xi1>, vector<128x128xf32>
    %cst_54 = arith.constant dense<0.000000e+00> : vector<128xf32>
    %126 = vector.multi_reduction <add>, %125, %cst_54 [1] : vector<128x128xf32> to vector<128xf32>
    %127 = vector.shape_cast %126 : vector<128xf32> to vector<128x1xf32>
    %128 = arith.subf %123, %127 : vector<128x1xf32>
    %129 = arith.mulf %110, %81 : vector<128x1xf32>
    %130 = vector.shape_cast %129 : vector<128x1xf32> to vector<1x128x1xf32>
    %cst_55 = arith.constant dense<0.000000e+00> : vector<1xf32>
    %131 = vector.multi_reduction <add>, %130, %cst_55 [1, 2] : vector<1x128x1xf32> to vector<1xf32>
    %132 = vector.shape_cast %131 : vector<1xf32> to vector<1x1x1xf32>
    %133 = vector.extract %132[0, 0, 0] : f32 from vector<1x1x1xf32>
    %134 = vector.broadcast %133 : f32 to vector<1x1xf32>
    %135 = arith.mulf %128, %81 : vector<128x1xf32>
    %136 = vector.shape_cast %135 : vector<128x1xf32> to vector<1x128x1xf32>
    %cst_56 = arith.constant dense<0.000000e+00> : vector<1xf32>
    %137 = vector.multi_reduction <add>, %136, %cst_56 [1, 2] : vector<1x128x1xf32> to vector<1xf32>
    %138 = vector.shape_cast %137 : vector<1xf32> to vector<1x1x1xf32>
    %139 = vector.extract %138[0, 0, 0] : f32 from vector<1x1x1xf32>
    %140 = vector.broadcast %139 : f32 to vector<1x1xf32>
    %141 = arith.mulf %96, %81 : vector<128x1xf32>
    %142 = vector.shape_cast %141 : vector<128x1xf32> to vector<1x128x1xf32>
    %cst_57 = arith.constant dense<0.000000e+00> : vector<1xf32>
    %143 = vector.multi_reduction <add>, %142, %cst_57 [1, 2] : vector<1x128x1xf32> to vector<1xf32>
    %144 = vector.shape_cast %143 : vector<1xf32> to vector<1x1x1xf32>
    %145 = vector.extract %144[0, 0, 0] : f32 from vector<1x1x1xf32>
    %146 = vector.broadcast %145 : f32 to vector<1x1xf32>
    %147 = vector.shape_cast %81 : vector<128x1xf32> to vector<1x128x1xf32>
    %cst_58 = arith.constant dense<0.000000e+00> : vector<1xf32>
    %148 = vector.multi_reduction <add>, %147, %cst_58 [1, 2] : vector<1x128x1xf32> to vector<1xf32>
    %149 = vector.shape_cast %148 : vector<1xf32> to vector<1x1x1xf32>
    %150 = vector.extract %149[0, 0, 0] : f32 from vector<1x1x1xf32>
    %151 = vector.broadcast %150 : f32 to vector<1x1xf32>
    %cst_59 = arith.constant dense<0x7F800000> : vector<128xf32>
    %152 = vector.multi_reduction <minimumf>, %22, %cst_59 [0] : vector<128x128xf32> to vector<128xf32>
    %153 = vector.shape_cast %152 : vector<128xf32> to vector<1x128xf32>
    %154 = vector.broadcast %153 : vector<1x128xf32> to vector<128x128xf32>
    %155 = arith.cmpf oeq, %22, %154 : vector<128x128xf32>
    %c128_i32_60 = arith.constant 128 : i32
    %156 = vector.broadcast %c128_i32_60 : i32 to vector<128x128xi32>
    %157 = arith.select %155, %9, %156 : vector<128x128xi1>, vector<128x128xi32>
    %cst_61 = arith.constant dense<2147483647> : vector<128xi32>
    %158 = vector.multi_reduction <minsi>, %157, %cst_61 [0] : vector<128x128xi32> to vector<128xi32>
    %159 = vector.shape_cast %158 : vector<128xi32> to vector<1x128xi32>
    %cst_62 = arith.constant 1.000000e+00 : f32
    %160 = vector.broadcast %cst_62 : f32 to vector<1x128xf32>
    %161 = arith.cmpf ole, %153, %160 : vector<1x128xf32>
    %162 = arith.extui %161 : vector<1x128xi1> to vector<1x128xi32>
    %163 = arith.sitofp %162 : vector<1x128xi32> to vector<1x128xf32>
    %164 = arith.mulf %7, %163 : vector<1x128xf32>
    %165 = vector.broadcast %159 : vector<1x128xi32> to vector<128x128xi32>
    %166 = arith.cmpi eq, %9, %165 : vector<128x128xi32>
    %cst_63 = arith.constant dense<true> : vector<128x128xi1>
    %167 = arith.xori %166, %cst_63 : vector<128x128xi1>
    %168 = arith.andi %24, %167 : vector<128x128xi1>
    %cst_64 = arith.constant dense<0xFF800000> : vector<128xf32>
    %169 = vector.multi_reduction <maximumf>, %45, %cst_64 [0] : vector<128x128xf32> to vector<128xf32>
    %170 = vector.shape_cast %169 : vector<128xf32> to vector<1x128xf32>
    %171 = vector.broadcast %170 : vector<1x128xf32> to vector<128x128xf32>
    %172 = arith.cmpf oeq, %45, %171 : vector<128x128xf32>
    %c128_i32_65 = arith.constant 128 : i32
    %173 = vector.broadcast %c128_i32_65 : i32 to vector<128x128xi32>
    %174 = arith.select %172, %9, %173 : vector<128x128xi1>, vector<128x128xi32>
    %cst_66 = arith.constant dense<2147483647> : vector<128xi32>
    %175 = vector.multi_reduction <minsi>, %174, %cst_66 [0] : vector<128x128xi32> to vector<128xi32>
    %176 = vector.shape_cast %175 : vector<128xi32> to vector<1x128xi32>
    %177 = arith.cmpi eq, %176, %159 : vector<1x128xi32>
    %178 = arith.extui %177 : vector<1x128xi1> to vector<1x128xi32>
    %179 = arith.sitofp %178 : vector<1x128xi32> to vector<1x128xf32>
    %cst_67 = arith.constant 1.000000e+01 : f32
    %180 = vector.broadcast %cst_67 : f32 to vector<1x128xf32>
    %181 = arith.mulf %170, %180 : vector<1x128xf32>
    %182 = vector.broadcast %181 : vector<1x128xf32> to vector<128x128xf32>
    %183 = arith.subf %68, %182 : vector<128x128xf32>
    %184 = math.exp %183 : vector<128x128xf32>
    %cst_68 = arith.constant dense<0.000000e+00> : vector<128xf32>
    %185 = vector.multi_reduction <add>, %184, %cst_68 [0] : vector<128x128xf32> to vector<128xf32>
    %186 = vector.shape_cast %185 : vector<128xf32> to vector<1x128xf32>
    %187 = math.log %186 : vector<1x128xf32>
    %188 = arith.addf %181, %187 : vector<1x128xf32>
    %cst_69 = arith.constant 0.000000e+00 : f32
    %189 = vector.broadcast %cst_69 : f32 to vector<128x128xf32>
    %190 = arith.select %166, %68, %189 : vector<128x128xi1>, vector<128x128xf32>
    %cst_70 = arith.constant dense<0.000000e+00> : vector<128xf32>
    %191 = vector.multi_reduction <add>, %190, %cst_70 [0] : vector<128x128xf32> to vector<128xf32>
    %192 = vector.shape_cast %191 : vector<128xf32> to vector<1x128xf32>
    %193 = arith.subf %188, %192 : vector<1x128xf32>
    %cst_71 = arith.constant -1.000000e+08 : f32
    %194 = vector.broadcast %cst_71 : f32 to vector<128x128xf32>
    %195 = arith.select %168, %194, %66 : vector<128x128xi1>, vector<128x128xf32>
    %cst_72 = arith.constant 1.000000e+01 : f32
    %196 = vector.broadcast %cst_72 : f32 to vector<128x128xf32>
    %197 = arith.mulf %195, %196 : vector<128x128xf32>
    %cst_73 = arith.constant dense<0xFF800000> : vector<128xf32>
    %198 = vector.multi_reduction <maximumf>, %197, %cst_73 [0] : vector<128x128xf32> to vector<128xf32>
    %199 = vector.shape_cast %198 : vector<128xf32> to vector<1x128xf32>
    %200 = vector.broadcast %199 : vector<1x128xf32> to vector<128x128xf32>
    %201 = arith.subf %197, %200 : vector<128x128xf32>
    %202 = math.exp %201 : vector<128x128xf32>
    %cst_74 = arith.constant dense<0.000000e+00> : vector<128xf32>
    %203 = vector.multi_reduction <add>, %202, %cst_74 [0] : vector<128x128xf32> to vector<128xf32>
    %204 = vector.shape_cast %203 : vector<128xf32> to vector<1x128xf32>
    %205 = math.log %204 : vector<1x128xf32>
    %206 = arith.addf %199, %205 : vector<1x128xf32>
    %cst_75 = arith.constant 0.000000e+00 : f32
    %207 = vector.broadcast %cst_75 : f32 to vector<128x128xf32>
    %208 = arith.select %166, %197, %207 : vector<128x128xi1>, vector<128x128xf32>
    %cst_76 = arith.constant dense<0.000000e+00> : vector<128xf32>
    %209 = vector.multi_reduction <add>, %208, %cst_76 [0] : vector<128x128xf32> to vector<128xf32>
    %210 = vector.shape_cast %209 : vector<128xf32> to vector<1x128xf32>
    %211 = arith.subf %206, %210 : vector<1x128xf32>
    %212 = arith.mulf %193, %164 : vector<1x128xf32>
    %213 = vector.shape_cast %212 : vector<1x128xf32> to vector<1x1x128xf32>
    %cst_77 = arith.constant dense<0.000000e+00> : vector<1xf32>
    %214 = vector.multi_reduction <add>, %213, %cst_77 [1, 2] : vector<1x1x128xf32> to vector<1xf32>
    %215 = vector.shape_cast %214 : vector<1xf32> to vector<1x1x1xf32>
    %216 = vector.extract %215[0, 0, 0] : f32 from vector<1x1x1xf32>
    %217 = vector.broadcast %216 : f32 to vector<1x1xf32>
    %218 = arith.mulf %211, %164 : vector<1x128xf32>
    %219 = vector.shape_cast %218 : vector<1x128xf32> to vector<1x1x128xf32>
    %cst_78 = arith.constant dense<0.000000e+00> : vector<1xf32>
    %220 = vector.multi_reduction <add>, %219, %cst_78 [1, 2] : vector<1x1x128xf32> to vector<1xf32>
    %221 = vector.shape_cast %220 : vector<1xf32> to vector<1x1x1xf32>
    %222 = vector.extract %221[0, 0, 0] : f32 from vector<1x1x1xf32>
    %223 = vector.broadcast %222 : f32 to vector<1x1xf32>
    %224 = arith.mulf %179, %164 : vector<1x128xf32>
    %225 = vector.shape_cast %224 : vector<1x128xf32> to vector<1x1x128xf32>
    %cst_79 = arith.constant dense<0.000000e+00> : vector<1xf32>
    %226 = vector.multi_reduction <add>, %225, %cst_79 [1, 2] : vector<1x1x128xf32> to vector<1xf32>
    %227 = vector.shape_cast %226 : vector<1xf32> to vector<1x1x1xf32>
    %228 = vector.extract %227[0, 0, 0] : f32 from vector<1x1x1xf32>
    %229 = vector.broadcast %228 : f32 to vector<1x1xf32>
    %230 = vector.shape_cast %164 : vector<1x128xf32> to vector<1x1x128xf32>
    %cst_80 = arith.constant dense<0.000000e+00> : vector<1xf32>
    %231 = vector.multi_reduction <add>, %230, %cst_80 [1, 2] : vector<1x1x128xf32> to vector<1xf32>
    %232 = vector.shape_cast %231 : vector<1xf32> to vector<1x1x1xf32>
    %233 = vector.extract %232[0, 0, 0] : f32 from vector<1x1x1xf32>
    %234 = vector.broadcast %233 : f32 to vector<1x1xf32>
    %235 = tpu.iota {dimensions = array<i32: 1>} : vector<1x8xi32>
    %c0_i32 = arith.constant 0 : i32
    %236 = vector.broadcast %c0_i32 : i32 to vector<1x8xi32>
    %237 = arith.cmpi eq, %235, %236 : vector<1x8xi32>
    %cst_81 = arith.constant 0.000000e+00 : f32
    %238 = vector.shape_cast %134 : vector<1x1xf32> to vector<1x1xf32>
    %239 = vector.broadcast %238 : vector<1x1xf32> to vector<1x8xf32>
    %240 = vector.broadcast %cst_81 : f32 to vector<1x8xf32>
    %241 = arith.select %237, %239, %240 : vector<1x8xi1>, vector<1x8xf32>
    %c1_i32 = arith.constant 1 : i32
    %242 = vector.broadcast %c1_i32 : i32 to vector<1x8xi32>
    %243 = arith.cmpi eq, %235, %242 : vector<1x8xi32>
    %cst_82 = arith.constant 0.000000e+00 : f32
    %244 = vector.shape_cast %140 : vector<1x1xf32> to vector<1x1xf32>
    %245 = vector.broadcast %244 : vector<1x1xf32> to vector<1x8xf32>
    %246 = vector.broadcast %cst_82 : f32 to vector<1x8xf32>
    %247 = arith.select %243, %245, %246 : vector<1x8xi1>, vector<1x8xf32>
    %248 = arith.addf %241, %247 : vector<1x8xf32>
    %c2_i32 = arith.constant 2 : i32
    %249 = vector.broadcast %c2_i32 : i32 to vector<1x8xi32>
    %250 = arith.cmpi eq, %235, %249 : vector<1x8xi32>
    %cst_83 = arith.constant 0.000000e+00 : f32
    %251 = vector.shape_cast %146 : vector<1x1xf32> to vector<1x1xf32>
    %252 = vector.broadcast %251 : vector<1x1xf32> to vector<1x8xf32>
    %253 = vector.broadcast %cst_83 : f32 to vector<1x8xf32>
    %254 = arith.select %250, %252, %253 : vector<1x8xi1>, vector<1x8xf32>
    %255 = arith.addf %248, %254 : vector<1x8xf32>
    %c3_i32 = arith.constant 3 : i32
    %256 = vector.broadcast %c3_i32 : i32 to vector<1x8xi32>
    %257 = arith.cmpi eq, %235, %256 : vector<1x8xi32>
    %cst_84 = arith.constant 0.000000e+00 : f32
    %258 = vector.shape_cast %151 : vector<1x1xf32> to vector<1x1xf32>
    %259 = vector.broadcast %258 : vector<1x1xf32> to vector<1x8xf32>
    %260 = vector.broadcast %cst_84 : f32 to vector<1x8xf32>
    %261 = arith.select %257, %259, %260 : vector<1x8xi1>, vector<1x8xf32>
    %262 = arith.addf %255, %261 : vector<1x8xf32>
    %c4_i32 = arith.constant 4 : i32
    %263 = vector.broadcast %c4_i32 : i32 to vector<1x8xi32>
    %264 = arith.cmpi eq, %235, %263 : vector<1x8xi32>
    %cst_85 = arith.constant 0.000000e+00 : f32
    %265 = vector.shape_cast %217 : vector<1x1xf32> to vector<1x1xf32>
    %266 = vector.broadcast %265 : vector<1x1xf32> to vector<1x8xf32>
    %267 = vector.broadcast %cst_85 : f32 to vector<1x8xf32>
    %268 = arith.select %264, %266, %267 : vector<1x8xi1>, vector<1x8xf32>
    %269 = arith.addf %262, %268 : vector<1x8xf32>
    %c5_i32 = arith.constant 5 : i32
    %270 = vector.broadcast %c5_i32 : i32 to vector<1x8xi32>
    %271 = arith.cmpi eq, %235, %270 : vector<1x8xi32>
    %cst_86 = arith.constant 0.000000e+00 : f32
    %272 = vector.shape_cast %223 : vector<1x1xf32> to vector<1x1xf32>
    %273 = vector.broadcast %272 : vector<1x1xf32> to vector<1x8xf32>
    %274 = vector.broadcast %cst_86 : f32 to vector<1x8xf32>
    %275 = arith.select %271, %273, %274 : vector<1x8xi1>, vector<1x8xf32>
    %276 = arith.addf %269, %275 : vector<1x8xf32>
    %c6_i32 = arith.constant 6 : i32
    %277 = vector.broadcast %c6_i32 : i32 to vector<1x8xi32>
    %278 = arith.cmpi eq, %235, %277 : vector<1x8xi32>
    %cst_87 = arith.constant 0.000000e+00 : f32
    %279 = vector.shape_cast %229 : vector<1x1xf32> to vector<1x1xf32>
    %280 = vector.broadcast %279 : vector<1x1xf32> to vector<1x8xf32>
    %281 = vector.broadcast %cst_87 : f32 to vector<1x8xf32>
    %282 = arith.select %278, %280, %281 : vector<1x8xi1>, vector<1x8xf32>
    %283 = arith.addf %276, %282 : vector<1x8xf32>
    %c7_i32 = arith.constant 7 : i32
    %284 = vector.broadcast %c7_i32 : i32 to vector<1x8xi32>
    %285 = arith.cmpi eq, %235, %284 : vector<1x8xi32>
    %cst_88 = arith.constant 0.000000e+00 : f32
    %286 = vector.shape_cast %234 : vector<1x1xf32> to vector<1x1xf32>
    %287 = vector.broadcast %286 : vector<1x1xf32> to vector<1x8xf32>
    %288 = vector.broadcast %cst_88 : f32 to vector<1x8xf32>
    %289 = arith.select %285, %287, %288 : vector<1x8xi1>, vector<1x8xf32>
    %290 = arith.addf %283, %289 : vector<1x8xf32>
    %c0_89 = arith.constant 0 : index
    %c0_90 = arith.constant 0 : index
    %c0_91 = arith.constant 0 : index
    %291 = vector.load %arg9[%c0_89, %c0_90, %c0_91] : memref<1x1x8xf32, #tpu.memory_space<vmem>>, vector<1x1x8xf32>
    %292 = vector.shape_cast %291 : vector<1x1x8xf32> to vector<1x8xf32>
    %293 = vector.shape_cast %290 : vector<1x8xf32> to vector<1x1x8xf32>
    tpu.vector_store %arg9[%c0_89, %c0_90, %c0_91], %293 {strides = array<i32>} : memref<1x1x8xf32, #tpu.memory_space<vmem>>, vector<1x1x8xf32>,
    return
  }
  func.func @transform_0(%arg0: i32) -> (i32, i32, i32) {
    %c0_i32 = arith.constant 0 : i32
    %c0_i32_0 = arith.constant 0 : i32
    %c0_i32_1 = arith.constant 0 : i32
    return %arg0, %c0_i32, %c0_i32_0 : i32, i32, i32
  }
  func.func @transform_1(%arg0: i32) -> (i32, i32, i32) {
    %c0_i32 = arith.constant 0 : i32
    %c0_i32_0 = arith.constant 0 : i32
    %c0_i32_1 = arith.constant 0 : i32
    return %arg0, %c0_i32, %c0_i32_0 : i32, i32, i32
  }
  func.func @transform_2(%arg0: i32) -> (i32, i32, i32) {
    %c0_i32 = arith.constant 0 : i32
    %c0_i32_0 = arith.constant 0 : i32
    %c0_i32_1 = arith.constant 0 : i32
    return %arg0, %c0_i32, %c0_i32_0 : i32, i32, i32
  }
  func.func @transform_3(%arg0: i32) -> (i32, i32, i32) {
    %c0_i32 = arith.constant 0 : i32
    %c0_i32_0 = arith.constant 0 : i32
    %c0_i32_1 = arith.constant 0 : i32
    return %arg0, %c0_i32, %c0_i32_0 : i32, i32, i32
  }
  func.func @transform_4(%arg0: i32) -> (i32, i32, i32) {
    %c0_i32 = arith.constant 0 : i32
    %c0_i32_0 = arith.constant 0 : i32
    %c0_i32_1 = arith.constant 0 : i32
    return %arg0, %c0_i32, %c0_i32_0 : i32, i32, i32
  }
  func.func @transform_5(%arg0: i32) -> (i32, i32, i32) {
    %c0_i32 = arith.constant 0 : i32
    %c0_i32_0 = arith.constant 0 : i32
    %c0_i32_1 = arith.constant 0 : i32
    return %arg0, %c0_i32, %c0_i32_0 : i32, i32, i32
  }
  func.func @transform_6(%arg0: i32) -> (i32, i32, i32) {
    %c0_i32 = arith.constant 0 : i32
    %c0_i32_0 = arith.constant 0 : i32
    %c0_i32_1 = arith.constant 0 : i32
    return %arg0, %c0_i32, %c0_i32_0 : i32, i32, i32
  }
  func.func @transform_7(%arg0: i32) -> (i32, i32, i32) {
    %c0_i32 = arith.constant 0 : i32
    %c0_i32_0 = arith.constant 0 : i32
    %c0_i32_1 = arith.constant 0 : i32
    return %arg0, %c0_i32, %c0_i32_0 : i32, i32, i32
  }
  func.func @transform_8(%arg0: i32) -> (i32, i32, i32) {
    %c0_i32 = arith.constant 0 : i32
    %c0_i32_0 = arith.constant 0 : i32
    %c0_i32_1 = arith.constant 0 : i32
    return %arg0, %c0_i32, %c0_i32_0 : i32, i32, i32
  }
}

</mosaic_0001>

<llo_original>
// kernel: tpu_custom_call.1
$region0: #{tpu_custom_call.1}
  #allocation0 [shape = 'u32[]', space=smem, size = 0x4, offset = 0x4, fixed_abs, tag = 'smem constant byte address 0x4 - core index']
  #allocation1 [shape = 'u32[144,128]{1,0:T(1,128)}', space=vmem, size = 0x12000, scoped, tag = 'internal scratch']
  %s0 = inlined_call_operand.vmem [shape: f32[2,128,3], index: 0, kind: input, shape index: {}]
  %s1 = inlined_call_operand.vmem [shape: f32[2,3,128], index: 1, kind: input, shape index: {}]
  %s2 = inlined_call_operand.vmem [shape: f32[2,128,1], index: 2, kind: input, shape index: {}]
  %s3 = inlined_call_operand.vmem [shape: f32[2,1,128], index: 3, kind: input, shape index: {}]
  %s4 = inlined_call_operand.vmem [shape: f32[2,128,64], index: 4, kind: input, shape index: {}]
  %s5 = inlined_call_operand.vmem [shape: f32[2,64,128], index: 5, kind: input, shape index: {}]
  %s6 = inlined_call_operand.vmem [shape: f32[2,128,32], index: 6, kind: input, shape index: {}]
  %s7 = inlined_call_operand.vmem [shape: f32[2,32,128], index: 7, kind: input, shape index: {}]
  %s8 = inlined_call_operand.hbm [shape: f32[2,1,8], index: 8, kind: output, shape index: {}]
  %s9 = sld [smem:[#allocation0]]
  $region65: #{tpu_custom_call.1} parent=0
    _
  %s11 = ssub.s32 1, %s9
  %s12 = scalar_select 0, %s11, %s9
  $region1: #{tpu_custom_call.1} parent=0
    #allocation2 [shape = 'u8[1024]{0}', space=vmem, size = 0x400, scoped, tag = 'output window, operand 0']
    #allocation3 [shape = 's32[2]{0}', space=sflag, size = 0x8, scoped, tag = 'scoped memory for tpu_custom_call.1']
    %13 = vsyncpa [#allocation3], 0
    %s14 = scalar_lea.sflag [#allocation3], 1
    %15 = vsyncpa %s14, 0
    loop: start=0, step=1, limit=4
    $region2: #{tpu_custom_call.1} parent=1 // loop_pre_header
      _
    $region3: #{tpu_custom_call.1} parent=1 // loop_header
      %s17 = sphi 0, %s21
      %p18 = scmp.ge.s32.totalorder %s17, 4
      %s27 = sphi 0, %s29
      %s30 = sphi 0, %s27
      %s31 = sphi 0, %s30
      %s47 = sphi 0, %s31
      %s53 = sphi 0, %s55
      %s56 = sphi 0, %s53
      %s57 = sphi 0, %s56
      %s73 = sphi 0, %s57
      %s79 = sphi 0, %s81
      %s82 = sphi 0, %s79
      %s83 = sphi 0, %s82
      %s99 = sphi 0, %s83
      %s105 = sphi 0, %s107
      %s108 = sphi 0, %s105
      %s109 = sphi 0, %s108
      %s125 = sphi 0, %s109
      %s131 = sphi 0, %s133
      %s134 = sphi 0, %s131
      %s135 = sphi 0, %s134
      %s151 = sphi 0, %s135
      %s157 = sphi 0, %s159
      %s160 = sphi 0, %s157
      %s161 = sphi 0, %s160
      %s177 = sphi 0, %s161
      %s183 = sphi 0, %s185
      %s186 = sphi 0, %s183
      %s187 = sphi 0, %s186
      %s203 = sphi 0, %s187
      %s209 = sphi 0, %s211
      %s212 = sphi 0, %s209
      %s213 = sphi 0, %s212
      %s229 = sphi 0, %s213
      %s235 = sphi 0, %s237
      %s238 = sphi 0, %s235
      %s239 = sphi 0, %s238
      %s255 = sphi 0, %s239
    $region4: #{tpu_custom_call.1} parent=1 // loop_header_branch
      %20 = sbr.rel (%p18) target = $region8
    $region5: #{tpu_custom_call.1} parent=1 // loop_body
      %s22 = ssub.s32 %s17, 1
      %s23 = ssub.s32 %s17, 2
      %s24 = sadd.s32 %s17, 1
      %s25 = ssub.s32 %s17, %s24
      %p26 = scmp.eq.s32.totalorder %s25, 0
      %s28 = sadd.s32 %s27, 1
      %s29 = scalar_select %p26, %s27, %s28
      %p32 = pneg %p26
      %p33 = scmp.eq.s32.totalorder %s17, 1
      %p34 = por %p32, %p33
      %p35 = scmp.ne.s32.totalorder %s27, %s30
      %p36 = scmp.eq.s32.totalorder %s17, 0
      %p37 = por %p35, %p36
      %p38 = scmp.ne.s32.totalorder %s27, %s30
      %p39 = scmp.eq.s32.totalorder %s22, 1
      %p40 = por %p38, %p39
      %p41 = scmp.ne.s32.totalorder %s30, %s31
      %p42 = scmp.eq.s32.totalorder %s22, 0
      %p43 = por %p41, %p42
      %p44 = scmp.ne.s32.totalorder %s30, %s31
      %p45 = scmp.eq.s32.totalorder %s23, 1
      %p46 = por %p44, %p45
      %p48 = scmp.ne.s32.totalorder %s31, %s47
      %p49 = scmp.eq.s32.totalorder %s23, 0
      %p50 = por %p48, %p49
      %s51 = ssub.s32 %s17, %s24
      %p52 = scmp.eq.s32.totalorder %s51, 0
      %s54 = sadd.s32 %s53, 1
      %s55 = scalar_select %p52, %s53, %s54
      %p58 = pneg %p52
      %p59 = scmp.eq.s32.totalorder %s17, 1
      %p60 = por %p58, %p59
      %p61 = scmp.ne.s32.totalorder %s53, %s56
      %p62 = scmp.eq.s32.totalorder %s17, 0
      %p63 = por %p61, %p62
      %p64 = scmp.ne.s32.totalorder %s53, %s56
      %p65 = scmp.eq.s32.totalorder %s22, 1
      %p66 = por %p64, %p65
      %p67 = scmp.ne.s32.totalorder %s56, %s57
      %p68 = scmp.eq.s32.totalorder %s22, 0
      %p69 = por %p67, %p68
      %p70 = scmp.ne.s32.totalorder %s56, %s57
      %p71 = scmp.eq.s32.totalorder %s23, 1
      %p72 = por %p70, %p71
      %p74 = scmp.ne.s32.totalorder %s57, %s73
      %p75 = scmp.eq.s32.totalorder %s23, 0
      %p76 = por %p74, %p75
      %s77 = ssub.s32 %s17, %s24
      %p78 = scmp.eq.s32.totalorder %s77, 0
      %s80 = sadd.s32 %s79, 1
      %s81 = scalar_select %p78, %s79, %s80
      %p84 = pneg %p78
      %p85 = scmp.eq.s32.totalorder %s17, 1
      %p86 = por %p84, %p85
      %p87 = scmp.ne.s32.totalorder %s79, %s82
      %p88 = scmp.eq.s32.totalorder %s17, 0
      %p89 = por %p87, %p88
      %p90 = scmp.ne.s32.totalorder %s79, %s82
      %p91 = scmp.eq.s32.totalorder %s22, 1
      %p92 = por %p90, %p91
      %p93 = scmp.ne.s32.totalorder %s82, %s83
      %p94 = scmp.eq.s32.totalorder %s22, 0
      %p95 = por %p93, %p94
      %p96 = scmp.ne.s32.totalorder %s82, %s83
      %p97 = scmp.eq.s32.totalorder %s23, 1
      %p98 = por %p96, %p97
      %p100 = scmp.ne.s32.totalorder %s83, %s99
      %p101 = scmp.eq.s32.totalorder %s23, 0
      %p102 = por %p100, %p101
      %s103 = ssub.s32 %s17, %s24
      %p104 = scmp.eq.s32.totalorder %s103, 0
      %s106 = sadd.s32 %s105, 1
      %s107 = scalar_select %p104, %s105, %s106
      %p110 = pneg %p104
      %p111 = scmp.eq.s32.totalorder %s17, 1
      %p112 = por %p110, %p111
      %p113 = scmp.ne.s32.totalorder %s105, %s108
      %p114 = scmp.eq.s32.totalorder %s17, 0
      %p115 = por %p113, %p114
      %p116 = scmp.ne.s32.totalorder %s105, %s108
      %p117 = scmp.eq.s32.totalorder %s22, 1
      %p118 = por %p116, %p117
      %p119 = scmp.ne.s32.totalorder %s108, %s109
      %p120 = scmp.eq.s32.totalorder %s22, 0
      %p121 = por %p119, %p120
      %p122 = scmp.ne.s32.totalorder %s108, %s109
      %p123 = scmp.eq.s32.totalorder %s23, 1
      %p124 = por %p122, %p123
      %p126 = scmp.ne.s32.totalorder %s109, %s125
      %p127 = scmp.eq.s32.totalorder %s23, 0
      %p128 = por %p126, %p127
      %s129 = ssub.s32 %s17, %s24
      %p130 = scmp.eq.s32.totalorder %s129, 0
      %s132 = sadd.s32 %s131, 1
      %s133 = scalar_select %p130, %s131, %s132
      %p136 = pneg %p130
      %p137 = scmp.eq.s32.totalorder %s17, 1
      %p138 = por %p136, %p137
      %p139 = scmp.ne.s32.totalorder %s131, %s134
      %p140 = scmp.eq.s32.totalorder %s17, 0
      %p141 = por %p139, %p140
      %p142 = scmp.ne.s32.totalorder %s131, %s134
      %p143 = scmp.eq.s32.totalorder %s22, 1
      %p144 = por %p142, %p143
      %p145 = scmp.ne.s32.totalorder %s134, %s135
      %p146 = scmp.eq.s32.totalorder %s22, 0
      %p147 = por %p145, %p146
      %p148 = scmp.ne.s32.totalorder %s134, %s135
      %p149 = scmp.eq.s32.totalorder %s23, 1
      %p150 = por %p148, %p149
      %p152 = scmp.ne.s32.totalorder %s135, %s151
      %p153 = scmp.eq.s32.totalorder %s23, 0
      %p154 = por %p152, %p153
      %s155 = ssub.s32 %s17, %s24
      %p156 = scmp.eq.s32.totalorder %s155, 0
      %s158 = sadd.s32 %s157, 1
      %s159 = scalar_select %p156, %s157, %s158
      %p162 = pneg %p156
      %p163 = scmp.eq.s32.totalorder %s17, 1
      %p164 = por %p162, %p163
      %p165 = scmp.ne.s32.totalorder %s157, %s160
      %p166 = scmp.eq.s32.totalorder %s17, 0
      %p167 = por %p165, %p166
      %p168 = scmp.ne.s32.totalorder %s157, %s160
      %p169 = scmp.eq.s32.totalorder %s22, 1
      %p170 = por %p168, %p169
      %p171 = scmp.ne.s32.totalorder %s160, %s161
      %p172 = scmp.eq.s32.totalorder %s22, 0
      %p173 = por %p171, %p172
      %p174 = scmp.ne.s32.totalorder %s160, %s161
      %p175 = scmp.eq.s32.totalorder %s23, 1
      %p176 = por %p174, %p175
      %p178 = scmp.ne.s32.totalorder %s161, %s177
      %p179 = scmp.eq.s32.totalorder %s23, 0
      %p180 = por %p178, %p179
      %s181 = ssub.s32 %s17, %s24
      %p182 = scmp.eq.s32.totalorder %s181, 0
      %s184 = sadd.s32 %s183, 1
      %s185 = scalar_select %p182, %s183, %s184
      %p188 = pneg %p182
      %p189 = scmp.eq.s32.totalorder %s17, 1
      %p190 = por %p188, %p189
      %p191 = scmp.ne.s32.totalorder %s183, %s186
      %p192 = scmp.eq.s32.totalorder %s17, 0
      %p193 = por %p191, %p192
      %p194 = scmp.ne.s32.totalorder %s183, %s186
      %p195 = scmp.eq.s32.totalorder %s22, 1
      %p196 = por %p194, %p195
      %p197 = scmp.ne.s32.totalorder %s186, %s187
      %p198 = scmp.eq.s32.totalorder %s22, 0
      %p199 = por %p197, %p198
      %p200 = scmp.ne.s32.totalorder %s186, %s187
      %p201 = scmp.eq.s32.totalorder %s23, 1
      %p202 = por %p200, %p201
      %p204 = scmp.ne.s32.totalorder %s187, %s203
      %p205 = scmp.eq.s32.totalorder %s23, 0
      %p206 = por %p204, %p205
      %s207 = ssub.s32 %s17, %s24
      %p208 = scmp.eq.s32.totalorder %s207, 0
      %s210 = sadd.s32 %s209, 1
      %s211 = scalar_select %p208, %s209, %s210
      %p214 = pneg %p208
      %p215 = scmp.eq.s32.totalorder %s17, 1
      %p216 = por %p214, %p215
      %p217 = scmp.ne.s32.totalorder %s209, %s212
      %p218 = scmp.eq.s32.totalorder %s17, 0
      %p219 = por %p217, %p218
      %p220 = scmp.ne.s32.totalorder %s209, %s212
      %p221 = scmp.eq.s32.totalorder %s22, 1
      %p222 = por %p220, %p221
      %p223 = scmp.ne.s32.totalorder %s212, %s213
      %p224 = scmp.eq.s32.totalorder %s22, 0
      %p225 = por %p223, %p224
      %p226 = scmp.ne.s32.totalorder %s212, %s213
      %p227 = scmp.eq.s32.totalorder %s23, 1
      %p228 = por %p226, %p227
      %p230 = scmp.ne.s32.totalorder %s213, %s229
      %p231 = scmp.eq.s32.totalorder %s23, 0
      %p232 = por %p230, %p231
      %s233 = ssub.s32 %s17, %s24
      %p234 = scmp.eq.s32.totalorder %s233, 0
      %s236 = sadd.s32 %s235, 1
      %s237 = scalar_select %p234, %s235, %s236
      %p240 = pneg %p234
      %p241 = scmp.eq.s32.totalorder %s17, 1
      %p242 = por %p240, %p241
      %p243 = scmp.ne.s32.totalorder %s235, %s238
      %p244 = scmp.eq.s32.totalorder %s17, 0
      %p245 = por %p243, %p244
      %p246 = scmp.ne.s32.totalorder %s235, %s238
      %p247 = scmp.eq.s32.totalorder %s22, 1
      %p248 = por %p246, %p247
      %p249 = scmp.ne.s32.totalorder %s238, %s239
      %p250 = scmp.eq.s32.totalorder %s22, 0
      %p251 = por %p249, %p250
      %p252 = scmp.ne.s32.totalorder %s238, %s239
      %p253 = scmp.eq.s32.totalorder %s23, 1
      %p254 = por %p252, %p253
      %p256 = scmp.ne.s32.totalorder %s239, %s255
      %p257 = scmp.eq.s32.totalorder %s23, 0
      %p258 = por %p256, %p257
      %p259 = scmp.le.s32.totalorder 1, %s17
      %p260 = scmp.lt.s32.totalorder %s17, 3
      %p261 = pnand %p259, %p260
      %p262 = pneg %p261
      // Predicated region
      $region9: #{tpu_custom_call.1} parent=5 // pred_check
        _
      $region10: #{tpu_custom_call.1} parent=5 // pred_check_branch
        %264 = sbr.rel (%p261) target = $region12
      $region11: #{tpu_custom_call.1} parent=5 // pred_region
        %s265 = ssub.s32 %s17, 1
      $region12: #{tpu_custom_call.1} parent=5 // pred_fallthru
        _
      %p266 = scmp.lt.s32.totalorder %s17, 2
      // Predicated region
      $region13: #{tpu_custom_call.1} parent=5 // pred_check
        %p267 = pneg %p266
      $region14: #{tpu_custom_call.1} parent=5 // pred_check_branch
        %269 = sbr.rel (%p267) target = $region16
      $region15: #{tpu_custom_call.1} parent=5 // pred_region
        // Predicated region
        $region17: #{tpu_custom_call.1} parent=15 // pred_check
          %p270 = pneg %p37
        $region18: #{tpu_custom_call.1} parent=15 // pred_check_branch
          %272 = sbr.rel (%p270) target = $region20
        $region19: #{tpu_custom_call.1} parent=15 // pred_region
          %p273 = scmp.lt.s32.totalorder %s17, 1
          %s274 = scalar_select %p273, %s17, 1
          %s275 = smul.addr %s274, 16
          %s276 = smul.addr %s275, 8
          %s277 = scalar_lea.vmem %s0, %s276
        $region20: #{tpu_custom_call.1} parent=15 // pred_fallthru
          _
        // Predicated region
        $region21: #{tpu_custom_call.1} parent=15 // pred_check
          %p278 = pneg %p63
        $region22: #{tpu_custom_call.1} parent=15 // pred_check_branch
          %280 = sbr.rel (%p278) target = $region24
        $region23: #{tpu_custom_call.1} parent=15 // pred_region
          %p281 = scmp.lt.s32.totalorder %s17, 1
          %s282 = scalar_select %p281, %s17, 1
          %s283 = smul.addr %s282, 4
          %s284 = scalar_lea.vmem %s1, %s283
        $region24: #{tpu_custom_call.1} parent=15 // pred_fallthru
          _
        // Predicated region
        $region25: #{tpu_custom_call.1} parent=15 // pred_check
          %p285 = pneg %p89
        $region26: #{tpu_custom_call.1} parent=15 // pred_check_branch
          %287 = sbr.rel (%p285) target = $region28
        $region27: #{tpu_custom_call.1} parent=15 // pred_region
          %p288 = scmp.lt.s32.totalorder %s17, 1
          %s289 = scalar_select %p288, %s17, 1
          %s290 = smul.addr %s289, 16
          %s291 = smul.addr %s290, 8
          %s292 = scalar_lea.vmem %s2, %s291
        $region28: #{tpu_custom_call.1} parent=15 // pred_fallthru
          _
        // Predicated region
        $region29: #{tpu_custom_call.1} parent=15 // pred_check
          %p293 = pneg %p115
        $region30: #{tpu_custom_call.1} parent=15 // pred_check_branch
          %295 = sbr.rel (%p293) target = $region32
        $region31: #{tpu_custom_call.1} parent=15 // pred_region
          %p296 = scmp.lt.s32.totalorder %s17, 1
          %s297 = scalar_select %p296, %s17, 1
          %s298 = scalar_lea.vmem %s3, %s297
        $region32: #{tpu_custom_call.1} parent=15 // pred_fallthru
          _
        // Predicated region
        $region33: #{tpu_custom_call.1} parent=15 // pred_check
          %p299 = pneg %p141
        $region34: #{tpu_custom_call.1} parent=15 // pred_check_branch
          %301 = sbr.rel (%p299) target = $region36
        $region35: #{tpu_custom_call.1} parent=15 // pred_region
          %p302 = scmp.lt.s32.totalorder %s17, 1
          %s303 = scalar_select %p302, %s17, 1
          %s304 = smul.addr %s303, 16
          %s305 = smul.addr %s304, 8
          %s306 = scalar_lea.vmem %s4, %s305
        $region36: #{tpu_custom_call.1} parent=15 // pred_fallthru
          _
        // Predicated region
        $region37: #{tpu_custom_call.1} parent=15 // pred_check
          %p307 = pneg %p167
        $region38: #{tpu_custom_call.1} parent=15 // pred_check_branch
          %309 = sbr.rel (%p307) target = $region40
        $region39: #{tpu_custom_call.1} parent=15 // pred_region
          %p310 = scmp.lt.s32.totalorder %s17, 1
          %s311 = scalar_select %p310, %s17, 1
          %s312 = smul.addr %s311, 8
          %s313 = smul.addr %s312, 8
          %s314 = scalar_lea.vmem %s5, %s313
        $region40: #{tpu_custom_call.1} parent=15 // pred_fallthru
          _
        // Predicated region
        $region41: #{tpu_custom_call.1} parent=15 // pred_check
          %p315 = pneg %p193
        $region42: #{tpu_custom_call.1} parent=15 // pred_check_branch
          %317 = sbr.rel (%p315) target = $region44
        $region43: #{tpu_custom_call.1} parent=15 // pred_region
          %p318 = scmp.lt.s32.totalorder %s17, 1
          %s319 = scalar_select %p318, %s17, 1
          %s320 = smul.addr %s319, 16
          %s321 = smul.addr %s320, 8
          %s322 = scalar_lea.vmem %s6, %s321
        $region44: #{tpu_custom_call.1} parent=15 // pred_fallthru
          _
        // Predicated region
        $region45: #{tpu_custom_call.1} parent=15 // pred_check
          %p323 = pneg %p219
        $region46: #{tpu_custom_call.1} parent=15 // pred_check_branch
          %325 = sbr.rel (%p323) target = $region48
        $region47: #{tpu_custom_call.1} parent=15 // pred_region
          %p326 = scmp.lt.s32.totalorder %s17, 1
          %s327 = scalar_select %p326, %s17, 1
          %s328 = smul.addr %s327, 4
          %s329 = smul.addr %s328, 8
          %s330 = scalar_lea.vmem %s7, %s329
        $region48: #{tpu_custom_call.1} parent=15 // pred_fallthru
          _
      $region16: #{tpu_custom_call.1} parent=5 // pred_fallthru
        _
      %p331 = scmp.le.s32.totalorder 1, %s17
      %p332 = scmp.lt.s32.totalorder %s17, 3
      %p333 = pnand %p331, %p332
      %p334 = pneg %p333
      // Predicated region
      $region49: #{tpu_custom_call.1} parent=5 // pred_check
        _
      $region50: #{tpu_custom_call.1} parent=5 // pred_check_branch
        %336 = sbr.rel (%p333) target = $region52
      $region51: #{tpu_custom_call.1} parent=5 // pred_region
        %s337 = ssub.s32 %s17, 1
        %p338 = scmp.lt.s32.totalorder %s22, 1
        %s339 = scalar_select %p338, %s22, 1
        %s340 = smul.addr %s339, 16
        %s341 = smul.addr %s340, 8
        %s342 = scalar_lea.vmem %s0, %s341
        %p343 = pneg %p43
        %p344 = pneg %p40
        %p345 = scmp.lt.s32.totalorder %s22, 1
        %s346 = scalar_select %p345, %s22, 1
        %s347 = smul.addr %s346, 4
        %s348 = scalar_lea.vmem %s1, %s347
        %p349 = pneg %p69
        %p350 = pneg %p66
        %p351 = scmp.lt.s32.totalorder %s22, 1
        %s352 = scalar_select %p351, %s22, 1
        %s353 = smul.addr %s352, 16
        %s354 = smul.addr %s353, 8
        %s355 = scalar_lea.vmem %s2, %s354
        %p356 = pneg %p95
        %p357 = pneg %p92
        %p358 = scmp.lt.s32.totalorder %s22, 1
        %s359 = scalar_select %p358, %s22, 1
        %s360 = scalar_lea.vmem %s3, %s359
        %p361 = pneg %p121
        %p362 = pneg %p118
        %p363 = scmp.lt.s32.totalorder %s22, 1
        %s364 = scalar_select %p363, %s22, 1
        %s365 = smul.addr %s364, 16
        %s366 = smul.addr %s365, 8
        %s367 = scalar_lea.vmem %s4, %s366
        %p368 = pneg %p147
        %p369 = pneg %p144
        %p370 = scmp.lt.s32.totalorder %s22, 1
        %s371 = scalar_select %p370, %s22, 1
        %s372 = smul.addr %s371, 8
        %s373 = smul.addr %s372, 8
        %s374 = scalar_lea.vmem %s5, %s373
        %p375 = pneg %p173
        %p376 = pneg %p170
        %p377 = scmp.lt.s32.totalorder %s22, 1
        %s378 = scalar_select %p377, %s22, 1
        %s379 = smul.addr %s378, 16
        %s380 = smul.addr %s379, 8
        %s381 = scalar_lea.vmem %s6, %s380
        %p382 = pneg %p199
        %p383 = pneg %p196
        %p384 = scmp.lt.s32.totalorder %s22, 1
        %s385 = scalar_select %p384, %s22, 1
        %s386 = smul.addr %s385, 4
        %s387 = smul.addr %s386, 8
        %s388 = scalar_lea.vmem %s7, %s387
        %p389 = pneg %p225
        %p390 = pneg %p222
        %p391 = pneg %p251
        %p392 = pneg %p248
        %s393 = sand.u32 %s238, 1
        %s394 = scalar_lea.sflag [#allocation3], %s393
        %s395 = sand.u32 %s238, 1
        %s396 = scalar_lea.vmem [#allocation2], %s395
        %p397 = scmp.lt.s32.totalorder %s22, 1
        %s398 = scalar_select %p397, %s22, 1
        %s399 = smul.addr %s398, 16
        %s400 = smul.addr %s399, 8
        %s401 = scalar_lea.vmem %s0, %s400
        %p402 = scmp.lt.s32.totalorder %s22, 1
        %s403 = scalar_select %p402, %s22, 1
        %s404 = smul.addr %s403, 4
        %s405 = scalar_lea.vmem %s1, %s404
        %p406 = scmp.lt.s32.totalorder %s22, 1
        %s407 = scalar_select %p406, %s22, 1
        %s408 = smul.addr %s407, 16
        %s409 = smul.addr %s408, 8
        %s410 = scalar_lea.vmem %s2, %s409
        %p411 = scmp.lt.s32.totalorder %s22, 1
        %s412 = scalar_select %p411, %s22, 1
        %s413 = scalar_lea.vmem %s3, %s412
        %p414 = scmp.lt.s32.totalorder %s22, 1
        %s415 = scalar_select %p414, %s22, 1
        %s416 = smul.addr %s415, 16
        %s417 = smul.addr %s416, 8
        %s418 = scalar_lea.vmem %s4, %s417
        %p419 = scmp.lt.s32.totalorder %s22, 1
        %s420 = scalar_select %p419, %s22, 1
        %s421 = smul.addr %s420, 8
        %s422 = smul.addr %s421, 8
        %s423 = scalar_lea.vmem %s5, %s422
        %p424 = scmp.lt.s32.totalorder %s22, 1
        %s425 = scalar_select %p424, %s22, 1
        %s426 = smul.addr %s425, 16
        %s427 = smul.addr %s426, 8
        %s428 = scalar_lea.vmem %s6, %s427
        %p429 = scmp.lt.s32.totalorder %s22, 1
        %s430 = scalar_select %p429, %s22, 1
        %s431 = smul.addr %s430, 4
        %s432 = smul.addr %s431, 8
        %s433 = scalar_lea.vmem %s7, %s432
        %v434 = vld [vmem:[%s401] sm:$0xff]
        %v435 = vld [vmem:[%s401 + $0x8] sm:$0xff]
        %v436 = vld [vmem:[%s401 + $0x10] sm:$0xff]
        %v437 = vld [vmem:[%s401 + $0x18] sm:$0xff]
        %v438 = vld [vmem:[%s401 + $0x20] sm:$0xff]
        %v439 = vld [vmem:[%s401 + $0x28] sm:$0xff]
        %v440 = vld [vmem:[%s401 + $0x30] sm:$0xff]
        %v441 = vld [vmem:[%s401 + $0x38] sm:$0xff]
        %v442 = vld [vmem:[%s401 + $0x40] sm:$0xff]
        %v443 = vld [vmem:[%s401 + $0x48] sm:$0xff]
        %v444 = vld [vmem:[%s401 + $0x50] sm:$0xff]
        %v445 = vld [vmem:[%s401 + $0x58] sm:$0xff]
        %v446 = vld [vmem:[%s401 + $0x60] sm:$0xff]
        %v447 = vld [vmem:[%s401 + $0x68] sm:$0xff]
        %v448 = vld [vmem:[%s401 + $0x70] sm:$0xff]
        %v449 = vld [vmem:[%s401 + $0x78] sm:$0xff]
        %v450 = vld [vmem:[%s405] sm:$0x7]
        %v451 = vld [vmem:[%s410] sm:$0xff]
        %v452 = vld [vmem:[%s410 + $0x8] sm:$0xff]
        %v453 = vld [vmem:[%s410 + $0x10] sm:$0xff]
        %v454 = vld [vmem:[%s410 + $0x18] sm:$0xff]
        %v455 = vld [vmem:[%s410 + $0x20] sm:$0xff]
        %v456 = vld [vmem:[%s410 + $0x28] sm:$0xff]
        %v457 = vld [vmem:[%s410 + $0x30] sm:$0xff]
        %v458 = vld [vmem:[%s410 + $0x38] sm:$0xff]
        %v459 = vld [vmem:[%s410 + $0x40] sm:$0xff]
        %v460 = vld [vmem:[%s410 + $0x48] sm:$0xff]
        %v461 = vld [vmem:[%s410 + $0x50] sm:$0xff]
        %v462 = vld [vmem:[%s410 + $0x58] sm:$0xff]
        %v463 = vld [vmem:[%s410 + $0x60] sm:$0xff]
        %v464 = vld [vmem:[%s410 + $0x68] sm:$0xff]
        %v465 = vld [vmem:[%s410 + $0x70] sm:$0xff]
        %v466 = vld [vmem:[%s410 + $0x78] sm:$0xff]
        %v467 = vld [vmem:[%s413] sm:$0x1]
        %v468 = vlaneseq
        %v469 = vand.u32 %v468, 127
        %v470 = vlaneseq
        %v471 = vshrl.u32 %v470, 7
        %v472 = vadd.s32 %v471, 8
        %v473 = vadd.s32 %v471, 16
        %v474 = vadd.s32 %v471, 24
        %v475 = vadd.s32 %v471, 32
        %v476 = vadd.s32 %v471, 40
        %v477 = vadd.s32 %v471, 48
        %v478 = vadd.s32 %v471, 56
        %v479 = vadd.s32 %v471, 64
        %v480 = vadd.s32 %v471, 72
        %v481 = vadd.s32 %v471, 80
        %v482 = vadd.s32 %v471, 88
        %v483 = vadd.s32 %v471, 96
        %v484 = vadd.s32 %v471, 104
        %v485 = vadd.s32 %v471, 112
        %v486 = vadd.s32 %v471, 120
        %vm487 = vcmask 23552
        %v489 = vsel %vm487, %v434, 0
        %v492 = vsel %vm487, %v435, 0
        %v495 = vsel %vm487, %v436, 0
        %v498 = vsel %vm487, %v437, 0
        %v501 = vsel %vm487, %v438, 0
        %v504 = vsel %vm487, %v439, 0
        %v507 = vsel %vm487, %v440, 0
        %v510 = vsel %vm487, %v441, 0
        %v513 = vsel %vm487, %v442, 0
        %v516 = vsel %vm487, %v443, 0
        %v519 = vsel %vm487, %v444, 0
        %v522 = vsel %vm487, %v445, 0
        %v525 = vsel %vm487, %v446, 0
        %v528 = vsel %vm487, %v447, 0
        %v531 = vsel %vm487, %v448, 0
        %v534 = vsel %vm487, %v449, 0
        %vm536 = vcmask 1042432
        %v538 = vsel %vm536, %v450, 0
        %540 = vmatprep.subr.mxu0 0.0
        %541 = vmatpush1.msra.mxu0 0.0
        %542 = vmatprep.subr.mxu0 0.0
        %543 = vmatpush1.msra.mxu0 0.0
        %544 = vmatprep.subr.mxu0 0.0
        %545 = vmatpush1.msra.mxu0 0.0
        %546 = vmatprep.subr.mxu0 0.0
        %547 = vmatpush1.msra.mxu0 0.0
        %548 = vmatprep.subr.mxu0 0.0
        %549 = vmatpush1.msra.mxu0 0.0
        %550 = vmatprep.subr.mxu0 0.0
        %551 = vmatpush1.msra.mxu0 0.0
        %552 = vmatprep.subr.mxu0 0.0
        %553 = vmatpush1.msra.mxu0 0.0
        %554 = vmatprep.subr.mxu0 0.0
        %555 = vmatpush1.msra.mxu0 0.0
        %556 = vmatprep.subr.mxu0 0.0
        %557 = vmatpush1.msra.mxu0 0.0
        %558 = vmatprep.subr.mxu0 0.0
        %559 = vmatpush1.msra.mxu0 0.0
        %560 = vmatprep.subr.mxu0 0.0
        %561 = vmatpush1.msra.mxu0 0.0
        %562 = vmatprep.subr.mxu0 0.0
        %563 = vmatpush1.msra.mxu0 0.0
        %564 = vmatprep.subr.mxu0 0.0
        %565 = vmatpush1.msra.mxu0 0.0
        %566 = vmatprep.subr.mxu0 0.0
        %567 = vmatpush1.msra.mxu0 0.0
        %568 = vmatprep.subr.mxu0 0.0
        %569 = vmatpush1.msra.mxu0 0.0
        %570 = vmatprep.subr.mxu0 0.0
        %571 = vmatpush1.msra.mxu0 %v538
        %572 = vmatprep.subr.mxu0 0.0
        %573 = vmatpush2.msra.mxu0 0.0
        %574 = vmatprep.subr.mxu0 0.0
        %575 = vmatpush2.msra.mxu0 0.0
        %576 = vmatprep.subr.mxu0 0.0
        %577 = vmatpush2.msra.mxu0 0.0
        %578 = vmatprep.subr.mxu0 0.0
        %579 = vmatpush2.msra.mxu0 0.0
        %580 = vmatprep.subr.mxu0 0.0
        %581 = vmatpush2.msra.mxu0 0.0
        %582 = vmatprep.subr.mxu0 0.0
        %583 = vmatpush2.msra.mxu0 0.0
        %584 = vmatprep.subr.mxu0 0.0
        %585 = vmatpush2.msra.mxu0 0.0
        %586 = vmatprep.subr.mxu0 0.0
        %587 = vmatpush2.msra.mxu0 0.0
        %588 = vmatprep.subr.mxu0 0.0
        %589 = vmatpush2.msra.mxu0 0.0
        %590 = vmatprep.subr.mxu0 0.0
        %591 = vmatpush2.msra.mxu0 0.0
        %592 = vmatprep.subr.mxu0 0.0
        %593 = vmatpush2.msra.mxu0 0.0
        %594 = vmatprep.subr.mxu0 0.0
        %595 = vmatpush2.msra.mxu0 0.0
        %596 = vmatprep.subr.mxu0 0.0
        %597 = vmatpush2.msra.mxu0 0.0
        %598 = vmatprep.subr.mxu0 0.0
        %599 = vmatpush2.msra.mxu0 0.0
        %600 = vmatprep.subr.mxu0 0.0
        %601 = vmatpush2.msra.mxu0 0.0
        %602 = vmatprep.subr.mxu0 0.0
        %603 = vmatpush2.msra.mxu0 0.0
        %604 = vmatprep.mubr.f32.mxu0 0.0
        %605 = vmatmul.mubr.f32.gmra.mxu0 %v489
        %v606 = vpop.f32.mrf.mxu0
        %v607 = vadd.f32 0.0, %v606
        %v608 = vpop.f32.mrf.mxu0
        %609 = vmatprep.mubr.f32.mxu0 0.0
        %610 = vmatmul.mubr.f32.gmra.mxu0 %v492
        %v611 = vpop.f32.mrf.mxu0
        %v612 = vadd.f32 0.0, %v611
        %v613 = vpop.f32.mrf.mxu0
        %614 = vmatprep.mubr.f32.mxu0 0.0
        %615 = vmatmul.mubr.f32.gmra.mxu0 %v495
        %v616 = vpop.f32.mrf.mxu0
        %v617 = vadd.f32 0.0, %v616
        %v618 = vpop.f32.mrf.mxu0
        %619 = vmatprep.mubr.f32.mxu0 0.0
        %620 = vmatmul.mubr.f32.gmra.mxu0 %v498
        %v621 = vpop.f32.mrf.mxu0
        %v622 = vadd.f32 0.0, %v621
        %v623 = vpop.f32.mrf.mxu0
        %624 = vmatprep.mubr.f32.mxu0 0.0
        %625 = vmatmul.mubr.f32.gmra.mxu0 %v501
        %v626 = vpop.f32.mrf.mxu0
        %v627 = vadd.f32 0.0, %v626
        %v628 = vpop.f32.mrf.mxu0
        %629 = vmatprep.mubr.f32.mxu0 0.0
        %630 = vmatmul.mubr.f32.gmra.mxu0 %v504
        %v631 = vpop.f32.mrf.mxu0
        %v632 = vadd.f32 0.0, %v631
        %v633 = vpop.f32.mrf.mxu0
        %634 = vmatprep.mubr.f32.mxu0 0.0
        %635 = vmatmul.mubr.f32.gmra.mxu0 %v507
        %v636 = vpop.f32.mrf.mxu0
        %v637 = vadd.f32 0.0, %v636
        %v638 = vpop.f32.mrf.mxu0
        %639 = vmatprep.mubr.f32.mxu0 0.0
        %640 = vmatmul.mubr.f32.gmra.mxu0 %v510
        %v641 = vpop.f32.mrf.mxu0
        %v642 = vadd.f32 0.0, %v641
        %v643 = vpop.f32.mrf.mxu0
        %644 = vmatprep.mubr.f32.mxu0 0.0
        %645 = vmatmul.mubr.f32.gmra.mxu0 %v513
        %v646 = vpop.f32.mrf.mxu0
        %v647 = vadd.f32 0.0, %v646
        %v648 = vpop.f32.mrf.mxu0
        %649 = vmatprep.mubr.f32.mxu0 0.0
        %650 = vmatmul.mubr.f32.gmra.mxu0 %v516
        %v651 = vpop.f32.mrf.mxu0
        %v652 = vadd.f32 0.0, %v651
        %v653 = vpop.f32.mrf.mxu0
        %654 = vmatprep.mubr.f32.mxu0 0.0
        %655 = vmatmul.mubr.f32.gmra.mxu0 %v519
        %v656 = vpop.f32.mrf.mxu0
        %v657 = vadd.f32 0.0, %v656
        %v658 = vpop.f32.mrf.mxu0
        %659 = vmatprep.mubr.f32.mxu0 0.0
        %660 = vmatmul.mubr.f32.gmra.mxu0 %v522
        %v661 = vpop.f32.mrf.mxu0
        %v662 = vadd.f32 0.0, %v661
        %v663 = vpop.f32.mrf.mxu0
        %664 = vmatprep.mubr.f32.mxu0 0.0
        %665 = vmatmul.mubr.f32.gmra.mxu0 %v525
        %v666 = vpop.f32.mrf.mxu0
        %v667 = vadd.f32 0.0, %v666
        %v668 = vpop.f32.mrf.mxu0
        %669 = vmatprep.mubr.f32.mxu0 0.0
        %670 = vmatmul.mubr.f32.gmra.mxu0 %v528
        %v671 = vpop.f32.mrf.mxu0
        %v672 = vadd.f32 0.0, %v671
        %v673 = vpop.f32.mrf.mxu0
        %674 = vmatprep.mubr.f32.mxu0 0.0
        %675 = vmatmul.mubr.f32.gmra.mxu0 %v531
        %v676 = vpop.f32.mrf.mxu0
        %v677 = vadd.f32 0.0, %v676
        %v678 = vpop.f32.mrf.mxu0
        %679 = vmatprep.mubr.f32.mxu0 0.0
        %680 = vmatmul.mubr.f32.gmra.mxu0 %v534
        %v681 = vpop.f32.mrf.mxu0
        %v682 = vadd.f32 0.0, %v681
        %v683 = vpop.f32.mrf.mxu0
        %684 = vdwg.mxu0
        %v685 = vmul.f32 %v434, %v434
        %v686 = vmul.f32 %v435, %v435
        %v687 = vmul.f32 %v436, %v436
        %v688 = vmul.f32 %v437, %v437
        %v689 = vmul.f32 %v438, %v438
        %v690 = vmul.f32 %v439, %v439
        %v691 = vmul.f32 %v440, %v440
        %v692 = vmul.f32 %v441, %v441
        %v693 = vmul.f32 %v442, %v442
        %v694 = vmul.f32 %v443, %v443
        %v695 = vmul.f32 %v444, %v444
        %v696 = vmul.f32 %v445, %v445
        %v697 = vmul.f32 %v446, %v446
        %v698 = vmul.f32 %v447, %v447
        %v699 = vmul.f32 %v448, %v448
        %v700 = vmul.f32 %v449, %v449
        %v701 = vsel %vm487, %v685, 0.0
        %702 = vadd.xlane.f32.xlu0 %v701
        %v703 = vpop.xlane.xlu0 %702
        %v704 = vsel %vm487, %v686, 0.0
        %705 = vadd.xlane.f32.xlu0 %v704
        %v706 = vpop.xlane.xlu0 %705
        %v707 = vsel %vm487, %v687, 0.0
        %708 = vadd.xlane.f32.xlu0 %v707
        %v709 = vpop.xlane.xlu0 %708
        %v710 = vsel %vm487, %v688, 0.0
        %711 = vadd.xlane.f32.xlu0 %v710
        %v712 = vpop.xlane.xlu0 %711
        %v713 = vsel %vm487, %v689, 0.0
        %714 = vadd.xlane.f32.xlu0 %v713
        %v715 = vpop.xlane.xlu0 %714
        %v716 = vsel %vm487, %v690, 0.0
        %717 = vadd.xlane.f32.xlu0 %v716
        %v718 = vpop.xlane.xlu0 %717
        %v719 = vsel %vm487, %v691, 0.0
        %720 = vadd.xlane.f32.xlu0 %v719
        %v721 = vpop.xlane.xlu0 %720
        %v722 = vsel %vm487, %v692, 0.0
        %723 = vadd.xlane.f32.xlu0 %v722
        %v724 = vpop.xlane.xlu0 %723
        %v725 = vsel %vm487, %v693, 0.0
        %726 = vadd.xlane.f32.xlu0 %v725
        %v727 = vpop.xlane.xlu0 %726
        %v728 = vsel %vm487, %v694, 0.0
        %729 = vadd.xlane.f32.xlu0 %v728
        %v730 = vpop.xlane.xlu0 %729
        %v731 = vsel %vm487, %v695, 0.0
        %732 = vadd.xlane.f32.xlu0 %v731
        %v733 = vpop.xlane.xlu0 %732
        %v734 = vsel %vm487, %v696, 0.0
        %735 = vadd.xlane.f32.xlu0 %v734
        %v736 = vpop.xlane.xlu0 %735
        %v737 = vsel %vm487, %v697, 0.0
        %738 = vadd.xlane.f32.xlu0 %v737
        %v739 = vpop.xlane.xlu0 %738
        %v740 = vsel %vm487, %v698, 0.0
        %741 = vadd.xlane.f32.xlu0 %v740
        %v742 = vpop.xlane.xlu0 %741
        %v743 = vsel %vm487, %v699, 0.0
        %744 = vadd.xlane.f32.xlu0 %v743
        %v745 = vpop.xlane.xlu0 %744
        %v746 = vsel %vm487, %v700, 0.0
        %747 = vadd.xlane.f32.xlu0 %v746
        %v748 = vpop.xlane.xlu0 %747
        %v749 = vmul.f32 %v450, %v450
        %v750 = vsel %vm536, %v749, 0.0
        %v751 = vrot.slane %v750, 4
        %v752 = vadd.f32 %v750, %v751
        %v753 = vrot.slane %v752, 2
        %v754 = vadd.f32 %v752, %v753
        %v755 = vrot.slane %v754, 1
        %v756 = vadd.f32 %v754, %v755
        %v757 = vadd.f32 %v703, %v756
        %v758 = vadd.f32 %v706, %v756
        %v759 = vadd.f32 %v709, %v756
        %v760 = vadd.f32 %v712, %v756
        %v761 = vadd.f32 %v715, %v756
        %v762 = vadd.f32 %v718, %v756
        %v763 = vadd.f32 %v721, %v756
        %v764 = vadd.f32 %v724, %v756
        %v765 = vadd.f32 %v727, %v756
        %v766 = vadd.f32 %v730, %v756
        %v767 = vadd.f32 %v733, %v756
        %v768 = vadd.f32 %v736, %v756
        %v769 = vadd.f32 %v739, %v756
        %v770 = vadd.f32 %v742, %v756
        %v771 = vadd.f32 %v745, %v756
        %v772 = vadd.f32 %v748, %v756
        %v773 = vmul.f32 %v607, 2.0
        %v774 = vmul.f32 %v612, 2.0
        %v775 = vmul.f32 %v617, 2.0
        %v776 = vmul.f32 %v622, 2.0
        %v777 = vmul.f32 %v627, 2.0
        %v778 = vmul.f32 %v632, 2.0
        %v779 = vmul.f32 %v637, 2.0
        %v780 = vmul.f32 %v642, 2.0
        %v781 = vmul.f32 %v647, 2.0
        %v782 = vmul.f32 %v652, 2.0
        %v783 = vmul.f32 %v657, 2.0
        %v784 = vmul.f32 %v662, 2.0
        %v785 = vmul.f32 %v667, 2.0
        %v786 = vmul.f32 %v672, 2.0
        %v787 = vmul.f32 %v677, 2.0
        %v788 = vmul.f32 %v682, 2.0
        %v789 = vsub.f32 %v757, %v773
        %v790 = vsub.f32 %v758, %v774
        %v791 = vsub.f32 %v759, %v775
        %v792 = vsub.f32 %v760, %v776
        %v793 = vsub.f32 %v761, %v777
        %v794 = vsub.f32 %v762, %v778
        %v795 = vsub.f32 %v763, %v779
        %v796 = vsub.f32 %v764, %v780
        %v797 = vsub.f32 %v765, %v781
        %v798 = vsub.f32 %v766, %v782
        %v799 = vsub.f32 %v767, %v783
        %v800 = vsub.f32 %v768, %v784
        %v801 = vsub.f32 %v769, %v785
        %v802 = vsub.f32 %v770, %v786
        %v803 = vsub.f32 %v771, %v787
        %v804 = vsub.f32 %v772, %v788
        %vm805 = vcmp.le.f32.partialorder %v789, 1.0
        %vm806 = vcmp.le.f32.partialorder %v790, 1.0
        %vm807 = vcmp.le.f32.partialorder %v791, 1.0
        %vm808 = vcmp.le.f32.partialorder %v792, 1.0
        %vm809 = vcmp.le.f32.partialorder %v793, 1.0
        %vm810 = vcmp.le.f32.partialorder %v794, 1.0
        %vm811 = vcmp.le.f32.partialorder %v795, 1.0
        %vm812 = vcmp.le.f32.partialorder %v796, 1.0
        %vm813 = vcmp.le.f32.partialorder %v797, 1.0
        %vm814 = vcmp.le.f32.partialorder %v798, 1.0
        %vm815 = vcmp.le.f32.partialorder %v799, 1.0
        %vm816 = vcmp.le.f32.partialorder %v800, 1.0
        %vm817 = vcmp.le.f32.partialorder %v801, 1.0
        %vm818 = vcmp.le.f32.partialorder %v802, 1.0
        %vm819 = vcmp.le.f32.partialorder %v803, 1.0
        %vm820 = vcmp.le.f32.partialorder %v804, 1.0
        %v821 = vld [vmem:[%s418] sm:$0xff]
        %v822 = vld [vmem:[%s418 + $0x8] sm:$0xff]
        %v823 = vld [vmem:[%s418 + $0x10] sm:$0xff]
        %v824 = vld [vmem:[%s418 + $0x18] sm:$0xff]
        %v825 = vld [vmem:[%s418 + $0x20] sm:$0xff]
        %v826 = vld [vmem:[%s418 + $0x28] sm:$0xff]
        %v827 = vld [vmem:[%s418 + $0x30] sm:$0xff]
        %v828 = vld [vmem:[%s418 + $0x38] sm:$0xff]
        %v829 = vld [vmem:[%s418 + $0x40] sm:$0xff]
        %v830 = vld [vmem:[%s418 + $0x48] sm:$0xff]
        %v831 = vld [vmem:[%s418 + $0x50] sm:$0xff]
        %v832 = vld [vmem:[%s418 + $0x58] sm:$0xff]
        %v833 = vld [vmem:[%s418 + $0x60] sm:$0xff]
        %v834 = vld [vmem:[%s418 + $0x68] sm:$0xff]
        %v835 = vld [vmem:[%s418 + $0x70] sm:$0xff]
        %v836 = vld [vmem:[%s418 + $0x78] sm:$0xff]
        %v837 = vmul.f32 %v821, %v821
        %v838 = vmul.f32 %v822, %v822
        %v839 = vmul.f32 %v823, %v823
        %v840 = vmul.f32 %v824, %v824
        %v841 = vmul.f32 %v825, %v825
        %v842 = vmul.f32 %v826, %v826
        %v843 = vmul.f32 %v827, %v827
        %v844 = vmul.f32 %v828, %v828
        %v845 = vmul.f32 %v829, %v829
        %v846 = vmul.f32 %v830, %v830
        %v847 = vmul.f32 %v831, %v831
        %v848 = vmul.f32 %v832, %v832
        %v849 = vmul.f32 %v833, %v833
        %v850 = vmul.f32 %v834, %v834
        %v851 = vmul.f32 %v835, %v835
        %v852 = vmul.f32 %v836, %v836
        %vm853 = vcmask 523264
        %v854 = vsel %vm853, %v837, 0.0
        %855 = vadd.xlane.f32.xlu0 %v854
        %v856 = vpop.xlane.xlu0 %855
        %v857 = vsel %vm853, %v838, 0.0
        %858 = vadd.xlane.f32.xlu0 %v857
        %v859 = vpop.xlane.xlu0 %858
        %v860 = vsel %vm853, %v839, 0.0
        %861 = vadd.xlane.f32.xlu0 %v860
        %v862 = vpop.xlane.xlu0 %861
        %v863 = vsel %vm853, %v840, 0.0
        %864 = vadd.xlane.f32.xlu0 %v863
        %v865 = vpop.xlane.xlu0 %864
        %v866 = vsel %vm853, %v841, 0.0
        %867 = vadd.xlane.f32.xlu0 %v866
        %v868 = vpop.xlane.xlu0 %867
        %v869 = vsel %vm853, %v842, 0.0
        %870 = vadd.xlane.f32.xlu0 %v869
        %v871 = vpop.xlane.xlu0 %870
        %v872 = vsel %vm853, %v843, 0.0
        %873 = vadd.xlane.f32.xlu0 %v872
        %v874 = vpop.xlane.xlu0 %873
        %v875 = vsel %vm853, %v844, 0.0
        %876 = vadd.xlane.f32.xlu0 %v875
        %v877 = vpop.xlane.xlu0 %876
        %v878 = vsel %vm853, %v845, 0.0
        %879 = vadd.xlane.f32.xlu0 %v878
        %v880 = vpop.xlane.xlu0 %879
        %v881 = vsel %vm853, %v846, 0.0
        %882 = vadd.xlane.f32.xlu0 %v881
        %v883 = vpop.xlane.xlu0 %882
        %v884 = vsel %vm853, %v847, 0.0
        %885 = vadd.xlane.f32.xlu0 %v884
        %v886 = vpop.xlane.xlu0 %885
        %v887 = vsel %vm853, %v848, 0.0
        %888 = vadd.xlane.f32.xlu0 %v887
        %v889 = vpop.xlane.xlu0 %888
        %v890 = vsel %vm853, %v849, 0.0
        %891 = vadd.xlane.f32.xlu0 %v890
        %v892 = vpop.xlane.xlu0 %891
        %v893 = vsel %vm853, %v850, 0.0
        %894 = vadd.xlane.f32.xlu0 %v893
        %v895 = vpop.xlane.xlu0 %894
        %v896 = vsel %vm853, %v851, 0.0
        %897 = vadd.xlane.f32.xlu0 %v896
        %v898 = vpop.xlane.xlu0 %897
        %v899 = vsel %vm853, %v852, 0.0
        %900 = vadd.xlane.f32.xlu0 %v899
        %v901 = vpop.xlane.xlu0 %900
        %v902 = vmax.f32 %v856, 1e-24
        %v903 = vmax.f32 %v859, 1e-24
        %v904 = vmax.f32 %v862, 1e-24
        %v905 = vmax.f32 %v865, 1e-24
        %v906 = vmax.f32 %v868, 1e-24
        %v907 = vmax.f32 %v871, 1e-24
        %v908 = vmax.f32 %v874, 1e-24
        %v909 = vmax.f32 %v877, 1e-24
        %v910 = vmax.f32 %v880, 1e-24
        %v911 = vmax.f32 %v883, 1e-24
        %v912 = vmax.f32 %v886, 1e-24
        %v913 = vmax.f32 %v889, 1e-24
        %v914 = vmax.f32 %v892, 1e-24
        %v915 = vmax.f32 %v895, 1e-24
        %v916 = vmax.f32 %v898, 1e-24
        %v917 = vmax.f32 %v901, 1e-24
        %v918 = vrsqrt.pop %v902
        %v919 = vrsqrt.pop %v903
        %v920 = vrsqrt.pop %v904
        %v921 = vrsqrt.pop %v905
        %v922 = vrsqrt.pop %v906
        %v923 = vrsqrt.pop %v907
        %v924 = vrsqrt.pop %v908
        %v925 = vrsqrt.pop %v909
        %v926 = vrsqrt.pop %v910
        %v927 = vrsqrt.pop %v911
        %v928 = vrsqrt.pop %v912
        %v929 = vrsqrt.pop %v913
        %v930 = vrsqrt.pop %v914
        %v931 = vrsqrt.pop %v915
        %v932 = vrsqrt.pop %v916
        %v933 = vrsqrt.pop %v917
        %v934 = vmul.f32 %v821, %v918
        %v935 = vmul.f32 %v822, %v919
        %v936 = vmul.f32 %v823, %v920
        %v937 = vmul.f32 %v824, %v921
        %v938 = vmul.f32 %v825, %v922
        %v939 = vmul.f32 %v826, %v923
        %v940 = vmul.f32 %v827, %v924
        %v941 = vmul.f32 %v828, %v925
        %v942 = vmul.f32 %v829, %v926
        %v943 = vmul.f32 %v830, %v927
        %v944 = vmul.f32 %v831, %v928
        %v945 = vmul.f32 %v832, %v929
        %v946 = vmul.f32 %v833, %v930
        %v947 = vmul.f32 %v834, %v931
        %v948 = vmul.f32 %v835, %v932
        %v949 = vmul.f32 %v836, %v933
        %v950 = vld [vmem:[%s423] sm:$0xff]
        %v951 = vld [vmem:[%s423 + $0x8] sm:$0xff]
        %v952 = vld [vmem:[%s423 + $0x10] sm:$0xff]
        %v953 = vld [vmem:[%s423 + $0x18] sm:$0xff]
        %v954 = vld [vmem:[%s423 + $0x20] sm:$0xff]
        %v955 = vld [vmem:[%s423 + $0x28] sm:$0xff]
        %v956 = vld [vmem:[%s423 + $0x30] sm:$0xff]
        %v957 = vld [vmem:[%s423 + $0x38] sm:$0xff]
        %v958 = vmul.f32 %v950, %v950
        %v959 = vmul.f32 %v951, %v951
        %v960 = vmul.f32 %v952, %v952
        %v961 = vmul.f32 %v953, %v953
        %v962 = vmul.f32 %v954, %v954
        %v963 = vmul.f32 %v955, %v955
        %v964 = vmul.f32 %v956, %v956
        %v965 = vmul.f32 %v957, %v957
        %v966 = vadd.f32 %v958, %v959
        %v967 = vadd.f32 %v966, %v960
        %v968 = vadd.f32 %v967, %v961
        %v969 = vadd.f32 %v968, %v962
        %v970 = vadd.f32 %v969, %v963
        %v971 = vadd.f32 %v970, %v964
        %v972 = vadd.f32 %v971, %v965
        %v973 = vrot.slane %v972, 4
        %v974 = vadd.f32 %v972, %v973
        %v975 = vrot.slane %v974, 2
        %v976 = vadd.f32 %v974, %v975
        %v977 = vrot.slane %v976, 1
        %v978 = vadd.f32 %v976, %v977
        %v979 = vmax.f32 %v978, 1e-24
        %v980 = vrsqrt.pop %v979
        %v981 = vmul.f32 %v950, %v980
        %v982 = vmul.f32 %v951, %v980
        %v983 = vmul.f32 %v952, %v980
        %v984 = vmul.f32 %v953, %v980
        %v985 = vmul.f32 %v954, %v980
        %v986 = vmul.f32 %v955, %v980
        %v987 = vmul.f32 %v956, %v980
        %v988 = vmul.f32 %v957, %v980
        %v990 = vsel %vm853, %v934, 0
        %v993 = vsel %vm853, %v935, 0
        %v996 = vsel %vm853, %v936, 0
        %v999 = vsel %vm853, %v937, 0
        %v1002 = vsel %vm853, %v938, 0
        %v1005 = vsel %vm853, %v939, 0
        %v1008 = vsel %vm853, %v940, 0
        %v1011 = vsel %vm853, %v941, 0
        %v1014 = vsel %vm853, %v942, 0
        %v1017 = vsel %vm853, %v943, 0
        %v1020 = vsel %vm853, %v944, 0
        %v1023 = vsel %vm853, %v945, 0
        %v1026 = vsel %vm853, %v946, 0
        %v1029 = vsel %vm853, %v947, 0
        %v1032 = vsel %vm853, %v948, 0
        %v1035 = vsel %vm853, %v949, 0
        %1037 = vmatprep.subr.mxu0 0.0
        %1038 = vmatpush1.msra.mxu0 0.0
        %1039 = vmatprep.subr.mxu0 0.0
        %1040 = vmatpush1.msra.mxu0 0.0
        %1041 = vmatprep.subr.mxu0 0.0
        %1042 = vmatpush1.msra.mxu0 0.0
        %1043 = vmatprep.subr.mxu0 0.0
        %1044 = vmatpush1.msra.mxu0 0.0
        %1045 = vmatprep.subr.mxu0 0.0
        %1046 = vmatpush1.msra.mxu0 0.0
        %1047 = vmatprep.subr.mxu0 0.0
        %1048 = vmatpush1.msra.mxu0 0.0
        %1049 = vmatprep.subr.mxu0 0.0
        %1050 = vmatpush1.msra.mxu0 0.0
        %1051 = vmatprep.subr.mxu0 0.0
        %1052 = vmatpush1.msra.mxu0 0.0
        %1053 = vmatprep.subr.mxu0 0.0
        %1054 = vmatpush1.msra.mxu0 %v988
        %1055 = vmatprep.subr.mxu0 0.0
        %1056 = vmatpush1.msra.mxu0 %v987
        %1057 = vmatprep.subr.mxu0 0.0
        %1058 = vmatpush1.msra.mxu0 %v986
        %1059 = vmatprep.subr.mxu0 0.0
        %1060 = vmatpush1.msra.mxu0 %v985
        %1061 = vmatprep.subr.mxu0 0.0
        %1062 = vmatpush1.msra.mxu0 %v984
        %1063 = vmatprep.subr.mxu0 0.0
        %1064 = vmatpush1.msra.mxu0 %v983
        %1065 = vmatprep.subr.mxu0 0.0
        %1066 = vmatpush1.msra.mxu0 %v982
        %1067 = vmatprep.subr.mxu0 0.0
        %1068 = vmatpush1.msra.mxu0 %v981
        %1069 = vmatprep.subr.mxu0 0.0
        %1070 = vmatpush2.msra.mxu0 0.0
        %1071 = vmatprep.subr.mxu0 0.0
        %1072 = vmatpush2.msra.mxu0 0.0
        %1073 = vmatprep.subr.mxu0 0.0
        %1074 = vmatpush2.msra.mxu0 0.0
        %1075 = vmatprep.subr.mxu0 0.0
        %1076 = vmatpush2.msra.mxu0 0.0
        %1077 = vmatprep.subr.mxu0 0.0
        %1078 = vmatpush2.msra.mxu0 0.0
        %1079 = vmatprep.subr.mxu0 0.0
        %1080 = vmatpush2.msra.mxu0 0.0
        %1081 = vmatprep.subr.mxu0 0.0
        %1082 = vmatpush2.msra.mxu0 0.0
        %1083 = vmatprep.subr.mxu0 0.0
        %1084 = vmatpush2.msra.mxu0 0.0
        %1085 = vmatprep.subr.mxu0 0.0
        %1086 = vmatpush2.msra.mxu0 0.0
        %1087 = vmatprep.subr.mxu0 0.0
        %1088 = vmatpush2.msra.mxu0 0.0
        %1089 = vmatprep.subr.mxu0 0.0
        %1090 = vmatpush2.msra.mxu0 0.0
        %1091 = vmatprep.subr.mxu0 0.0
        %1092 = vmatpush2.msra.mxu0 0.0
        %1093 = vmatprep.subr.mxu0 0.0
        %1094 = vmatpush2.msra.mxu0 0.0
        %1095 = vmatprep.subr.mxu0 0.0
        %1096 = vmatpush2.msra.mxu0 0.0
        %1097 = vmatprep.subr.mxu0 0.0
        %1098 = vmatpush2.msra.mxu0 0.0
        %1099 = vmatprep.subr.mxu0 0.0
        %1100 = vmatpush2.msra.mxu0 0.0
        %1101 = vmatprep.mubr.f32.mxu0 0.0
        %1102 = vmatmul.mubr.f32.gmra.mxu0 %v990
        %v1103 = vpop.f32.mrf.mxu0
        %v1104 = vadd.f32 0.0, %v1103
        %v1105 = vpop.f32.mrf.mxu0
        %1106 = vmatprep.mubr.f32.mxu0 0.0
        %1107 = vmatmul.mubr.f32.gmra.mxu0 %v993
        %v1108 = vpop.f32.mrf.mxu0
        %v1109 = vadd.f32 0.0, %v1108
        %v1110 = vpop.f32.mrf.mxu0
        %1111 = vmatprep.mubr.f32.mxu0 0.0
        %1112 = vmatmul.mubr.f32.gmra.mxu0 %v996
        %v1113 = vpop.f32.mrf.mxu0
        %v1114 = vadd.f32 0.0, %v1113
        %v1115 = vpop.f32.mrf.mxu0
        %1116 = vmatprep.mubr.f32.mxu0 0.0
        %1117 = vmatmul.mubr.f32.gmra.mxu0 %v999
        %v1118 = vpop.f32.mrf.mxu0
        %v1119 = vadd.f32 0.0, %v1118
        %v1120 = vpop.f32.mrf.mxu0
        %1121 = vmatprep.mubr.f32.mxu0 0.0
        %1122 = vmatmul.mubr.f32.gmra.mxu0 %v1002
        %v1123 = vpop.f32.mrf.mxu0
        %v1124 = vadd.f32 0.0, %v1123
        %v1125 = vpop.f32.mrf.mxu0
        %1126 = vmatprep.mubr.f32.mxu0 0.0
        %1127 = vmatmul.mubr.f32.gmra.mxu0 %v1005
        %v1128 = vpop.f32.mrf.mxu0
        %v1129 = vadd.f32 0.0, %v1128
        %v1130 = vpop.f32.mrf.mxu0
        %1131 = vmatprep.mubr.f32.mxu0 0.0
        %1132 = vmatmul.mubr.f32.gmra.mxu0 %v1008
        %v1133 = vpop.f32.mrf.mxu0
        %v1134 = vadd.f32 0.0, %v1133
        %v1135 = vpop.f32.mrf.mxu0
        %1136 = vmatprep.mubr.f32.mxu0 0.0
        %1137 = vmatmul.mubr.f32.gmra.mxu0 %v1011
        %v1138 = vpop.f32.mrf.mxu0
        %v1139 = vadd.f32 0.0, %v1138
        %v1140 = vpop.f32.mrf.mxu0
        %1141 = vmatprep.mubr.f32.mxu0 0.0
        %1142 = vmatmul.mubr.f32.gmra.mxu0 %v1014
        %v1143 = vpop.f32.mrf.mxu0
        %v1144 = vadd.f32 0.0, %v1143
        %v1145 = vpop.f32.mrf.mxu0
        %1146 = vmatprep.mubr.f32.mxu0 0.0
        %1147 = vmatmul.mubr.f32.gmra.mxu0 %v1017
        %v1148 = vpop.f32.mrf.mxu0
        %v1149 = vadd.f32 0.0, %v1148
        %v1150 = vpop.f32.mrf.mxu0
        %1151 = vmatprep.mubr.f32.mxu0 0.0
        %1152 = vmatmul.mubr.f32.gmra.mxu0 %v1020
        %v1153 = vpop.f32.mrf.mxu0
        %v1154 = vadd.f32 0.0, %v1153
        %v1155 = vpop.f32.mrf.mxu0
        %1156 = vmatprep.mubr.f32.mxu0 0.0
        %1157 = vmatmul.mubr.f32.gmra.mxu0 %v1023
        %v1158 = vpop.f32.mrf.mxu0
        %v1159 = vadd.f32 0.0, %v1158
        %v1160 = vpop.f32.mrf.mxu0
        %1161 = vmatprep.mubr.f32.mxu0 0.0
        %1162 = vmatmul.mubr.f32.gmra.mxu0 %v1026
        %v1163 = vpop.f32.mrf.mxu0
        %v1164 = vadd.f32 0.0, %v1163
        %v1165 = vpop.f32.mrf.mxu0
        %1166 = vmatprep.mubr.f32.mxu0 0.0
        %1167 = vmatmul.mubr.f32.gmra.mxu0 %v1029
        %v1168 = vpop.f32.mrf.mxu0
        %v1169 = vadd.f32 0.0, %v1168
        %v1170 = vpop.f32.mrf.mxu0
        %1171 = vmatprep.mubr.f32.mxu0 0.0
        %1172 = vmatmul.mubr.f32.gmra.mxu0 %v1032
        %v1173 = vpop.f32.mrf.mxu0
        %v1174 = vadd.f32 0.0, %v1173
        %v1175 = vpop.f32.mrf.mxu0
        %1176 = vmatprep.mubr.f32.mxu0 0.0
        %1177 = vmatmul.mubr.f32.gmra.mxu0 %v1035
        %v1178 = vpop.f32.mrf.mxu0
        %v1179 = vadd.f32 0.0, %v1178
        %v1180 = vpop.f32.mrf.mxu0
        %1181 = vdwg.mxu0
        %v1182 = vld [vmem:[%s428] sm:$0xff]
        %v1183 = vld [vmem:[%s428 + $0x8] sm:$0xff]
        %v1184 = vld [vmem:[%s428 + $0x10] sm:$0xff]
        %v1185 = vld [vmem:[%s428 + $0x18] sm:$0xff]
        %v1186 = vld [vmem:[%s428 + $0x20] sm:$0xff]
        %v1187 = vld [vmem:[%s428 + $0x28] sm:$0xff]
        %v1188 = vld [vmem:[%s428 + $0x30] sm:$0xff]
        %v1189 = vld [vmem:[%s428 + $0x38] sm:$0xff]
        %v1190 = vld [vmem:[%s428 + $0x40] sm:$0xff]
        %v1191 = vld [vmem:[%s428 + $0x48] sm:$0xff]
        %v1192 = vld [vmem:[%s428 + $0x50] sm:$0xff]
        %v1193 = vld [vmem:[%s428 + $0x58] sm:$0xff]
        %v1194 = vld [vmem:[%s428 + $0x60] sm:$0xff]
        %v1195 = vld [vmem:[%s428 + $0x68] sm:$0xff]
        %v1196 = vld [vmem:[%s428 + $0x70] sm:$0xff]
        %v1197 = vld [vmem:[%s428 + $0x78] sm:$0xff]
        %v1198 = vmul.f32 %v1182, %v1182
        %v1199 = vmul.f32 %v1183, %v1183
        %v1200 = vmul.f32 %v1184, %v1184
        %v1201 = vmul.f32 %v1185, %v1185
        %v1202 = vmul.f32 %v1186, %v1186
        %v1203 = vmul.f32 %v1187, %v1187
        %v1204 = vmul.f32 %v1188, %v1188
        %v1205 = vmul.f32 %v1189, %v1189
        %v1206 = vmul.f32 %v1190, %v1190
        %v1207 = vmul.f32 %v1191, %v1191
        %v1208 = vmul.f32 %v1192, %v1192
        %v1209 = vmul.f32 %v1193, %v1193
        %v1210 = vmul.f32 %v1194, %v1194
        %v1211 = vmul.f32 %v1195, %v1195
        %v1212 = vmul.f32 %v1196, %v1196
        %v1213 = vmul.f32 %v1197, %v1197
        %vm1214 = vcmask 261120
        %v1215 = vsel %vm1214, %v1198, 0.0
        %1216 = vadd.xlane.f32.xlu0 %v1215
        %v1217 = vpop.xlane.xlu0 %1216
        %v1218 = vsel %vm1214, %v1199, 0.0
        %1219 = vadd.xlane.f32.xlu0 %v1218
        %v1220 = vpop.xlane.xlu0 %1219
        %v1221 = vsel %vm1214, %v1200, 0.0
        %1222 = vadd.xlane.f32.xlu0 %v1221
        %v1223 = vpop.xlane.xlu0 %1222
        %v1224 = vsel %vm1214, %v1201, 0.0
        %1225 = vadd.xlane.f32.xlu0 %v1224
        %v1226 = vpop.xlane.xlu0 %1225
        %v1227 = vsel %vm1214, %v1202, 0.0
        %1228 = vadd.xlane.f32.xlu0 %v1227
        %v1229 = vpop.xlane.xlu0 %1228
        %v1230 = vsel %vm1214, %v1203, 0.0
        %1231 = vadd.xlane.f32.xlu0 %v1230
        %v1232 = vpop.xlane.xlu0 %1231
        %v1233 = vsel %vm1214, %v1204, 0.0
        %1234 = vadd.xlane.f32.xlu0 %v1233
        %v1235 = vpop.xlane.xlu0 %1234
        %v1236 = vsel %vm1214, %v1205, 0.0
        %1237 = vadd.xlane.f32.xlu0 %v1236
        %v1238 = vpop.xlane.xlu0 %1237
        %v1239 = vsel %vm1214, %v1206, 0.0
        %1240 = vadd.xlane.f32.xlu0 %v1239
        %v1241 = vpop.xlane.xlu0 %1240
        %v1242 = vsel %vm1214, %v1207, 0.0
        %1243 = vadd.xlane.f32.xlu0 %v1242
        %v1244 = vpop.xlane.xlu0 %1243
        %v1245 = vsel %vm1214, %v1208, 0.0
        %1246 = vadd.xlane.f32.xlu0 %v1245
        %v1247 = vpop.xlane.xlu0 %1246
        %v1248 = vsel %vm1214, %v1209, 0.0
        %1249 = vadd.xlane.f32.xlu0 %v1248
        %v1250 = vpop.xlane.xlu0 %1249
        %v1251 = vsel %vm1214, %v1210, 0.0
        %1252 = vadd.xlane.f32.xlu0 %v1251
        %v1253 = vpop.xlane.xlu0 %1252
        %v1254 = vsel %vm1214, %v1211, 0.0
        %1255 = vadd.xlane.f32.xlu0 %v1254
        %v1256 = vpop.xlane.xlu0 %1255
        %v1257 = vsel %vm1214, %v1212, 0.0
        %1258 = vadd.xlane.f32.xlu0 %v1257
        %v1259 = vpop.xlane.xlu0 %1258
        %v1260 = vsel %vm1214, %v1213, 0.0
        %1261 = vadd.xlane.f32.xlu0 %v1260
        %v1262 = vpop.xlane.xlu0 %1261
        %v1263 = vmax.f32 %v1217, 1e-24
        %v1264 = vmax.f32 %v1220, 1e-24
        %v1265 = vmax.f32 %v1223, 1e-24
        %v1266 = vmax.f32 %v1226, 1e-24
        %v1267 = vmax.f32 %v1229, 1e-24
        %v1268 = vmax.f32 %v1232, 1e-24
        %v1269 = vmax.f32 %v1235, 1e-24
        %v1270 = vmax.f32 %v1238, 1e-24
        %v1271 = vmax.f32 %v1241, 1e-24
        %v1272 = vmax.f32 %v1244, 1e-24
        %v1273 = vmax.f32 %v1247, 1e-24
        %v1274 = vmax.f32 %v1250, 1e-24
        %v1275 = vmax.f32 %v1253, 1e-24
        %v1276 = vmax.f32 %v1256, 1e-24
        %v1277 = vmax.f32 %v1259, 1e-24
        %v1278 = vmax.f32 %v1262, 1e-24
        %v1279 = vrsqrt.pop %v1263
        %v1280 = vrsqrt.pop %v1264
        %v1281 = vrsqrt.pop %v1265
        %v1282 = vrsqrt.pop %v1266
        %v1283 = vrsqrt.pop %v1267
        %v1284 = vrsqrt.pop %v1268
        %v1285 = vrsqrt.pop %v1269
        %v1286 = vrsqrt.pop %v1270
        %v1287 = vrsqrt.pop %v1271
        %v1288 = vrsqrt.pop %v1272
        %v1289 = vrsqrt.pop %v1273
        %v1290 = vrsqrt.pop %v1274
        %v1291 = vrsqrt.pop %v1275
        %v1292 = vrsqrt.pop %v1276
        %v1293 = vrsqrt.pop %v1277
        %v1294 = vrsqrt.pop %v1278
        %v1295 = vmul.f32 %v1182, %v1279
        %v1296 = vmul.f32 %v1183, %v1280
        %v1297 = vmul.f32 %v1184, %v1281
        %v1298 = vmul.f32 %v1185, %v1282
        %v1299 = vmul.f32 %v1186, %v1283
        %v1300 = vmul.f32 %v1187, %v1284
        %v1301 = vmul.f32 %v1188, %v1285
        %v1302 = vmul.f32 %v1189, %v1286
        %v1303 = vmul.f32 %v1190, %v1287
        %v1304 = vmul.f32 %v1191, %v1288
        %v1305 = vmul.f32 %v1192, %v1289
        %v1306 = vmul.f32 %v1193, %v1290
        %v1307 = vmul.f32 %v1194, %v1291
        %v1308 = vmul.f32 %v1195, %v1292
        %v1309 = vmul.f32 %v1196, %v1293
        %v1310 = vmul.f32 %v1197, %v1294
        %v1311 = vld [vmem:[%s433] sm:$0xff]
        %v1312 = vld [vmem:[%s433 + $0x8] sm:$0xff]
        %v1313 = vld [vmem:[%s433 + $0x10] sm:$0xff]
        %v1314 = vld [vmem:[%s433 + $0x18] sm:$0xff]
        %v1315 = vmul.f32 %v1311, %v1311
        %v1316 = vmul.f32 %v1312, %v1312
        %v1317 = vmul.f32 %v1313, %v1313
        %v1318 = vmul.f32 %v1314, %v1314
        %v1319 = vadd.f32 %v1315, %v1316
        %v1320 = vadd.f32 %v1319, %v1317
        %v1321 = vadd.f32 %v1320, %v1318
        %v1322 = vrot.slane %v1321, 4
        %v1323 = vadd.f32 %v1321, %v1322
        %v1324 = vrot.slane %v1323, 2
        %v1325 = vadd.f32 %v1323, %v1324
        %v1326 = vrot.slane %v1325, 1
        %v1327 = vadd.f32 %v1325, %v1326
        %v1328 = vmax.f32 %v1327, 1e-24
        %v1329 = vrsqrt.pop %v1328
        %v1330 = vmul.f32 %v1311, %v1329
        %v1331 = vmul.f32 %v1312, %v1329
        %v1332 = vmul.f32 %v1313, %v1329
        %v1333 = vmul.f32 %v1314, %v1329
        %v1335 = vsel %vm1214, %v1295, 0
        %v1338 = vsel %vm1214, %v1296, 0
        %v1341 = vsel %vm1214, %v1297, 0
        %v1344 = vsel %vm1214, %v1298, 0
        %v1347 = vsel %vm1214, %v1299, 0
        %v1350 = vsel %vm1214, %v1300, 0
        %v1353 = vsel %vm1214, %v1301, 0
        %v1356 = vsel %vm1214, %v1302, 0
        %v1359 = vsel %vm1214, %v1303, 0
        %v1362 = vsel %vm1214, %v1304, 0
        %v1365 = vsel %vm1214, %v1305, 0
        %v1368 = vsel %vm1214, %v1306, 0
        %v1371 = vsel %vm1214, %v1307, 0
        %v1374 = vsel %vm1214, %v1308, 0
        %v1377 = vsel %vm1214, %v1309, 0
        %v1380 = vsel %vm1214, %v1310, 0
        %1382 = vmatprep.subr.mxu0 0.0
        %1383 = vmatpush1.msra.mxu0 0.0
        %1384 = vmatprep.subr.mxu0 0.0
        %1385 = vmatpush1.msra.mxu0 0.0
        %1386 = vmatprep.subr.mxu0 0.0
        %1387 = vmatpush1.msra.mxu0 0.0
        %1388 = vmatprep.subr.mxu0 0.0
        %1389 = vmatpush1.msra.mxu0 0.0
        %1390 = vmatprep.subr.mxu0 0.0
        %1391 = vmatpush1.msra.mxu0 0.0
        %1392 = vmatprep.subr.mxu0 0.0
        %1393 = vmatpush1.msra.mxu0 0.0
        %1394 = vmatprep.subr.mxu0 0.0
        %1395 = vmatpush1.msra.mxu0 0.0
        %1396 = vmatprep.subr.mxu0 0.0
        %1397 = vmatpush1.msra.mxu0 0.0
        %1398 = vmatprep.subr.mxu0 0.0
        %1399 = vmatpush1.msra.mxu0 0.0
        %1400 = vmatprep.subr.mxu0 0.0
        %1401 = vmatpush1.msra.mxu0 0.0
        %1402 = vmatprep.subr.mxu0 0.0
        %1403 = vmatpush1.msra.mxu0 0.0
        %1404 = vmatprep.subr.mxu0 0.0
        %1405 = vmatpush1.msra.mxu0 0.0
        %1406 = vmatprep.subr.mxu0 0.0
        %1407 = vmatpush1.msra.mxu0 %v1333
        %1408 = vmatprep.subr.mxu0 0.0
        %1409 = vmatpush1.msra.mxu0 %v1332
        %1410 = vmatprep.subr.mxu0 0.0
        %1411 = vmatpush1.msra.mxu0 %v1331
        %1412 = vmatprep.subr.mxu0 0.0
        %1413 = vmatpush1.msra.mxu0 %v1330
        %1414 = vmatprep.subr.mxu0 0.0
        %1415 = vmatpush2.msra.mxu0 0.0
        %1416 = vmatprep.subr.mxu0 0.0
        %1417 = vmatpush2.msra.mxu0 0.0
        %1418 = vmatprep.subr.mxu0 0.0
        %1419 = vmatpush2.msra.mxu0 0.0
        %1420 = vmatprep.subr.mxu0 0.0
        %1421 = vmatpush2.msra.mxu0 0.0
        %1422 = vmatprep.subr.mxu0 0.0
        %1423 = vmatpush2.msra.mxu0 0.0
        %1424 = vmatprep.subr.mxu0 0.0
        %1425 = vmatpush2.msra.mxu0 0.0
        %1426 = vmatprep.subr.mxu0 0.0
        %1427 = vmatpush2.msra.mxu0 0.0
        %1428 = vmatprep.subr.mxu0 0.0
        %1429 = vmatpush2.msra.mxu0 0.0
        %1430 = vmatprep.subr.mxu0 0.0
        %1431 = vmatpush2.msra.mxu0 0.0
        %1432 = vmatprep.subr.mxu0 0.0
        %1433 = vmatpush2.msra.mxu0 0.0
        %1434 = vmatprep.subr.mxu0 0.0
        %1435 = vmatpush2.msra.mxu0 0.0
        %1436 = vmatprep.subr.mxu0 0.0
        %1437 = vmatpush2.msra.mxu0 0.0
        %1438 = vmatprep.subr.mxu0 0.0
        %1439 = vmatpush2.msra.mxu0 0.0
        %1440 = vmatprep.subr.mxu0 0.0
        %1441 = vmatpush2.msra.mxu0 0.0
        %1442 = vmatprep.subr.mxu0 0.0
        %1443 = vmatpush2.msra.mxu0 0.0
        %1444 = vmatprep.subr.mxu0 0.0
        %1445 = vmatpush2.msra.mxu0 0.0
        %1446 = vmatprep.mubr.f32.mxu0 0.0
        %1447 = vmatmul.mubr.f32.gmra.mxu0 %v1335
        %v1448 = vpop.f32.mrf.mxu0
        %v1449 = vadd.f32 0.0, %v1448
        %v1450 = vpop.f32.mrf.mxu0
        %1451 = vmatprep.mubr.f32.mxu0 0.0
        %1452 = vmatmul.mubr.f32.gmra.mxu0 %v1338
        %v1453 = vpop.f32.mrf.mxu0
        %v1454 = vadd.f32 0.0, %v1453
        %v1455 = vpop.f32.mrf.mxu0
        %1456 = vmatprep.mubr.f32.mxu0 0.0
        %1457 = vmatmul.mubr.f32.gmra.mxu0 %v1341
        %v1458 = vpop.f32.mrf.mxu0
        %v1459 = vadd.f32 0.0, %v1458
        %v1460 = vpop.f32.mrf.mxu0
        %1461 = vmatprep.mubr.f32.mxu0 0.0
        %1462 = vmatmul.mubr.f32.gmra.mxu0 %v1344
        %v1463 = vpop.f32.mrf.mxu0
        %v1464 = vadd.f32 0.0, %v1463
        %v1465 = vpop.f32.mrf.mxu0
        %1466 = vmatprep.mubr.f32.mxu0 0.0
        %1467 = vmatmul.mubr.f32.gmra.mxu0 %v1347
        %v1468 = vpop.f32.mrf.mxu0
        %v1469 = vadd.f32 0.0, %v1468
        %v1470 = vpop.f32.mrf.mxu0
        %1471 = vmatprep.mubr.f32.mxu0 0.0
        %1472 = vmatmul.mubr.f32.gmra.mxu0 %v1350
        %v1473 = vpop.f32.mrf.mxu0
        %v1474 = vadd.f32 0.0, %v1473
        %v1475 = vpop.f32.mrf.mxu0
        %1476 = vmatprep.mubr.f32.mxu0 0.0
        %1477 = vmatmul.mubr.f32.gmra.mxu0 %v1353
        %v1478 = vpop.f32.mrf.mxu0
        %v1479 = vadd.f32 0.0, %v1478
        %v1480 = vpop.f32.mrf.mxu0
        %1481 = vmatprep.mubr.f32.mxu0 0.0
        %1482 = vmatmul.mubr.f32.gmra.mxu0 %v1356
        %v1483 = vpop.f32.mrf.mxu0
        %v1484 = vadd.f32 0.0, %v1483
        %v1485 = vpop.f32.mrf.mxu0
        %1486 = vmatprep.mubr.f32.mxu0 0.0
        %1487 = vmatmul.mubr.f32.gmra.mxu0 %v1359
        %v1488 = vpop.f32.mrf.mxu0
        %v1489 = vadd.f32 0.0, %v1488
        %v1490 = vpop.f32.mrf.mxu0
        %1491 = vmatprep.mubr.f32.mxu0 0.0
        %1492 = vmatmul.mubr.f32.gmra.mxu0 %v1362
        %v1493 = vpop.f32.mrf.mxu0
        %v1494 = vadd.f32 0.0, %v1493
        %v1495 = vpop.f32.mrf.mxu0
        %1496 = vmatprep.mubr.f32.mxu0 0.0
        %1497 = vmatmul.mubr.f32.gmra.mxu0 %v1365
        %v1498 = vpop.f32.mrf.mxu0
        %v1499 = vadd.f32 0.0, %v1498
        %v1500 = vpop.f32.mrf.mxu0
        %1501 = vmatprep.mubr.f32.mxu0 0.0
        %1502 = vmatmul.mubr.f32.gmra.mxu0 %v1368
        %v1503 = vpop.f32.mrf.mxu0
        %v1504 = vadd.f32 0.0, %v1503
        %v1505 = vpop.f32.mrf.mxu0
        %1506 = vmatprep.mubr.f32.mxu0 0.0
        %1507 = vmatmul.mubr.f32.gmra.mxu0 %v1371
        %v1508 = vpop.f32.mrf.mxu0
        %v1509 = vadd.f32 0.0, %v1508
        %v1510 = vpop.f32.mrf.mxu0
        %1511 = vmatprep.mubr.f32.mxu0 0.0
        %1512 = vmatmul.mubr.f32.gmra.mxu0 %v1374
        %v1513 = vpop.f32.mrf.mxu0
        %v1514 = vadd.f32 0.0, %v1513
        %v1515 = vpop.f32.mrf.mxu0
        %1516 = vmatprep.mubr.f32.mxu0 0.0
        %1517 = vmatmul.mubr.f32.gmra.mxu0 %v1377
        %v1518 = vpop.f32.mrf.mxu0
        %v1519 = vadd.f32 0.0, %v1518
        %v1520 = vpop.f32.mrf.mxu0
        %1521 = vmatprep.mubr.f32.mxu0 0.0
        %1522 = vmatmul.mubr.f32.gmra.mxu0 %v1380
        %v1523 = vpop.f32.mrf.mxu0
        %v1524 = vadd.f32 0.0, %v1523
        %v1525 = vpop.f32.mrf.mxu0
        %1526 = vdwg.mxu0
        %v1527 = vmul.f32 %v1104, 10.0
        %v1528 = vmul.f32 %v1109, 10.0
        %v1529 = vmul.f32 %v1114, 10.0
        %v1530 = vmul.f32 %v1119, 10.0
        %v1531 = vmul.f32 %v1124, 10.0
        %v1532 = vmul.f32 %v1129, 10.0
        %v1533 = vmul.f32 %v1134, 10.0
        %v1534 = vmul.f32 %v1139, 10.0
        %v1535 = vmul.f32 %v1144, 10.0
        %v1536 = vmul.f32 %v1149, 10.0
        %v1537 = vmul.f32 %v1154, 10.0
        %v1538 = vmul.f32 %v1159, 10.0
        %v1539 = vmul.f32 %v1164, 10.0
        %v1540 = vmul.f32 %v1169, 10.0
        %v1541 = vmul.f32 %v1174, 10.0
        %v1542 = vmul.f32 %v1179, 10.0
        %1543 = vmin.xlane.f32.xlu0 %v789
        %v1544 = vpop.xlane.xlu0 %1543
        %1545 = vmin.xlane.f32.xlu0 %v790
        %v1546 = vpop.xlane.xlu0 %1545
        %1547 = vmin.xlane.f32.xlu0 %v791
        %v1548 = vpop.xlane.xlu0 %1547
        %1549 = vmin.xlane.f32.xlu0 %v792
        %v1550 = vpop.xlane.xlu0 %1549
        %1551 = vmin.xlane.f32.xlu0 %v793
        %v1552 = vpop.xlane.xlu0 %1551
        %1553 = vmin.xlane.f32.xlu0 %v794
        %v1554 = vpop.xlane.xlu0 %1553
        %1555 = vmin.xlane.f32.xlu0 %v795
        %v1556 = vpop.xlane.xlu0 %1555
        %1557 = vmin.xlane.f32.xlu0 %v796
        %v1558 = vpop.xlane.xlu0 %1557
        %1559 = vmin.xlane.f32.xlu0 %v797
        %v1560 = vpop.xlane.xlu0 %1559
        %1561 = vmin.xlane.f32.xlu0 %v798
        %v1562 = vpop.xlane.xlu0 %1561
        %1563 = vmin.xlane.f32.xlu0 %v799
        %v1564 = vpop.xlane.xlu0 %1563
        %1565 = vmin.xlane.f32.xlu0 %v800
        %v1566 = vpop.xlane.xlu0 %1565
        %1567 = vmin.xlane.f32.xlu0 %v801
        %v1568 = vpop.xlane.xlu0 %1567
        %1569 = vmin.xlane.f32.xlu0 %v802
        %v1570 = vpop.xlane.xlu0 %1569
        %1571 = vmin.xlane.f32.xlu0 %v803
        %v1572 = vpop.xlane.xlu0 %1571
        %1573 = vmin.xlane.f32.xlu0 %v804
        %v1574 = vpop.xlane.xlu0 %1573
        %vm1575 = vcmp.eq.f32.partialorder %v789, %v1544
        %vm1576 = vcmp.eq.f32.partialorder %v790, %v1546
        %vm1577 = vcmp.eq.f32.partialorder %v791, %v1548
        %vm1578 = vcmp.eq.f32.partialorder %v792, %v1550
        %vm1579 = vcmp.eq.f32.partialorder %v793, %v1552
        %vm1580 = vcmp.eq.f32.partialorder %v794, %v1554
        %vm1581 = vcmp.eq.f32.partialorder %v795, %v1556
        %vm1582 = vcmp.eq.f32.partialorder %v796, %v1558
        %vm1583 = vcmp.eq.f32.partialorder %v797, %v1560
        %vm1584 = vcmp.eq.f32.partialorder %v798, %v1562
        %vm1585 = vcmp.eq.f32.partialorder %v799, %v1564
        %vm1586 = vcmp.eq.f32.partialorder %v800, %v1566
        %vm1587 = vcmp.eq.f32.partialorder %v801, %v1568
        %vm1588 = vcmp.eq.f32.partialorder %v802, %v1570
        %vm1589 = vcmp.eq.f32.partialorder %v803, %v1572
        %vm1590 = vcmp.eq.f32.partialorder %v804, %v1574
        %v1591 = vsel %vm1575, %v469, 128
        %v1592 = vsel %vm1576, %v469, 128
        %v1593 = vsel %vm1577, %v469, 128
        %v1594 = vsel %vm1578, %v469, 128
        %v1595 = vsel %vm1579, %v469, 128
        %v1596 = vsel %vm1580, %v469, 128
        %v1597 = vsel %vm1581, %v469, 128
        %v1598 = vsel %vm1582, %v469, 128
        %v1599 = vsel %vm1583, %v469, 128
        %v1600 = vsel %vm1584, %v469, 128
        %v1601 = vsel %vm1585, %v469, 128
        %v1602 = vsel %vm1586, %v469, 128
        %v1603 = vsel %vm1587, %v469, 128
        %v1604 = vsel %vm1588, %v469, 128
        %v1605 = vsel %vm1589, %v469, 128
        %v1606 = vsel %vm1590, %v469, 128
        %v1607 = vand.u32 %v1591, 65535
        %v1608 = vshra.s32 %v1591, 16
        %v1609 = vcvt.s32.f32 %v1607
        %v1610 = vcvt.s32.f32 %v1608
        %1611 = vmin.xlane.f32.xlu0 %v1610
        %v1612 = vpop.xlane.xlu0 %1611
        %vm1613 = vcmp.eq.f32.partialorder %v1610, %v1612
        %v1614 = vsel %vm1613, %v1609, inf
        %1615 = vmin.xlane.f32.xlu0 %v1614
        %v1616 = vpop.xlane.xlu0 %1615
        %v1617 = vcvt.f32.s32 %v1616
        %v1618 = vcvt.f32.s32 %v1612
        %v1619 = vshll.u32 %v1618, 16
        %v1620 = vadd.s32 %v1619, %v1617
        %v1621 = vand.u32 %v1592, 65535
        %v1622 = vshra.s32 %v1592, 16
        %v1623 = vcvt.s32.f32 %v1621
        %v1624 = vcvt.s32.f32 %v1622
        %1625 = vmin.xlane.f32.xlu0 %v1624
        %v1626 = vpop.xlane.xlu0 %1625
        %vm1627 = vcmp.eq.f32.partialorder %v1624, %v1626
        %v1628 = vsel %vm1627, %v1623, inf
        %1629 = vmin.xlane.f32.xlu0 %v1628
        %v1630 = vpop.xlane.xlu0 %1629
        %v1631 = vcvt.f32.s32 %v1630
        %v1632 = vcvt.f32.s32 %v1626
        %v1633 = vshll.u32 %v1632, 16
        %v1634 = vadd.s32 %v1633, %v1631
        %v1635 = vand.u32 %v1593, 65535
        %v1636 = vshra.s32 %v1593, 16
        %v1637 = vcvt.s32.f32 %v1635
        %v1638 = vcvt.s32.f32 %v1636
        %1639 = vmin.xlane.f32.xlu0 %v1638
        %v1640 = vpop.xlane.xlu0 %1639
        %vm1641 = vcmp.eq.f32.partialorder %v1638, %v1640
        %v1642 = vsel %vm1641, %v1637, inf
        %1643 = vmin.xlane.f32.xlu0 %v1642
        %v1644 = vpop.xlane.xlu0 %1643
        %v1645 = vcvt.f32.s32 %v1644
        %v1646 = vcvt.f32.s32 %v1640
        %v1647 = vshll.u32 %v1646, 16
        %v1648 = vadd.s32 %v1647, %v1645
        %v1649 = vand.u32 %v1594, 65535
        %v1650 = vshra.s32 %v1594, 16
        %v1651 = vcvt.s32.f32 %v1649
        %v1652 = vcvt.s32.f32 %v1650
        %1653 = vmin.xlane.f32.xlu0 %v1652
        %v1654 = vpop.xlane.xlu0 %1653
        %vm1655 = vcmp.eq.f32.partialorder %v1652, %v1654
        %v1656 = vsel %vm1655, %v1651, inf
        %1657 = vmin.xlane.f32.xlu0 %v1656
        %v1658 = vpop.xlane.xlu0 %1657
        %v1659 = vcvt.f32.s32 %v1658
        %v1660 = vcvt.f32.s32 %v1654
        %v1661 = vshll.u32 %v1660, 16
        %v1662 = vadd.s32 %v1661, %v1659
        %v1663 = vand.u32 %v1595, 65535
        %v1664 = vshra.s32 %v1595, 16
        %v1665 = vcvt.s32.f32 %v1663
        %v1666 = vcvt.s32.f32 %v1664
        %1667 = vmin.xlane.f32.xlu0 %v1666
        %v1668 = vpop.xlane.xlu0 %1667
        %vm1669 = vcmp.eq.f32.partialorder %v1666, %v1668
        %v1670 = vsel %vm1669, %v1665, inf
        %1671 = vmin.xlane.f32.xlu0 %v1670
        %v1672 = vpop.xlane.xlu0 %1671
        %v1673 = vcvt.f32.s32 %v1672
        %v1674 = vcvt.f32.s32 %v1668
        %v1675 = vshll.u32 %v1674, 16
        %v1676 = vadd.s32 %v1675, %v1673
        %v1677 = vand.u32 %v1596, 65535
        %v1678 = vshra.s32 %v1596, 16
        %v1679 = vcvt.s32.f32 %v1677
        %v1680 = vcvt.s32.f32 %v1678
        %1681 = vmin.xlane.f32.xlu0 %v1680
        %v1682 = vpop.xlane.xlu0 %1681
        %vm1683 = vcmp.eq.f32.partialorder %v1680, %v1682
        %v1684 = vsel %vm1683, %v1679, inf
        %1685 = vmin.xlane.f32.xlu0 %v1684
        %v1686 = vpop.xlane.xlu0 %1685
        %v1687 = vcvt.f32.s32 %v1686
        %v1688 = vcvt.f32.s32 %v1682
        %v1689 = vshll.u32 %v1688, 16
        %v1690 = vadd.s32 %v1689, %v1687
        %v1691 = vand.u32 %v1597, 65535
        %v1692 = vshra.s32 %v1597, 16
        %v1693 = vcvt.s32.f32 %v1691
        %v1694 = vcvt.s32.f32 %v1692
        %1695 = vmin.xlane.f32.xlu0 %v1694
        %v1696 = vpop.xlane.xlu0 %1695
        %vm1697 = vcmp.eq.f32.partialorder %v1694, %v1696
        %v1698 = vsel %vm1697, %v1693, inf
        %1699 = vmin.xlane.f32.xlu0 %v1698
        %v1700 = vpop.xlane.xlu0 %1699
        %v1701 = vcvt.f32.s32 %v1700
        %v1702 = vcvt.f32.s32 %v1696
        %v1703 = vshll.u32 %v1702, 16
        %v1704 = vadd.s32 %v1703, %v1701
        %v1705 = vand.u32 %v1598, 65535
        %v1706 = vshra.s32 %v1598, 16
        %v1707 = vcvt.s32.f32 %v1705
        %v1708 = vcvt.s32.f32 %v1706
        %1709 = vmin.xlane.f32.xlu0 %v1708
        %v1710 = vpop.xlane.xlu0 %1709
        %vm1711 = vcmp.eq.f32.partialorder %v1708, %v1710
        %v1712 = vsel %vm1711, %v1707, inf
        %1713 = vmin.xlane.f32.xlu0 %v1712
        %v1714 = vpop.xlane.xlu0 %1713
        %v1715 = vcvt.f32.s32 %v1714
        %v1716 = vcvt.f32.s32 %v1710
        %v1717 = vshll.u32 %v1716, 16
        %v1718 = vadd.s32 %v1717, %v1715
        %v1719 = vand.u32 %v1599, 65535
        %v1720 = vshra.s32 %v1599, 16
        %v1721 = vcvt.s32.f32 %v1719
        %v1722 = vcvt.s32.f32 %v1720
        %1723 = vmin.xlane.f32.xlu0 %v1722
        %v1724 = vpop.xlane.xlu0 %1723
        %vm1725 = vcmp.eq.f32.partialorder %v1722, %v1724
        %v1726 = vsel %vm1725, %v1721, inf
        %1727 = vmin.xlane.f32.xlu0 %v1726
        %v1728 = vpop.xlane.xlu0 %1727
        %v1729 = vcvt.f32.s32 %v1728
        %v1730 = vcvt.f32.s32 %v1724
        %v1731 = vshll.u32 %v1730, 16
        %v1732 = vadd.s32 %v1731, %v1729
        %v1733 = vand.u32 %v1600, 65535
        %v1734 = vshra.s32 %v1600, 16
        %v1735 = vcvt.s32.f32 %v1733
        %v1736 = vcvt.s32.f32 %v1734
        %1737 = vmin.xlane.f32.xlu0 %v1736
        %v1738 = vpop.xlane.xlu0 %1737
        %vm1739 = vcmp.eq.f32.partialorder %v1736, %v1738
        %v1740 = vsel %vm1739, %v1735, inf
        %1741 = vmin.xlane.f32.xlu0 %v1740
        %v1742 = vpop.xlane.xlu0 %1741
        %v1743 = vcvt.f32.s32 %v1742
        %v1744 = vcvt.f32.s32 %v1738
        %v1745 = vshll.u32 %v1744, 16
        %v1746 = vadd.s32 %v1745, %v1743
        %v1747 = vand.u32 %v1601, 65535
        %v1748 = vshra.s32 %v1601, 16
        %v1749 = vcvt.s32.f32 %v1747
        %v1750 = vcvt.s32.f32 %v1748
        %1751 = vmin.xlane.f32.xlu0 %v1750
        %v1752 = vpop.xlane.xlu0 %1751
        %vm1753 = vcmp.eq.f32.partialorder %v1750, %v1752
        %v1754 = vsel %vm1753, %v1749, inf
        %1755 = vmin.xlane.f32.xlu0 %v1754
        %v1756 = vpop.xlane.xlu0 %1755
        %v1757 = vcvt.f32.s32 %v1756
        %v1758 = vcvt.f32.s32 %v1752
        %v1759 = vshll.u32 %v1758, 16
        %v1760 = vadd.s32 %v1759, %v1757
        %v1761 = vand.u32 %v1602, 65535
        %v1762 = vshra.s32 %v1602, 16
        %v1763 = vcvt.s32.f32 %v1761
        %v1764 = vcvt.s32.f32 %v1762
        %1765 = vmin.xlane.f32.xlu0 %v1764
        %v1766 = vpop.xlane.xlu0 %1765
        %vm1767 = vcmp.eq.f32.partialorder %v1764, %v1766
        %v1768 = vsel %vm1767, %v1763, inf
        %1769 = vmin.xlane.f32.xlu0 %v1768
        %v1770 = vpop.xlane.xlu0 %1769
        %v1771 = vcvt.f32.s32 %v1770
        %v1772 = vcvt.f32.s32 %v1766
        %v1773 = vshll.u32 %v1772, 16
        %v1774 = vadd.s32 %v1773, %v1771
        %v1775 = vand.u32 %v1603, 65535
        %v1776 = vshra.s32 %v1603, 16
        %v1777 = vcvt.s32.f32 %v1775
        %v1778 = vcvt.s32.f32 %v1776
        %1779 = vmin.xlane.f32.xlu0 %v1778
        %v1780 = vpop.xlane.xlu0 %1779
        %vm1781 = vcmp.eq.f32.partialorder %v1778, %v1780
        %v1782 = vsel %vm1781, %v1777, inf
        %1783 = vmin.xlane.f32.xlu0 %v1782
        %v1784 = vpop.xlane.xlu0 %1783
        %v1785 = vcvt.f32.s32 %v1784
        %v1786 = vcvt.f32.s32 %v1780
        %v1787 = vshll.u32 %v1786, 16
        %v1788 = vadd.s32 %v1787, %v1785
        %v1789 = vand.u32 %v1604, 65535
        %v1790 = vshra.s32 %v1604, 16
        %v1791 = vcvt.s32.f32 %v1789
        %v1792 = vcvt.s32.f32 %v1790
        %1793 = vmin.xlane.f32.xlu0 %v1792
        %v1794 = vpop.xlane.xlu0 %1793
        %vm1795 = vcmp.eq.f32.partialorder %v1792, %v1794
        %v1796 = vsel %vm1795, %v1791, inf
        %1797 = vmin.xlane.f32.xlu0 %v1796
        %v1798 = vpop.xlane.xlu0 %1797
        %v1799 = vcvt.f32.s32 %v1798
        %v1800 = vcvt.f32.s32 %v1794
        %v1801 = vshll.u32 %v1800, 16
        %v1802 = vadd.s32 %v1801, %v1799
        %v1803 = vand.u32 %v1605, 65535
        %v1804 = vshra.s32 %v1605, 16
        %v1805 = vcvt.s32.f32 %v1803
        %v1806 = vcvt.s32.f32 %v1804
        %1807 = vmin.xlane.f32.xlu0 %v1806
        %v1808 = vpop.xlane.xlu0 %1807
        %vm1809 = vcmp.eq.f32.partialorder %v1806, %v1808
        %v1810 = vsel %vm1809, %v1805, inf
        %1811 = vmin.xlane.f32.xlu0 %v1810
        %v1812 = vpop.xlane.xlu0 %1811
        %v1813 = vcvt.f32.s32 %v1812
        %v1814 = vcvt.f32.s32 %v1808
        %v1815 = vshll.u32 %v1814, 16
        %v1816 = vadd.s32 %v1815, %v1813
        %v1817 = vand.u32 %v1606, 65535
        %v1818 = vshra.s32 %v1606, 16
        %v1819 = vcvt.s32.f32 %v1817
        %v1820 = vcvt.s32.f32 %v1818
        %1821 = vmin.xlane.f32.xlu0 %v1820
        %v1822 = vpop.xlane.xlu0 %1821
        %vm1823 = vcmp.eq.f32.partialorder %v1820, %v1822
        %v1824 = vsel %vm1823, %v1819, inf
        %1825 = vmin.xlane.f32.xlu0 %v1824
        %v1826 = vpop.xlane.xlu0 %1825
        %v1827 = vcvt.f32.s32 %v1826
        %v1828 = vcvt.f32.s32 %v1822
        %v1829 = vshll.u32 %v1828, 16
        %v1830 = vadd.s32 %v1829, %v1827
        %vm1831 = vcmp.le.f32.partialorder %v1544, 1.0
        %vm1832 = vcmp.le.f32.partialorder %v1546, 1.0
        %vm1833 = vcmp.le.f32.partialorder %v1548, 1.0
        %vm1834 = vcmp.le.f32.partialorder %v1550, 1.0
        %vm1835 = vcmp.le.f32.partialorder %v1552, 1.0
        %vm1836 = vcmp.le.f32.partialorder %v1554, 1.0
        %vm1837 = vcmp.le.f32.partialorder %v1556, 1.0
        %vm1838 = vcmp.le.f32.partialorder %v1558, 1.0
        %vm1839 = vcmp.le.f32.partialorder %v1560, 1.0
        %vm1840 = vcmp.le.f32.partialorder %v1562, 1.0
        %vm1841 = vcmp.le.f32.partialorder %v1564, 1.0
        %vm1842 = vcmp.le.f32.partialorder %v1566, 1.0
        %vm1843 = vcmp.le.f32.partialorder %v1568, 1.0
        %vm1844 = vcmp.le.f32.partialorder %v1570, 1.0
        %vm1845 = vcmp.le.f32.partialorder %v1572, 1.0
        %vm1846 = vcmp.le.f32.partialorder %v1574, 1.0
        %v1847 = vsel %vm1831, 1, 0
        %v1848 = vsel %vm1832, 1, 0
        %v1849 = vsel %vm1833, 1, 0
        %v1850 = vsel %vm1834, 1, 0
        %v1851 = vsel %vm1835, 1, 0
        %v1852 = vsel %vm1836, 1, 0
        %v1853 = vsel %vm1837, 1, 0
        %v1854 = vsel %vm1838, 1, 0
        %v1855 = vsel %vm1839, 1, 0
        %v1856 = vsel %vm1840, 1, 0
        %v1857 = vsel %vm1841, 1, 0
        %v1858 = vsel %vm1842, 1, 0
        %v1859 = vsel %vm1843, 1, 0
        %v1860 = vsel %vm1844, 1, 0
        %v1861 = vsel %vm1845, 1, 0
        %v1862 = vsel %vm1846, 1, 0
        %v1863 = vcvt.s32.f32 %v1847
        %v1864 = vcvt.s32.f32 %v1848
        %v1865 = vcvt.s32.f32 %v1849
        %v1866 = vcvt.s32.f32 %v1850
        %v1867 = vcvt.s32.f32 %v1851
        %v1868 = vcvt.s32.f32 %v1852
        %v1869 = vcvt.s32.f32 %v1853
        %v1870 = vcvt.s32.f32 %v1854
        %v1871 = vcvt.s32.f32 %v1855
        %v1872 = vcvt.s32.f32 %v1856
        %v1873 = vcvt.s32.f32 %v1857
        %v1874 = vcvt.s32.f32 %v1858
        %v1875 = vcvt.s32.f32 %v1859
        %v1876 = vcvt.s32.f32 %v1860
        %v1877 = vcvt.s32.f32 %v1861
        %v1878 = vcvt.s32.f32 %v1862
        %v1879 = vmul.f32 %v451, %v1863
        %v1880 = vmul.f32 %v452, %v1864
        %v1881 = vmul.f32 %v453, %v1865
        %v1882 = vmul.f32 %v454, %v1866
        %v1883 = vmul.f32 %v455, %v1867
        %v1884 = vmul.f32 %v456, %v1868
        %v1885 = vmul.f32 %v457, %v1869
        %v1886 = vmul.f32 %v458, %v1870
        %v1887 = vmul.f32 %v459, %v1871
        %v1888 = vmul.f32 %v460, %v1872
        %v1889 = vmul.f32 %v461, %v1873
        %v1890 = vmul.f32 %v462, %v1874
        %v1891 = vmul.f32 %v463, %v1875
        %v1892 = vmul.f32 %v464, %v1876
        %v1893 = vmul.f32 %v465, %v1877
        %v1894 = vmul.f32 %v466, %v1878
        %vm1895 = vcmp.eq.s32.totalorder %v469, %v1620
        %vm1896 = vcmp.eq.s32.totalorder %v469, %v1634
        %vm1897 = vcmp.eq.s32.totalorder %v469, %v1648
        %vm1898 = vcmp.eq.s32.totalorder %v469, %v1662
        %vm1899 = vcmp.eq.s32.totalorder %v469, %v1676
        %vm1900 = vcmp.eq.s32.totalorder %v469, %v1690
        %vm1901 = vcmp.eq.s32.totalorder %v469, %v1704
        %vm1902 = vcmp.eq.s32.totalorder %v469, %v1718
        %vm1903 = vcmp.eq.s32.totalorder %v469, %v1732
        %vm1904 = vcmp.eq.s32.totalorder %v469, %v1746
        %vm1905 = vcmp.eq.s32.totalorder %v469, %v1760
        %vm1906 = vcmp.eq.s32.totalorder %v469, %v1774
        %vm1907 = vcmp.eq.s32.totalorder %v469, %v1788
        %vm1908 = vcmp.eq.s32.totalorder %v469, %v1802
        %vm1909 = vcmp.eq.s32.totalorder %v469, %v1816
        %vm1910 = vcmp.eq.s32.totalorder %v469, %v1830
        %vm1911 = vmxor %vm1895, 1
        %vm1912 = vmxor %vm1896, 1
        %vm1913 = vmxor %vm1897, 1
        %vm1914 = vmxor %vm1898, 1
        %vm1915 = vmxor %vm1899, 1
        %vm1916 = vmxor %vm1900, 1
        %vm1917 = vmxor %vm1901, 1
        %vm1918 = vmxor %vm1902, 1
        %vm1919 = vmxor %vm1903, 1
        %vm1920 = vmxor %vm1904, 1
        %vm1921 = vmxor %vm1905, 1
        %vm1922 = vmxor %vm1906, 1
        %vm1923 = vmxor %vm1907, 1
        %vm1924 = vmxor %vm1908, 1
        %vm1925 = vmxor %vm1909, 1
        %vm1926 = vmxor %vm1910, 1
        %vm1927 = vmand %vm805, %vm1911
        %vm1928 = vmand %vm806, %vm1912
        %vm1929 = vmand %vm807, %vm1913
        %vm1930 = vmand %vm808, %vm1914
        %vm1931 = vmand %vm809, %vm1915
        %vm1932 = vmand %vm810, %vm1916
        %vm1933 = vmand %vm811, %vm1917
        %vm1934 = vmand %vm812, %vm1918
        %vm1935 = vmand %vm813, %vm1919
        %vm1936 = vmand %vm814, %vm1920
        %vm1937 = vmand %vm815, %vm1921
        %vm1938 = vmand %vm816, %vm1922
        %vm1939 = vmand %vm817, %vm1923
        %vm1940 = vmand %vm818, %vm1924
        %vm1941 = vmand %vm819, %vm1925
        %vm1942 = vmand %vm820, %vm1926
        %1943 = vmax.xlane.f32.xlu0 %v1104
        %v1944 = vpop.xlane.xlu0 %1943
        %1945 = vmax.xlane.f32.xlu0 %v1109
        %v1946 = vpop.xlane.xlu0 %1945
        %1947 = vmax.xlane.f32.xlu0 %v1114
        %v1948 = vpop.xlane.xlu0 %1947
        %1949 = vmax.xlane.f32.xlu0 %v1119
        %v1950 = vpop.xlane.xlu0 %1949
        %1951 = vmax.xlane.f32.xlu0 %v1124
        %v1952 = vpop.xlane.xlu0 %1951
        %1953 = vmax.xlane.f32.xlu0 %v1129
        %v1954 = vpop.xlane.xlu0 %1953
        %1955 = vmax.xlane.f32.xlu0 %v1134
        %v1956 = vpop.xlane.xlu0 %1955
        %1957 = vmax.xlane.f32.xlu0 %v1139
        %v1958 = vpop.xlane.xlu0 %1957
        %1959 = vmax.xlane.f32.xlu0 %v1144
        %v1960 = vpop.xlane.xlu0 %1959
        %1961 = vmax.xlane.f32.xlu0 %v1149
        %v1962 = vpop.xlane.xlu0 %1961
        %1963 = vmax.xlane.f32.xlu0 %v1154
        %v1964 = vpop.xlane.xlu0 %1963
        %1965 = vmax.xlane.f32.xlu0 %v1159
        %v1966 = vpop.xlane.xlu0 %1965
        %1967 = vmax.xlane.f32.xlu0 %v1164
        %v1968 = vpop.xlane.xlu0 %1967
        %1969 = vmax.xlane.f32.xlu0 %v1169
        %v1970 = vpop.xlane.xlu0 %1969
        %1971 = vmax.xlane.f32.xlu0 %v1174
        %v1972 = vpop.xlane.xlu0 %1971
        %1973 = vmax.xlane.f32.xlu0 %v1179
        %v1974 = vpop.xlane.xlu0 %1973
        %vm1975 = vcmp.eq.f32.partialorder %v1104, %v1944
        %vm1976 = vcmp.eq.f32.partialorder %v1109, %v1946
        %vm1977 = vcmp.eq.f32.partialorder %v1114, %v1948
        %vm1978 = vcmp.eq.f32.partialorder %v1119, %v1950
        %vm1979 = vcmp.eq.f32.partialorder %v1124, %v1952
        %vm1980 = vcmp.eq.f32.partialorder %v1129, %v1954
        %vm1981 = vcmp.eq.f32.partialorder %v1134, %v1956
        %vm1982 = vcmp.eq.f32.partialorder %v1139, %v1958
        %vm1983 = vcmp.eq.f32.partialorder %v1144, %v1960
        %vm1984 = vcmp.eq.f32.partialorder %v1149, %v1962
        %vm1985 = vcmp.eq.f32.partialorder %v1154, %v1964
        %vm1986 = vcmp.eq.f32.partialorder %v1159, %v1966
        %vm1987 = vcmp.eq.f32.partialorder %v1164, %v1968
        %vm1988 = vcmp.eq.f32.partialorder %v1169, %v1970
        %vm1989 = vcmp.eq.f32.partialorder %v1174, %v1972
        %vm1990 = vcmp.eq.f32.partialorder %v1179, %v1974
        %v1991 = vsel %vm1975, %v469, 128
        %v1992 = vsel %vm1976, %v469, 128
        %v1993 = vsel %vm1977, %v469, 128
        %v1994 = vsel %vm1978, %v469, 128
        %v1995 = vsel %vm1979, %v469, 128
        %v1996 = vsel %vm1980, %v469, 128
        %v1997 = vsel %vm1981, %v469, 128
        %v1998 = vsel %vm1982, %v469, 128
        %v1999 = vsel %vm1983, %v469, 128
        %v2000 = vsel %vm1984, %v469, 128
        %v2001 = vsel %vm1985, %v469, 128
        %v2002 = vsel %vm1986, %v469, 128
        %v2003 = vsel %vm1987, %v469, 128
        %v2004 = vsel %vm1988, %v469, 128
        %v2005 = vsel %vm1989, %v469, 128
        %v2006 = vsel %vm1990, %v469, 128
        %v2007 = vand.u32 %v1991, 65535
        %v2008 = vshra.s32 %v1991, 16
        %v2009 = vcvt.s32.f32 %v2007
        %v2010 = vcvt.s32.f32 %v2008
        %2011 = vmin.xlane.f32.xlu0 %v2010
        %v2012 = vpop.xlane.xlu0 %2011
        %vm2013 = vcmp.eq.f32.partialorder %v2010, %v2012
        %v2014 = vsel %vm2013, %v2009, inf
        %2015 = vmin.xlane.f32.xlu0 %v2014
        %v2016 = vpop.xlane.xlu0 %2015
        %v2017 = vcvt.f32.s32 %v2016
        %v2018 = vcvt.f32.s32 %v2012
        %v2019 = vshll.u32 %v2018, 16
        %v2020 = vadd.s32 %v2019, %v2017
        %v2021 = vand.u32 %v1992, 65535
        %v2022 = vshra.s32 %v1992, 16
        %v2023 = vcvt.s32.f32 %v2021
        %v2024 = vcvt.s32.f32 %v2022
        %2025 = vmin.xlane.f32.xlu0 %v2024
        %v2026 = vpop.xlane.xlu0 %2025
        %vm2027 = vcmp.eq.f32.partialorder %v2024, %v2026
        %v2028 = vsel %vm2027, %v2023, inf
        %2029 = vmin.xlane.f32.xlu0 %v2028
        %v2030 = vpop.xlane.xlu0 %2029
        %v2031 = vcvt.f32.s32 %v2030
        %v2032 = vcvt.f32.s32 %v2026
        %v2033 = vshll.u32 %v2032, 16
        %v2034 = vadd.s32 %v2033, %v2031
        %v2035 = vand.u32 %v1993, 65535
        %v2036 = vshra.s32 %v1993, 16
        %v2037 = vcvt.s32.f32 %v2035
        %v2038 = vcvt.s32.f32 %v2036
        %2039 = vmin.xlane.f32.xlu0 %v2038
        %v2040 = vpop.xlane.xlu0 %2039
        %vm2041 = vcmp.eq.f32.partialorder %v2038, %v2040
        %v2042 = vsel %vm2041, %v2037, inf
        %2043 = vmin.xlane.f32.xlu0 %v2042
        %v2044 = vpop.xlane.xlu0 %2043
        %v2045 = vcvt.f32.s32 %v2044
        %v2046 = vcvt.f32.s32 %v2040
        %v2047 = vshll.u32 %v2046, 16
        %v2048 = vadd.s32 %v2047, %v2045
        %v2049 = vand.u32 %v1994, 65535
        %v2050 = vshra.s32 %v1994, 16
        %v2051 = vcvt.s32.f32 %v2049
        %v2052 = vcvt.s32.f32 %v2050
        %2053 = vmin.xlane.f32.xlu0 %v2052
        %v2054 = vpop.xlane.xlu0 %2053
        %vm2055 = vcmp.eq.f32.partialorder %v2052, %v2054
        %v2056 = vsel %vm2055, %v2051, inf
        %2057 = vmin.xlane.f32.xlu0 %v2056
        %v2058 = vpop.xlane.xlu0 %2057
        %v2059 = vcvt.f32.s32 %v2058
        %v2060 = vcvt.f32.s32 %v2054
        %v2061 = vshll.u32 %v2060, 16
        %v2062 = vadd.s32 %v2061, %v2059
        %v2063 = vand.u32 %v1995, 65535
        %v2064 = vshra.s32 %v1995, 16
        %v2065 = vcvt.s32.f32 %v2063
        %v2066 = vcvt.s32.f32 %v2064
        %2067 = vmin.xlane.f32.xlu0 %v2066
        %v2068 = vpop.xlane.xlu0 %2067
        %vm2069 = vcmp.eq.f32.partialorder %v2066, %v2068
        %v2070 = vsel %vm2069, %v2065, inf
        %2071 = vmin.xlane.f32.xlu0 %v2070
        %v2072 = vpop.xlane.xlu0 %2071
        %v2073 = vcvt.f32.s32 %v2072
        %v2074 = vcvt.f32.s32 %v2068
        %v2075 = vshll.u32 %v2074, 16
        %v2076 = vadd.s32 %v2075, %v2073
        %v2077 = vand.u32 %v1996, 65535
        %v2078 = vshra.s32 %v1996, 16
        %v2079 = vcvt.s32.f32 %v2077
        %v2080 = vcvt.s32.f32 %v2078
        %2081 = vmin.xlane.f32.xlu0 %v2080
        %v2082 = vpop.xlane.xlu0 %2081
        %vm2083 = vcmp.eq.f32.partialorder %v2080, %v2082
        %v2084 = vsel %vm2083, %v2079, inf
        %2085 = vmin.xlane.f32.xlu0 %v2084
        %v2086 = vpop.xlane.xlu0 %2085
        %v2087 = vcvt.f32.s32 %v2086
        %v2088 = vcvt.f32.s32 %v2082
        %v2089 = vshll.u32 %v2088, 16
        %v2090 = vadd.s32 %v2089, %v2087
        %v2091 = vand.u32 %v1997, 65535
        %v2092 = vshra.s32 %v1997, 16
        %v2093 = vcvt.s32.f32 %v2091
        %v2094 = vcvt.s32.f32 %v2092
        %2095 = vmin.xlane.f32.xlu0 %v2094
        %v2096 = vpop.xlane.xlu0 %2095
        %vm2097 = vcmp.eq.f32.partialorder %v2094, %v2096
        %v2098 = vsel %vm2097, %v2093, inf
        %2099 = vmin.xlane.f32.xlu0 %v2098
        %v2100 = vpop.xlane.xlu0 %2099
        %v2101 = vcvt.f32.s32 %v2100
        %v2102 = vcvt.f32.s32 %v2096
        %v2103 = vshll.u32 %v2102, 16
        %v2104 = vadd.s32 %v2103, %v2101
        %v2105 = vand.u32 %v1998, 65535
        %v2106 = vshra.s32 %v1998, 16
        %v2107 = vcvt.s32.f32 %v2105
        %v2108 = vcvt.s32.f32 %v2106
        %2109 = vmin.xlane.f32.xlu0 %v2108
        %v2110 = vpop.xlane.xlu0 %2109
        %vm2111 = vcmp.eq.f32.partialorder %v2108, %v2110
        %v2112 = vsel %vm2111, %v2107, inf
        %2113 = vmin.xlane.f32.xlu0 %v2112
        %v2114 = vpop.xlane.xlu0 %2113
        %v2115 = vcvt.f32.s32 %v2114
        %v2116 = vcvt.f32.s32 %v2110
        %v2117 = vshll.u32 %v2116, 16
        %v2118 = vadd.s32 %v2117, %v2115
        %v2119 = vand.u32 %v1999, 65535
        %v2120 = vshra.s32 %v1999, 16
        %v2121 = vcvt.s32.f32 %v2119
        %v2122 = vcvt.s32.f32 %v2120
        %2123 = vmin.xlane.f32.xlu0 %v2122
        %v2124 = vpop.xlane.xlu0 %2123
        %vm2125 = vcmp.eq.f32.partialorder %v2122, %v2124
        %v2126 = vsel %vm2125, %v2121, inf
        %2127 = vmin.xlane.f32.xlu0 %v2126
        %v2128 = vpop.xlane.xlu0 %2127
        %v2129 = vcvt.f32.s32 %v2128
        %v2130 = vcvt.f32.s32 %v2124
        %v2131 = vshll.u32 %v2130, 16
        %v2132 = vadd.s32 %v2131, %v2129
        %v2133 = vand.u32 %v2000, 65535
        %v2134 = vshra.s32 %v2000, 16
        %v2135 = vcvt.s32.f32 %v2133
        %v2136 = vcvt.s32.f32 %v2134
        %2137 = vmin.xlane.f32.xlu0 %v2136
        %v2138 = vpop.xlane.xlu0 %2137
        %vm2139 = vcmp.eq.f32.partialorder %v2136, %v2138
        %v2140 = vsel %vm2139, %v2135, inf
        %2141 = vmin.xlane.f32.xlu0 %v2140
        %v2142 = vpop.xlane.xlu0 %2141
        %v2143 = vcvt.f32.s32 %v2142
        %v2144 = vcvt.f32.s32 %v2138
        %v2145 = vshll.u32 %v2144, 16
        %v2146 = vadd.s32 %v2145, %v2143
        %v2147 = vand.u32 %v2001, 65535
        %v2148 = vshra.s32 %v2001, 16
        %v2149 = vcvt.s32.f32 %v2147
        %v2150 = vcvt.s32.f32 %v2148
        %2151 = vmin.xlane.f32.xlu0 %v2150
        %v2152 = vpop.xlane.xlu0 %2151
        %vm2153 = vcmp.eq.f32.partialorder %v2150, %v2152
        %v2154 = vsel %vm2153, %v2149, inf
        %2155 = vmin.xlane.f32.xlu0 %v2154
        %v2156 = vpop.xlane.xlu0 %2155
        %v2157 = vcvt.f32.s32 %v2156
        %v2158 = vcvt.f32.s32 %v2152
        %v2159 = vshll.u32 %v2158, 16
        %v2160 = vadd.s32 %v2159, %v2157
        %v2161 = vand.u32 %v2002, 65535
        %v2162 = vshra.s32 %v2002, 16
        %v2163 = vcvt.s32.f32 %v2161
        %v2164 = vcvt.s32.f32 %v2162
        %2165 = vmin.xlane.f32.xlu0 %v2164
        %v2166 = vpop.xlane.xlu0 %2165
        %vm2167 = vcmp.eq.f32.partialorder %v2164, %v2166
        %v2168 = vsel %vm2167, %v2163, inf
        %2169 = vmin.xlane.f32.xlu0 %v2168
        %v2170 = vpop.xlane.xlu0 %2169
        %v2171 = vcvt.f32.s32 %v2170
        %v2172 = vcvt.f32.s32 %v2166
        %v2173 = vshll.u32 %v2172, 16
        %v2174 = vadd.s32 %v2173, %v2171
        %v2175 = vand.u32 %v2003, 65535
        %v2176 = vshra.s32 %v2003, 16
        %v2177 = vcvt.s32.f32 %v2175
        %v2178 = vcvt.s32.f32 %v2176
        %2179 = vmin.xlane.f32.xlu0 %v2178
        %v2180 = vpop.xlane.xlu0 %2179
        %vm2181 = vcmp.eq.f32.partialorder %v2178, %v2180
        %v2182 = vsel %vm2181, %v2177, inf
        %2183 = vmin.xlane.f32.xlu0 %v2182
        %v2184 = vpop.xlane.xlu0 %2183
        %v2185 = vcvt.f32.s32 %v2184
        %v2186 = vcvt.f32.s32 %v2180
        %v2187 = vshll.u32 %v2186, 16
        %v2188 = vadd.s32 %v2187, %v2185
        %v2189 = vand.u32 %v2004, 65535
        %v2190 = vshra.s32 %v2004, 16
        %v2191 = vcvt.s32.f32 %v2189
        %v2192 = vcvt.s32.f32 %v2190
        %2193 = vmin.xlane.f32.xlu0 %v2192
        %v2194 = vpop.xlane.xlu0 %2193
        %vm2195 = vcmp.eq.f32.partialorder %v2192, %v2194
        %v2196 = vsel %vm2195, %v2191, inf
        %2197 = vmin.xlane.f32.xlu0 %v2196
        %v2198 = vpop.xlane.xlu0 %2197
        %v2199 = vcvt.f32.s32 %v2198
        %v2200 = vcvt.f32.s32 %v2194
        %v2201 = vshll.u32 %v2200, 16
        %v2202 = vadd.s32 %v2201, %v2199
        %v2203 = vand.u32 %v2005, 65535
        %v2204 = vshra.s32 %v2005, 16
        %v2205 = vcvt.s32.f32 %v2203
        %v2206 = vcvt.s32.f32 %v2204
        %2207 = vmin.xlane.f32.xlu0 %v2206
        %v2208 = vpop.xlane.xlu0 %2207
        %vm2209 = vcmp.eq.f32.partialorder %v2206, %v2208
        %v2210 = vsel %vm2209, %v2205, inf
        %2211 = vmin.xlane.f32.xlu0 %v2210
        %v2212 = vpop.xlane.xlu0 %2211
        %v2213 = vcvt.f32.s32 %v2212
        %v2214 = vcvt.f32.s32 %v2208
        %v2215 = vshll.u32 %v2214, 16
        %v2216 = vadd.s32 %v2215, %v2213
        %v2217 = vand.u32 %v2006, 65535
        %v2218 = vshra.s32 %v2006, 16
        %v2219 = vcvt.s32.f32 %v2217
        %v2220 = vcvt.s32.f32 %v2218
        %2221 = vmin.xlane.f32.xlu0 %v2220
        %v2222 = vpop.xlane.xlu0 %2221
        %vm2223 = vcmp.eq.f32.partialorder %v2220, %v2222
        %v2224 = vsel %vm2223, %v2219, inf
        %2225 = vmin.xlane.f32.xlu0 %v2224
        %v2226 = vpop.xlane.xlu0 %2225
        %v2227 = vcvt.f32.s32 %v2226
        %v2228 = vcvt.f32.s32 %v2222
        %v2229 = vshll.u32 %v2228, 16
        %v2230 = vadd.s32 %v2229, %v2227
        %vm2231 = vcmp.eq.s32.totalorder %v2020, %v1620
        %vm2232 = vcmp.eq.s32.totalorder %v2034, %v1634
        %vm2233 = vcmp.eq.s32.totalorder %v2048, %v1648
        %vm2234 = vcmp.eq.s32.totalorder %v2062, %v1662
        %vm2235 = vcmp.eq.s32.totalorder %v2076, %v1676
        %vm2236 = vcmp.eq.s32.totalorder %v2090, %v1690
        %vm2237 = vcmp.eq.s32.totalorder %v2104, %v1704
        %vm2238 = vcmp.eq.s32.totalorder %v2118, %v1718
        %vm2239 = vcmp.eq.s32.totalorder %v2132, %v1732
        %vm2240 = vcmp.eq.s32.totalorder %v2146, %v1746
        %vm2241 = vcmp.eq.s32.totalorder %v2160, %v1760
        %vm2242 = vcmp.eq.s32.totalorder %v2174, %v1774
        %vm2243 = vcmp.eq.s32.totalorder %v2188, %v1788
        %vm2244 = vcmp.eq.s32.totalorder %v2202, %v1802
        %vm2245 = vcmp.eq.s32.totalorder %v2216, %v1816
        %vm2246 = vcmp.eq.s32.totalorder %v2230, %v1830
        %v2247 = vsel %vm2231, 1, 0
        %v2248 = vsel %vm2232, 1, 0
        %v2249 = vsel %vm2233, 1, 0
        %v2250 = vsel %vm2234, 1, 0
        %v2251 = vsel %vm2235, 1, 0
        %v2252 = vsel %vm2236, 1, 0
        %v2253 = vsel %vm2237, 1, 0
        %v2254 = vsel %vm2238, 1, 0
        %v2255 = vsel %vm2239, 1, 0
        %v2256 = vsel %vm2240, 1, 0
        %v2257 = vsel %vm2241, 1, 0
        %v2258 = vsel %vm2242, 1, 0
        %v2259 = vsel %vm2243, 1, 0
        %v2260 = vsel %vm2244, 1, 0
        %v2261 = vsel %vm2245, 1, 0
        %v2262 = vsel %vm2246, 1, 0
        %v2263 = vcvt.s32.f32 %v2247
        %v2264 = vcvt.s32.f32 %v2248
        %v2265 = vcvt.s32.f32 %v2249
        %v2266 = vcvt.s32.f32 %v2250
        %v2267 = vcvt.s32.f32 %v2251
        %v2268 = vcvt.s32.f32 %v2252
        %v2269 = vcvt.s32.f32 %v2253
        %v2270 = vcvt.s32.f32 %v2254
        %v2271 = vcvt.s32.f32 %v2255
        %v2272 = vcvt.s32.f32 %v2256
        %v2273 = vcvt.s32.f32 %v2257
        %v2274 = vcvt.s32.f32 %v2258
        %v2275 = vcvt.s32.f32 %v2259
        %v2276 = vcvt.s32.f32 %v2260
        %v2277 = vcvt.s32.f32 %v2261
        %v2278 = vcvt.s32.f32 %v2262
        %v2279 = vmul.f32 %v1944, 10.0
        %v2280 = vmul.f32 %v1946, 10.0
        %v2281 = vmul.f32 %v1948, 10.0
        %v2282 = vmul.f32 %v1950, 10.0
        %v2283 = vmul.f32 %v1952, 10.0
        %v2284 = vmul.f32 %v1954, 10.0
        %v2285 = vmul.f32 %v1956, 10.0
        %v2286 = vmul.f32 %v1958, 10.0
        %v2287 = vmul.f32 %v1960, 10.0
        %v2288 = vmul.f32 %v1962, 10.0
        %v2289 = vmul.f32 %v1964, 10.0
        %v2290 = vmul.f32 %v1966, 10.0
        %v2291 = vmul.f32 %v1968, 10.0
        %v2292 = vmul.f32 %v1970, 10.0
        %v2293 = vmul.f32 %v1972, 10.0
        %v2294 = vmul.f32 %v1974, 10.0
        %v2295 = vsub.f32 %v1527, %v2279
        %v2296 = vsub.f32 %v1528, %v2280
        %v2297 = vsub.f32 %v1529, %v2281
        %v2298 = vsub.f32 %v1530, %v2282
        %v2299 = vsub.f32 %v1531, %v2283
        %v2300 = vsub.f32 %v1532, %v2284
        %v2301 = vsub.f32 %v1533, %v2285
        %v2302 = vsub.f32 %v1534, %v2286
        %v2303 = vsub.f32 %v1535, %v2287
        %v2304 = vsub.f32 %v1536, %v2288
        %v2305 = vsub.f32 %v1537, %v2289
        %v2306 = vsub.f32 %v1538, %v2290
        %v2307 = vsub.f32 %v1539, %v2291
        %v2308 = vsub.f32 %v1540, %v2292
        %v2309 = vsub.f32 %v1541, %v2293
        %v2310 = vsub.f32 %v1542, %v2294
        %v2311 = vmul.f32 %v2295, 1.442695
        %v2312 = vpow.pop %v2311
        %v2313 = vmul.f32 %v2296, 1.442695
        %v2314 = vpow.pop %v2313
        %v2315 = vmul.f32 %v2297, 1.442695
        %v2316 = vpow.pop %v2315
        %v2317 = vmul.f32 %v2298, 1.442695
        %v2318 = vpow.pop %v2317
        %v2319 = vmul.f32 %v2299, 1.442695
        %v2320 = vpow.pop %v2319
        %v2321 = vmul.f32 %v2300, 1.442695
        %v2322 = vpow.pop %v2321
        %v2323 = vmul.f32 %v2301, 1.442695
        %v2324 = vpow.pop %v2323
        %v2325 = vmul.f32 %v2302, 1.442695
        %v2326 = vpow.pop %v2325
        %v2327 = vmul.f32 %v2303, 1.442695
        %v2328 = vpow.pop %v2327
        %v2329 = vmul.f32 %v2304, 1.442695
        %v2330 = vpow.pop %v2329
        %v2331 = vmul.f32 %v2305, 1.442695
        %v2332 = vpow.pop %v2331
        %v2333 = vmul.f32 %v2306, 1.442695
        %v2334 = vpow.pop %v2333
        %v2335 = vmul.f32 %v2307, 1.442695
        %v2336 = vpow.pop %v2335
        %v2337 = vmul.f32 %v2308, 1.442695
        %v2338 = vpow.pop %v2337
        %v2339 = vmul.f32 %v2309, 1.442695
        %v2340 = vpow.pop %v2339
        %v2341 = vmul.f32 %v2310, 1.442695
        %v2342 = vpow.pop %v2341
        %2343 = vadd.xlane.f32.xlu0 %v2312
        %v2344 = vpop.xlane.xlu0 %2343
        %2345 = vadd.xlane.f32.xlu0 %v2314
        %v2346 = vpop.xlane.xlu0 %2345
        %2347 = vadd.xlane.f32.xlu0 %v2316
        %v2348 = vpop.xlane.xlu0 %2347
        %2349 = vadd.xlane.f32.xlu0 %v2318
        %v2350 = vpop.xlane.xlu0 %2349
        %2351 = vadd.xlane.f32.xlu0 %v2320
        %v2352 = vpop.xlane.xlu0 %2351
        %2353 = vadd.xlane.f32.xlu0 %v2322
        %v2354 = vpop.xlane.xlu0 %2353
        %2355 = vadd.xlane.f32.xlu0 %v2324
        %v2356 = vpop.xlane.xlu0 %2355
        %2357 = vadd.xlane.f32.xlu0 %v2326
        %v2358 = vpop.xlane.xlu0 %2357
        %2359 = vadd.xlane.f32.xlu0 %v2328
        %v2360 = vpop.xlane.xlu0 %2359
        %2361 = vadd.xlane.f32.xlu0 %v2330
        %v2362 = vpop.xlane.xlu0 %2361
        %2363 = vadd.xlane.f32.xlu0 %v2332
        %v2364 = vpop.xlane.xlu0 %2363
        %2365 = vadd.xlane.f32.xlu0 %v2334
        %v2366 = vpop.xlane.xlu0 %2365
        %2367 = vadd.xlane.f32.xlu0 %v2336
        %v2368 = vpop.xlane.xlu0 %2367
        %2369 = vadd.xlane.f32.xlu0 %v2338
        %v2370 = vpop.xlane.xlu0 %2369
        %2371 = vadd.xlane.f32.xlu0 %v2340
        %v2372 = vpop.xlane.xlu0 %2371
        %2373 = vadd.xlane.f32.xlu0 %v2342
        %v2374 = vpop.xlane.xlu0 %2373
        %v2375 = vlog2.pop %v2344
        %v2376 = vmul.f32 %v2375, 0.6931472
        %v2377 = vlog2.pop %v2346
        %v2378 = vmul.f32 %v2377, 0.6931472
        %v2379 = vlog2.pop %v2348
        %v2380 = vmul.f32 %v2379, 0.6931472
        %v2381 = vlog2.pop %v2350
        %v2382 = vmul.f32 %v2381, 0.6931472
        %v2383 = vlog2.pop %v2352
        %v2384 = vmul.f32 %v2383, 0.6931472
        %v2385 = vlog2.pop %v2354
        %v2386 = vmul.f32 %v2385, 0.6931472
        %v2387 = vlog2.pop %v2356
        %v2388 = vmul.f32 %v2387, 0.6931472
        %v2389 = vlog2.pop %v2358
        %v2390 = vmul.f32 %v2389, 0.6931472
        %v2391 = vlog2.pop %v2360
        %v2392 = vmul.f32 %v2391, 0.6931472
        %v2393 = vlog2.pop %v2362
        %v2394 = vmul.f32 %v2393, 0.6931472
        %v2395 = vlog2.pop %v2364
        %v2396 = vmul.f32 %v2395, 0.6931472
        %v2397 = vlog2.pop %v2366
        %v2398 = vmul.f32 %v2397, 0.6931472
        %v2399 = vlog2.pop %v2368
        %v2400 = vmul.f32 %v2399, 0.6931472
        %v2401 = vlog2.pop %v2370
        %v2402 = vmul.f32 %v2401, 0.6931472
        %v2403 = vlog2.pop %v2372
        %v2404 = vmul.f32 %v2403, 0.6931472
        %v2405 = vlog2.pop %v2374
        %v2406 = vmul.f32 %v2405, 0.6931472
        %v2407 = vadd.f32 %v2279, %v2376
        %v2408 = vadd.f32 %v2280, %v2378
        %v2409 = vadd.f32 %v2281, %v2380
        %v2410 = vadd.f32 %v2282, %v2382
        %v2411 = vadd.f32 %v2283, %v2384
        %v2412 = vadd.f32 %v2284, %v2386
        %v2413 = vadd.f32 %v2285, %v2388
        %v2414 = vadd.f32 %v2286, %v2390
        %v2415 = vadd.f32 %v2287, %v2392
        %v2416 = vadd.f32 %v2288, %v2394
        %v2417 = vadd.f32 %v2289, %v2396
        %v2418 = vadd.f32 %v2290, %v2398
        %v2419 = vadd.f32 %v2291, %v2400
        %v2420 = vadd.f32 %v2292, %v2402
        %v2421 = vadd.f32 %v2293, %v2404
        %v2422 = vadd.f32 %v2294, %v2406
        %v2423 = vsel %vm1895, %v1527, 0.0
        %v2424 = vsel %vm1896, %v1528, 0.0
        %v2425 = vsel %vm1897, %v1529, 0.0
        %v2426 = vsel %vm1898, %v1530, 0.0
        %v2427 = vsel %vm1899, %v1531, 0.0
        %v2428 = vsel %vm1900, %v1532, 0.0
        %v2429 = vsel %vm1901, %v1533, 0.0
        %v2430 = vsel %vm1902, %v1534, 0.0
        %v2431 = vsel %vm1903, %v1535, 0.0
        %v2432 = vsel %vm1904, %v1536, 0.0
        %v2433 = vsel %vm1905, %v1537, 0.0
        %v2434 = vsel %vm1906, %v1538, 0.0
        %v2435 = vsel %vm1907, %v1539, 0.0
        %v2436 = vsel %vm1908, %v1540, 0.0
        %v2437 = vsel %vm1909, %v1541, 0.0
        %v2438 = vsel %vm1910, %v1542, 0.0
        %2439 = vadd.xlane.f32.xlu0 %v2423
        %v2440 = vpop.xlane.xlu0 %2439
        %2441 = vadd.xlane.f32.xlu0 %v2424
        %v2442 = vpop.xlane.xlu0 %2441
        %2443 = vadd.xlane.f32.xlu0 %v2425
        %v2444 = vpop.xlane.xlu0 %2443
        %2445 = vadd.xlane.f32.xlu0 %v2426
        %v2446 = vpop.xlane.xlu0 %2445
        %2447 = vadd.xlane.f32.xlu0 %v2427
        %v2448 = vpop.xlane.xlu0 %2447
        %2449 = vadd.xlane.f32.xlu0 %v2428
        %v2450 = vpop.xlane.xlu0 %2449
        %2451 = vadd.xlane.f32.xlu0 %v2429
        %v2452 = vpop.xlane.xlu0 %2451
        %2453 = vadd.xlane.f32.xlu0 %v2430
        %v2454 = vpop.xlane.xlu0 %2453
        %2455 = vadd.xlane.f32.xlu0 %v2431
        %v2456 = vpop.xlane.xlu0 %2455
        %2457 = vadd.xlane.f32.xlu0 %v2432
        %v2458 = vpop.xlane.xlu0 %2457
        %2459 = vadd.xlane.f32.xlu0 %v2433
        %v2460 = vpop.xlane.xlu0 %2459
        %2461 = vadd.xlane.f32.xlu0 %v2434
        %v2462 = vpop.xlane.xlu0 %2461
        %2463 = vadd.xlane.f32.xlu0 %v2435
        %v2464 = vpop.xlane.xlu0 %2463
        %2465 = vadd.xlane.f32.xlu0 %v2436
        %v2466 = vpop.xlane.xlu0 %2465
        %2467 = vadd.xlane.f32.xlu0 %v2437
        %v2468 = vpop.xlane.xlu0 %2467
        %2469 = vadd.xlane.f32.xlu0 %v2438
        %v2470 = vpop.xlane.xlu0 %2469
        %v2471 = vsub.f32 %v2407, %v2440
        %v2472 = vsub.f32 %v2408, %v2442
        %v2473 = vsub.f32 %v2409, %v2444
        %v2474 = vsub.f32 %v2410, %v2446
        %v2475 = vsub.f32 %v2411, %v2448
        %v2476 = vsub.f32 %v2412, %v2450
        %v2477 = vsub.f32 %v2413, %v2452
        %v2478 = vsub.f32 %v2414, %v2454
        %v2479 = vsub.f32 %v2415, %v2456
        %v2480 = vsub.f32 %v2416, %v2458
        %v2481 = vsub.f32 %v2417, %v2460
        %v2482 = vsub.f32 %v2418, %v2462
        %v2483 = vsub.f32 %v2419, %v2464
        %v2484 = vsub.f32 %v2420, %v2466
        %v2485 = vsub.f32 %v2421, %v2468
        %v2486 = vsub.f32 %v2422, %v2470
        %v2487 = vsel %vm1927, -1e+08, %v1449
        %v2488 = vsel %vm1928, -1e+08, %v1454
        %v2489 = vsel %vm1929, -1e+08, %v1459
        %v2490 = vsel %vm1930, -1e+08, %v1464
        %v2491 = vsel %vm1931, -1e+08, %v1469
        %v2492 = vsel %vm1932, -1e+08, %v1474
        %v2493 = vsel %vm1933, -1e+08, %v1479
        %v2494 = vsel %vm1934, -1e+08, %v1484
        %v2495 = vsel %vm1935, -1e+08, %v1489
        %v2496 = vsel %vm1936, -1e+08, %v1494
        %v2497 = vsel %vm1937, -1e+08, %v1499
        %v2498 = vsel %vm1938, -1e+08, %v1504
        %v2499 = vsel %vm1939, -1e+08, %v1509
        %v2500 = vsel %vm1940, -1e+08, %v1514
        %v2501 = vsel %vm1941, -1e+08, %v1519
        %v2502 = vsel %vm1942, -1e+08, %v1524
        %v2503 = vmul.f32 %v2487, 10.0
        %v2504 = vmul.f32 %v2488, 10.0
        %v2505 = vmul.f32 %v2489, 10.0
        %v2506 = vmul.f32 %v2490, 10.0
        %v2507 = vmul.f32 %v2491, 10.0
        %v2508 = vmul.f32 %v2492, 10.0
        %v2509 = vmul.f32 %v2493, 10.0
        %v2510 = vmul.f32 %v2494, 10.0
        %v2511 = vmul.f32 %v2495, 10.0
        %v2512 = vmul.f32 %v2496, 10.0
        %v2513 = vmul.f32 %v2497, 10.0
        %v2514 = vmul.f32 %v2498, 10.0
        %v2515 = vmul.f32 %v2499, 10.0
        %v2516 = vmul.f32 %v2500, 10.0
        %v2517 = vmul.f32 %v2501, 10.0
        %v2518 = vmul.f32 %v2502, 10.0
        %2519 = vmax.xlane.f32.xlu0 %v2503
        %v2520 = vpop.xlane.xlu0 %2519
        %2521 = vmax.xlane.f32.xlu0 %v2504
        %v2522 = vpop.xlane.xlu0 %2521
        %2523 = vmax.xlane.f32.xlu0 %v2505
        %v2524 = vpop.xlane.xlu0 %2523
        %2525 = vmax.xlane.f32.xlu0 %v2506
        %v2526 = vpop.xlane.xlu0 %2525
        %2527 = vmax.xlane.f32.xlu0 %v2507
        %v2528 = vpop.xlane.xlu0 %2527
        %2529 = vmax.xlane.f32.xlu0 %v2508
        %v2530 = vpop.xlane.xlu0 %2529
        %2531 = vmax.xlane.f32.xlu0 %v2509
        %v2532 = vpop.xlane.xlu0 %2531
        %2533 = vmax.xlane.f32.xlu0 %v2510
        %v2534 = vpop.xlane.xlu0 %2533
        %2535 = vmax.xlane.f32.xlu0 %v2511
        %v2536 = vpop.xlane.xlu0 %2535
        %2537 = vmax.xlane.f32.xlu0 %v2512
        %v2538 = vpop.xlane.xlu0 %2537
        %2539 = vmax.xlane.f32.xlu0 %v2513
        %v2540 = vpop.xlane.xlu0 %2539
        %2541 = vmax.xlane.f32.xlu0 %v2514
        %v2542 = vpop.xlane.xlu0 %2541
        %2543 = vmax.xlane.f32.xlu0 %v2515
        %v2544 = vpop.xlane.xlu0 %2543
        %2545 = vmax.xlane.f32.xlu0 %v2516
        %v2546 = vpop.xlane.xlu0 %2545
        %2547 = vmax.xlane.f32.xlu0 %v2517
        %v2548 = vpop.xlane.xlu0 %2547
        %2549 = vmax.xlane.f32.xlu0 %v2518
        %v2550 = vpop.xlane.xlu0 %2549
        %v2551 = vsub.f32 %v2503, %v2520
        %v2552 = vsub.f32 %v2504, %v2522
        %v2553 = vsub.f32 %v2505, %v2524
        %v2554 = vsub.f32 %v2506, %v2526
        %v2555 = vsub.f32 %v2507, %v2528
        %v2556 = vsub.f32 %v2508, %v2530
        %v2557 = vsub.f32 %v2509, %v2532
        %v2558 = vsub.f32 %v2510, %v2534
        %v2559 = vsub.f32 %v2511, %v2536
        %v2560 = vsub.f32 %v2512, %v2538
        %v2561 = vsub.f32 %v2513, %v2540
        %v2562 = vsub.f32 %v2514, %v2542
        %v2563 = vsub.f32 %v2515, %v2544
        %v2564 = vsub.f32 %v2516, %v2546
        %v2565 = vsub.f32 %v2517, %v2548
        %v2566 = vsub.f32 %v2518, %v2550
        %v2567 = vmul.f32 %v2551, 1.442695
        %v2568 = vpow.pop %v2567
        %v2569 = vmul.f32 %v2552, 1.442695
        %v2570 = vpow.pop %v2569
        %v2571 = vmul.f32 %v2553, 1.442695
        %v2572 = vpow.pop %v2571
        %v2573 = vmul.f32 %v2554, 1.442695
        %v2574 = vpow.pop %v2573
        %v2575 = vmul.f32 %v2555, 1.442695
        %v2576 = vpow.pop %v2575
        %v2577 = vmul.f32 %v2556, 1.442695
        %v2578 = vpow.pop %v2577
        %v2579 = vmul.f32 %v2557, 1.442695
        %v2580 = vpow.pop %v2579
        %v2581 = vmul.f32 %v2558, 1.442695
        %v2582 = vpow.pop %v2581
        %v2583 = vmul.f32 %v2559, 1.442695
        %v2584 = vpow.pop %v2583
        %v2585 = vmul.f32 %v2560, 1.442695
        %v2586 = vpow.pop %v2585
        %v2587 = vmul.f32 %v2561, 1.442695
        %v2588 = vpow.pop %v2587
        %v2589 = vmul.f32 %v2562, 1.442695
        %v2590 = vpow.pop %v2589
        %v2591 = vmul.f32 %v2563, 1.442695
        %v2592 = vpow.pop %v2591
        %v2593 = vmul.f32 %v2564, 1.442695
        %v2594 = vpow.pop %v2593
        %v2595 = vmul.f32 %v2565, 1.442695
        %v2596 = vpow.pop %v2595
        %v2597 = vmul.f32 %v2566, 1.442695
        %v2598 = vpow.pop %v2597
        %2599 = vadd.xlane.f32.xlu0 %v2568
        %v2600 = vpop.xlane.xlu0 %2599
        %2601 = vadd.xlane.f32.xlu0 %v2570
        %v2602 = vpop.xlane.xlu0 %2601
        %2603 = vadd.xlane.f32.xlu0 %v2572
        %v2604 = vpop.xlane.xlu0 %2603
        %2605 = vadd.xlane.f32.xlu0 %v2574
        %v2606 = vpop.xlane.xlu0 %2605
        %2607 = vadd.xlane.f32.xlu0 %v2576
        %v2608 = vpop.xlane.xlu0 %2607
        %2609 = vadd.xlane.f32.xlu0 %v2578
        %v2610 = vpop.xlane.xlu0 %2609
        %2611 = vadd.xlane.f32.xlu0 %v2580
        %v2612 = vpop.xlane.xlu0 %2611
        %2613 = vadd.xlane.f32.xlu0 %v2582
        %v2614 = vpop.xlane.xlu0 %2613
        %2615 = vadd.xlane.f32.xlu0 %v2584
        %v2616 = vpop.xlane.xlu0 %2615
        %2617 = vadd.xlane.f32.xlu0 %v2586
        %v2618 = vpop.xlane.xlu0 %2617
        %2619 = vadd.xlane.f32.xlu0 %v2588
        %v2620 = vpop.xlane.xlu0 %2619
        %2621 = vadd.xlane.f32.xlu0 %v2590
        %v2622 = vpop.xlane.xlu0 %2621
        %2623 = vadd.xlane.f32.xlu0 %v2592
        %v2624 = vpop.xlane.xlu0 %2623
        %2625 = vadd.xlane.f32.xlu0 %v2594
        %v2626 = vpop.xlane.xlu0 %2625
        %2627 = vadd.xlane.f32.xlu0 %v2596
        %v2628 = vpop.xlane.xlu0 %2627
        %2629 = vadd.xlane.f32.xlu0 %v2598
        %v2630 = vpop.xlane.xlu0 %2629
        %v2631 = vlog2.pop %v2600
        %v2632 = vmul.f32 %v2631, 0.6931472
        %v2633 = vlog2.pop %v2602
        %v2634 = vmul.f32 %v2633, 0.6931472
        %v2635 = vlog2.pop %v2604
        %v2636 = vmul.f32 %v2635, 0.6931472
        %v2637 = vlog2.pop %v2606
        %v2638 = vmul.f32 %v2637, 0.6931472
        %v2639 = vlog2.pop %v2608
        %v2640 = vmul.f32 %v2639, 0.6931472
        %v2641 = vlog2.pop %v2610
        %v2642 = vmul.f32 %v2641, 0.6931472
        %v2643 = vlog2.pop %v2612
        %v2644 = vmul.f32 %v2643, 0.6931472
        %v2645 = vlog2.pop %v2614
        %v2646 = vmul.f32 %v2645, 0.6931472
        %v2647 = vlog2.pop %v2616
        %v2648 = vmul.f32 %v2647, 0.6931472
        %v2649 = vlog2.pop %v2618
        %v2650 = vmul.f32 %v2649, 0.6931472
        %v2651 = vlog2.pop %v2620
        %v2652 = vmul.f32 %v2651, 0.6931472
        %v2653 = vlog2.pop %v2622
        %v2654 = vmul.f32 %v2653, 0.6931472
        %v2655 = vlog2.pop %v2624
        %v2656 = vmul.f32 %v2655, 0.6931472
        %v2657 = vlog2.pop %v2626
        %v2658 = vmul.f32 %v2657, 0.6931472
        %v2659 = vlog2.pop %v2628
        %v2660 = vmul.f32 %v2659, 0.6931472
        %v2661 = vlog2.pop %v2630
        %v2662 = vmul.f32 %v2661, 0.6931472
        %v2663 = vadd.f32 %v2520, %v2632
        %v2664 = vadd.f32 %v2522, %v2634
        %v2665 = vadd.f32 %v2524, %v2636
        %v2666 = vadd.f32 %v2526, %v2638
        %v2667 = vadd.f32 %v2528, %v2640
        %v2668 = vadd.f32 %v2530, %v2642
        %v2669 = vadd.f32 %v2532, %v2644
        %v2670 = vadd.f32 %v2534, %v2646
        %v2671 = vadd.f32 %v2536, %v2648
        %v2672 = vadd.f32 %v2538, %v2650
        %v2673 = vadd.f32 %v2540, %v2652
        %v2674 = vadd.f32 %v2542, %v2654
        %v2675 = vadd.f32 %v2544, %v2656
        %v2676 = vadd.f32 %v2546, %v2658
        %v2677 = vadd.f32 %v2548, %v2660
        %v2678 = vadd.f32 %v2550, %v2662
        %v2679 = vsel %vm1895, %v2503, 0.0
        %v2680 = vsel %vm1896, %v2504, 0.0
        %v2681 = vsel %vm1897, %v2505, 0.0
        %v2682 = vsel %vm1898, %v2506, 0.0
        %v2683 = vsel %vm1899, %v2507, 0.0
        %v2684 = vsel %vm1900, %v2508, 0.0
        %v2685 = vsel %vm1901, %v2509, 0.0
        %v2686 = vsel %vm1902, %v2510, 0.0
        %v2687 = vsel %vm1903, %v2511, 0.0
        %v2688 = vsel %vm1904, %v2512, 0.0
        %v2689 = vsel %vm1905, %v2513, 0.0
        %v2690 = vsel %vm1906, %v2514, 0.0
        %v2691 = vsel %vm1907, %v2515, 0.0
        %v2692 = vsel %vm1908, %v2516, 0.0
        %v2693 = vsel %vm1909, %v2517, 0.0
        %v2694 = vsel %vm1910, %v2518, 0.0
        %2695 = vadd.xlane.f32.xlu0 %v2679
        %v2696 = vpop.xlane.xlu0 %2695
        %2697 = vadd.xlane.f32.xlu0 %v2680
        %v2698 = vpop.xlane.xlu0 %2697
        %2699 = vadd.xlane.f32.xlu0 %v2681
        %v2700 = vpop.xlane.xlu0 %2699
        %2701 = vadd.xlane.f32.xlu0 %v2682
        %v2702 = vpop.xlane.xlu0 %2701
        %2703 = vadd.xlane.f32.xlu0 %v2683
        %v2704 = vpop.xlane.xlu0 %2703
        %2705 = vadd.xlane.f32.xlu0 %v2684
        %v2706 = vpop.xlane.xlu0 %2705
        %2707 = vadd.xlane.f32.xlu0 %v2685
        %v2708 = vpop.xlane.xlu0 %2707
        %2709 = vadd.xlane.f32.xlu0 %v2686
        %v2710 = vpop.xlane.xlu0 %2709
        %2711 = vadd.xlane.f32.xlu0 %v2687
        %v2712 = vpop.xlane.xlu0 %2711
        %2713 = vadd.xlane.f32.xlu0 %v2688
        %v2714 = vpop.xlane.xlu0 %2713
        %2715 = vadd.xlane.f32.xlu0 %v2689
        %v2716 = vpop.xlane.xlu0 %2715
        %2717 = vadd.xlane.f32.xlu0 %v2690
        %v2718 = vpop.xlane.xlu0 %2717
        %2719 = vadd.xlane.f32.xlu0 %v2691
        %v2720 = vpop.xlane.xlu0 %2719
        %2721 = vadd.xlane.f32.xlu0 %v2692
        %v2722 = vpop.xlane.xlu0 %2721
        %2723 = vadd.xlane.f32.xlu0 %v2693
        %v2724 = vpop.xlane.xlu0 %2723
        %2725 = vadd.xlane.f32.xlu0 %v2694
        %v2726 = vpop.xlane.xlu0 %2725
        %v2727 = vsub.f32 %v2663, %v2696
        %v2728 = vsub.f32 %v2664, %v2698
        %v2729 = vsub.f32 %v2665, %v2700
        %v2730 = vsub.f32 %v2666, %v2702
        %v2731 = vsub.f32 %v2667, %v2704
        %v2732 = vsub.f32 %v2668, %v2706
        %v2733 = vsub.f32 %v2669, %v2708
        %v2734 = vsub.f32 %v2670, %v2710
        %v2735 = vsub.f32 %v2671, %v2712
        %v2736 = vsub.f32 %v2672, %v2714
        %v2737 = vsub.f32 %v2673, %v2716
        %v2738 = vsub.f32 %v2674, %v2718
        %v2739 = vsub.f32 %v2675, %v2720
        %v2740 = vsub.f32 %v2676, %v2722
        %v2741 = vsub.f32 %v2677, %v2724
        %v2742 = vsub.f32 %v2678, %v2726
        %v2743 = vmul.f32 %v2471, %v1879
        %v2744 = vmul.f32 %v2472, %v1880
        %v2745 = vmul.f32 %v2473, %v1881
        %v2746 = vmul.f32 %v2474, %v1882
        %v2747 = vmul.f32 %v2475, %v1883
        %v2748 = vmul.f32 %v2476, %v1884
        %v2749 = vmul.f32 %v2477, %v1885
        %v2750 = vmul.f32 %v2478, %v1886
        %v2751 = vmul.f32 %v2479, %v1887
        %v2752 = vmul.f32 %v2480, %v1888
        %v2753 = vmul.f32 %v2481, %v1889
        %v2754 = vmul.f32 %v2482, %v1890
        %v2755 = vmul.f32 %v2483, %v1891
        %v2756 = vmul.f32 %v2484, %v1892
        %v2757 = vmul.f32 %v2485, %v1893
        %v2758 = vmul.f32 %v2486, %v1894
        %vm2759 = vcmask 7168
        %v2760 = vsel %vm2759, %v2743, 0.0
        %v2761 = vsel %vm2759, %v2744, 0.0
        %v2762 = vadd.f32 %v2760, %v2761
        %v2763 = vsel %vm2759, %v2745, 0.0
        %v2764 = vadd.f32 %v2762, %v2763
        %v2765 = vsel %vm2759, %v2746, 0.0
        %v2766 = vadd.f32 %v2764, %v2765
        %v2767 = vsel %vm2759, %v2747, 0.0
        %v2768 = vadd.f32 %v2766, %v2767
        %v2769 = vsel %vm2759, %v2748, 0.0
        %v2770 = vadd.f32 %v2768, %v2769
        %v2771 = vsel %vm2759, %v2749, 0.0
        %v2772 = vadd.f32 %v2770, %v2771
        %v2773 = vsel %vm2759, %v2750, 0.0
        %v2774 = vadd.f32 %v2772, %v2773
        %v2775 = vsel %vm2759, %v2751, 0.0
        %v2776 = vadd.f32 %v2774, %v2775
        %v2777 = vsel %vm2759, %v2752, 0.0
        %v2778 = vadd.f32 %v2776, %v2777
        %v2779 = vsel %vm2759, %v2753, 0.0
        %v2780 = vadd.f32 %v2778, %v2779
        %v2781 = vsel %vm2759, %v2754, 0.0
        %v2782 = vadd.f32 %v2780, %v2781
        %v2783 = vsel %vm2759, %v2755, 0.0
        %v2784 = vadd.f32 %v2782, %v2783
        %v2785 = vsel %vm2759, %v2756, 0.0
        %v2786 = vadd.f32 %v2784, %v2785
        %v2787 = vsel %vm2759, %v2757, 0.0
        %v2788 = vadd.f32 %v2786, %v2787
        %v2789 = vsel %vm2759, %v2758, 0.0
        %v2790 = vadd.f32 %v2788, %v2789
        %2791 = vadd.xlane.f32.xlu0 %v2790
        %v2792 = vpop.xlane.xlu0 %2791
        %v2793 = vrot.slane %v2792, 4
        %v2794 = vadd.f32 %v2792, %v2793
        %v2795 = vrot.slane %v2794, 2
        %v2796 = vadd.f32 %v2794, %v2795
        %v2797 = vrot.slane %v2796, 1
        %v2798 = vadd.f32 %v2796, %v2797
        %s2799 = vtos %v2798
        %v2800 = vmul.f32 %v2727, %v1879
        %v2801 = vmul.f32 %v2728, %v1880
        %v2802 = vmul.f32 %v2729, %v1881
        %v2803 = vmul.f32 %v2730, %v1882
        %v2804 = vmul.f32 %v2731, %v1883
        %v2805 = vmul.f32 %v2732, %v1884
        %v2806 = vmul.f32 %v2733, %v1885
        %v2807 = vmul.f32 %v2734, %v1886
        %v2808 = vmul.f32 %v2735, %v1887
        %v2809 = vmul.f32 %v2736, %v1888
        %v2810 = vmul.f32 %v2737, %v1889
        %v2811 = vmul.f32 %v2738, %v1890
        %v2812 = vmul.f32 %v2739, %v1891
        %v2813 = vmul.f32 %v2740, %v1892
        %v2814 = vmul.f32 %v2741, %v1893
        %v2815 = vmul.f32 %v2742, %v1894
        %v2816 = vsel %vm2759, %v2800, 0.0
        %v2817 = vsel %vm2759, %v2801, 0.0
        %v2818 = vadd.f32 %v2816, %v2817
        %v2819 = vsel %vm2759, %v2802, 0.0
        %v2820 = vadd.f32 %v2818, %v2819
        %v2821 = vsel %vm2759, %v2803, 0.0
        %v2822 = vadd.f32 %v2820, %v2821
        %v2823 = vsel %vm2759, %v2804, 0.0
        %v2824 = vadd.f32 %v2822, %v2823
        %v2825 = vsel %vm2759, %v2805, 0.0
        %v2826 = vadd.f32 %v2824, %v2825
        %v2827 = vsel %vm2759, %v2806, 0.0
        %v2828 = vadd.f32 %v2826, %v2827
        %v2829 = vsel %vm2759, %v2807, 0.0
        %v2830 = vadd.f32 %v2828, %v2829
        %v2831 = vsel %vm2759, %v2808, 0.0
        %v2832 = vadd.f32 %v2830, %v2831
        %v2833 = vsel %vm2759, %v2809, 0.0
        %v2834 = vadd.f32 %v2832, %v2833
        %v2835 = vsel %vm2759, %v2810, 0.0
        %v2836 = vadd.f32 %v2834, %v2835
        %v2837 = vsel %vm2759, %v2811, 0.0
        %v2838 = vadd.f32 %v2836, %v2837
        %v2839 = vsel %vm2759, %v2812, 0.0
        %v2840 = vadd.f32 %v2838, %v2839
        %v2841 = vsel %vm2759, %v2813, 0.0
        %v2842 = vadd.f32 %v2840, %v2841
        %v2843 = vsel %vm2759, %v2814, 0.0
        %v2844 = vadd.f32 %v2842, %v2843
        %v2845 = vsel %vm2759, %v2815, 0.0
        %v2846 = vadd.f32 %v2844, %v2845
        %2847 = vadd.xlane.f32.xlu0 %v2846
        %v2848 = vpop.xlane.xlu0 %2847
        %v2849 = vrot.slane %v2848, 4
        %v2850 = vadd.f32 %v2848, %v2849
        %v2851 = vrot.slane %v2850, 2
        %v2852 = vadd.f32 %v2850, %v2851
        %v2853 = vrot.slane %v2852, 1
        %v2854 = vadd.f32 %v2852, %v2853
        %s2855 = vtos %v2854
        %v2856 = vmul.f32 %v2263, %v1879
        %v2857 = vmul.f32 %v2264, %v1880
        %v2858 = vmul.f32 %v2265, %v1881
        %v2859 = vmul.f32 %v2266, %v1882
        %v2860 = vmul.f32 %v2267, %v1883
        %v2861 = vmul.f32 %v2268, %v1884
        %v2862 = vmul.f32 %v2269, %v1885
        %v2863 = vmul.f32 %v2270, %v1886
        %v2864 = vmul.f32 %v2271, %v1887
        %v2865 = vmul.f32 %v2272, %v1888
        %v2866 = vmul.f32 %v2273, %v1889
        %v2867 = vmul.f32 %v2274, %v1890
        %v2868 = vmul.f32 %v2275, %v1891
        %v2869 = vmul.f32 %v2276, %v1892
        %v2870 = vmul.f32 %v2277, %v1893
        %v2871 = vmul.f32 %v2278, %v1894
        %v2872 = vsel %vm2759, %v2856, 0.0
        %v2873 = vsel %vm2759, %v2857, 0.0
        %v2874 = vadd.f32 %v2872, %v2873
        %v2875 = vsel %vm2759, %v2858, 0.0
        %v2876 = vadd.f32 %v2874, %v2875
        %v2877 = vsel %vm2759, %v2859, 0.0
        %v2878 = vadd.f32 %v2876, %v2877
        %v2879 = vsel %vm2759, %v2860, 0.0
        %v2880 = vadd.f32 %v2878, %v2879
        %v2881 = vsel %vm2759, %v2861, 0.0
        %v2882 = vadd.f32 %v2880, %v2881
        %v2883 = vsel %vm2759, %v2862, 0.0
        %v2884 = vadd.f32 %v2882, %v2883
        %v2885 = vsel %vm2759, %v2863, 0.0
        %v2886 = vadd.f32 %v2884, %v2885
        %v2887 = vsel %vm2759, %v2864, 0.0
        %v2888 = vadd.f32 %v2886, %v2887
        %v2889 = vsel %vm2759, %v2865, 0.0
        %v2890 = vadd.f32 %v2888, %v2889
        %v2891 = vsel %vm2759, %v2866, 0.0
        %v2892 = vadd.f32 %v2890, %v2891
        %v2893 = vsel %vm2759, %v2867, 0.0
        %v2894 = vadd.f32 %v2892, %v2893
        %v2895 = vsel %vm2759, %v2868, 0.0
        %v2896 = vadd.f32 %v2894, %v2895
        %v2897 = vsel %vm2759, %v2869, 0.0
        %v2898 = vadd.f32 %v2896, %v2897
        %v2899 = vsel %vm2759, %v2870, 0.0
        %v2900 = vadd.f32 %v2898, %v2899
        %v2901 = vsel %vm2759, %v2871, 0.0
        %v2902 = vadd.f32 %v2900, %v2901
        %2903 = vadd.xlane.f32.xlu0 %v2902
        %v2904 = vpop.xlane.xlu0 %2903
        %v2905 = vrot.slane %v2904, 4
        %v2906 = vadd.f32 %v2904, %v2905
        %v2907 = vrot.slane %v2906, 2
        %v2908 = vadd.f32 %v2906, %v2907
        %v2909 = vrot.slane %v2908, 1
        %v2910 = vadd.f32 %v2908, %v2909
        %s2911 = vtos %v2910
        %v2912 = vsel %vm2759, %v1879, 0.0
        %v2913 = vsel %vm2759, %v1880, 0.0
        %v2914 = vadd.f32 %v2912, %v2913
        %v2915 = vsel %vm2759, %v1881, 0.0
        %v2916 = vadd.f32 %v2914, %v2915
        %v2917 = vsel %vm2759, %v1882, 0.0
        %v2918 = vadd.f32 %v2916, %v2917
        %v2919 = vsel %vm2759, %v1883, 0.0
        %v2920 = vadd.f32 %v2918, %v2919
        %v2921 = vsel %vm2759, %v1884, 0.0
        %v2922 = vadd.f32 %v2920, %v2921
        %v2923 = vsel %vm2759, %v1885, 0.0
        %v2924 = vadd.f32 %v2922, %v2923
        %v2925 = vsel %vm2759, %v1886, 0.0
        %v2926 = vadd.f32 %v2924, %v2925
        %v2927 = vsel %vm2759, %v1887, 0.0
        %v2928 = vadd.f32 %v2926, %v2927
        %v2929 = vsel %vm2759, %v1888, 0.0
        %v2930 = vadd.f32 %v2928, %v2929
        %v2931 = vsel %vm2759, %v1889, 0.0
        %v2932 = vadd.f32 %v2930, %v2931
        %v2933 = vsel %vm2759, %v1890, 0.0
        %v2934 = vadd.f32 %v2932, %v2933
        %v2935 = vsel %vm2759, %v1891, 0.0
        %v2936 = vadd.f32 %v2934, %v2935
        %v2937 = vsel %vm2759, %v1892, 0.0
        %v2938 = vadd.f32 %v2936, %v2937
        %v2939 = vsel %vm2759, %v1893, 0.0
        %v2940 = vadd.f32 %v2938, %v2939
        %v2941 = vsel %vm2759, %v1894, 0.0
        %v2942 = vadd.f32 %v2940, %v2941
        %2943 = vadd.xlane.f32.xlu0 %v2942
        %v2944 = vpop.xlane.xlu0 %2943
        %v2945 = vrot.slane %v2944, 4
        %v2946 = vadd.f32 %v2944, %v2945
        %v2947 = vrot.slane %v2946, 2
        %v2948 = vadd.f32 %v2946, %v2947
        %v2949 = vrot.slane %v2948, 1
        %v2950 = vadd.f32 %v2948, %v2949
        %s2951 = vtos %v2950
        %v2952 = vmin.f32 %v789, %v793
        %v2953 = vmin.f32 %v790, %v794
        %v2954 = vmin.f32 %v791, %v795
        %v2955 = vmin.f32 %v792, %v796
        %v2956 = vmin.f32 %v2952, %v797
        %v2957 = vmin.f32 %v2953, %v798
        %v2958 = vmin.f32 %v2954, %v799
        %v2959 = vmin.f32 %v2955, %v800
        %v2960 = vmin.f32 %v2956, %v801
        %v2961 = vmin.f32 %v2957, %v802
        %v2962 = vmin.f32 %v2958, %v803
        %v2963 = vmin.f32 %v2959, %v804
        %v2964 = vmin.f32 %v2960, %v2961
        %v2965 = vmin.f32 %v2962, %v2963
        %v2966 = vmin.f32 %v2964, %v2965
        %v2967 = vrot.slane %v2966, 4
        %v2968 = vmin.f32 %v2966, %v2967
        %v2969 = vrot.slane %v2968, 2
        %v2970 = vmin.f32 %v2968, %v2969
        %v2971 = vrot.slane %v2970, 1
        %v2972 = vmin.f32 %v2970, %v2971
        %vm2973 = vcmp.eq.f32.partialorder %v789, %v2972
        %vm2974 = vcmp.eq.f32.partialorder %v790, %v2972
        %vm2975 = vcmp.eq.f32.partialorder %v791, %v2972
        %vm2976 = vcmp.eq.f32.partialorder %v792, %v2972
        %vm2977 = vcmp.eq.f32.partialorder %v793, %v2972
        %vm2978 = vcmp.eq.f32.partialorder %v794, %v2972
        %vm2979 = vcmp.eq.f32.partialorder %v795, %v2972
        %vm2980 = vcmp.eq.f32.partialorder %v796, %v2972
        %vm2981 = vcmp.eq.f32.partialorder %v797, %v2972
        %vm2982 = vcmp.eq.f32.partialorder %v798, %v2972
        %vm2983 = vcmp.eq.f32.partialorder %v799, %v2972
        %vm2984 = vcmp.eq.f32.partialorder %v800, %v2972
        %vm2985 = vcmp.eq.f32.partialorder %v801, %v2972
        %vm2986 = vcmp.eq.f32.partialorder %v802, %v2972
        %vm2987 = vcmp.eq.f32.partialorder %v803, %v2972
        %vm2988 = vcmp.eq.f32.partialorder %v804, %v2972
        %v2989 = vsel %vm2973, %v471, 128
        %v2990 = vsel %vm2974, %v472, 128
        %v2991 = vsel %vm2975, %v473, 128
        %v2992 = vsel %vm2976, %v474, 128
        %v2993 = vsel %vm2977, %v475, 128
        %v2994 = vsel %vm2978, %v476, 128
        %v2995 = vsel %vm2979, %v477, 128
        %v2996 = vsel %vm2980, %v478, 128
        %v2997 = vsel %vm2981, %v479, 128
        %v2998 = vsel %vm2982, %v480, 128
        %v2999 = vsel %vm2983, %v481, 128
        %v3000 = vsel %vm2984, %v482, 128
        %v3001 = vsel %vm2985, %v483, 128
        %v3002 = vsel %vm2986, %v484, 128
        %v3003 = vsel %vm2987, %v485, 128
        %v3004 = vsel %vm2988, %v486, 128
        %vm3005 = vcmp.lt.s32.totalorder %v2989, %v2993
        %v3006 = vsel %vm3005, %v2989, %v2993
        %vm3007 = vcmp.lt.s32.totalorder %v2990, %v2994
        %v3008 = vsel %vm3007, %v2990, %v2994
        %vm3009 = vcmp.lt.s32.totalorder %v2991, %v2995
        %v3010 = vsel %vm3009, %v2991, %v2995
        %vm3011 = vcmp.lt.s32.totalorder %v2992, %v2996
        %v3012 = vsel %vm3011, %v2992, %v2996
        %vm3013 = vcmp.lt.s32.totalorder %v3006, %v2997
        %v3014 = vsel %vm3013, %v3006, %v2997
        %vm3015 = vcmp.lt.s32.totalorder %v3008, %v2998
        %v3016 = vsel %vm3015, %v3008, %v2998
        %vm3017 = vcmp.lt.s32.totalorder %v3010, %v2999
        %v3018 = vsel %vm3017, %v3010, %v2999
        %vm3019 = vcmp.lt.s32.totalorder %v3012, %v3000
        %v3020 = vsel %vm3019, %v3012, %v3000
        %vm3021 = vcmp.lt.s32.totalorder %v3014, %v3001
        %v3022 = vsel %vm3021, %v3014, %v3001
        %vm3023 = vcmp.lt.s32.totalorder %v3016, %v3002
        %v3024 = vsel %vm3023, %v3016, %v3002
        %vm3025 = vcmp.lt.s32.totalorder %v3018, %v3003
        %v3026 = vsel %vm3025, %v3018, %v3003
        %vm3027 = vcmp.lt.s32.totalorder %v3020, %v3004
        %v3028 = vsel %vm3027, %v3020, %v3004
        %vm3029 = vcmp.lt.s32.totalorder %v3022, %v3024
        %v3030 = vsel %vm3029, %v3022, %v3024
        %vm3031 = vcmp.lt.s32.totalorder %v3026, %v3028
        %v3032 = vsel %vm3031, %v3026, %v3028
        %vm3033 = vcmp.lt.s32.totalorder %v3030, %v3032
        %v3034 = vsel %vm3033, %v3030, %v3032
        %v3035 = vrot.slane %v3034, 4
        %vm3036 = vcmp.lt.s32.totalorder %v3034, %v3035
        %v3037 = vsel %vm3036, %v3034, %v3035
        %v3038 = vrot.slane %v3037, 2
        %vm3039 = vcmp.lt.s32.totalorder %v3037, %v3038
        %v3040 = vsel %vm3039, %v3037, %v3038
        %v3041 = vrot.slane %v3040, 1
        %vm3042 = vcmp.lt.s32.totalorder %v3040, %v3041
        %v3043 = vsel %vm3042, %v3040, %v3041
        %vm3044 = vcmp.le.f32.partialorder %v2972, 1.0
        %v3045 = vsel %vm3044, 1, 0
        %v3046 = vcvt.s32.f32 %v3045
        %v3047 = vmul.f32 %v467, %v3046
        %vm3048 = vcmp.eq.s32.totalorder %v471, %v3043
        %vm3049 = vcmp.eq.s32.totalorder %v472, %v3043
        %vm3050 = vcmp.eq.s32.totalorder %v473, %v3043
        %vm3051 = vcmp.eq.s32.totalorder %v474, %v3043
        %vm3052 = vcmp.eq.s32.totalorder %v475, %v3043
        %vm3053 = vcmp.eq.s32.totalorder %v476, %v3043
        %vm3054 = vcmp.eq.s32.totalorder %v477, %v3043
        %vm3055 = vcmp.eq.s32.totalorder %v478, %v3043
        %vm3056 = vcmp.eq.s32.totalorder %v479, %v3043
        %vm3057 = vcmp.eq.s32.totalorder %v480, %v3043
        %vm3058 = vcmp.eq.s32.totalorder %v481, %v3043
        %vm3059 = vcmp.eq.s32.totalorder %v482, %v3043
        %vm3060 = vcmp.eq.s32.totalorder %v483, %v3043
        %vm3061 = vcmp.eq.s32.totalorder %v484, %v3043
        %vm3062 = vcmp.eq.s32.totalorder %v485, %v3043
        %vm3063 = vcmp.eq.s32.totalorder %v486, %v3043
        %vm3064 = vmxor %vm3048, 1
        %vm3065 = vmxor %vm3049, 1
        %vm3066 = vmxor %vm3050, 1
        %vm3067 = vmxor %vm3051, 1
        %vm3068 = vmxor %vm3052, 1
        %vm3069 = vmxor %vm3053, 1
        %vm3070 = vmxor %vm3054, 1
        %vm3071 = vmxor %vm3055, 1
        %vm3072 = vmxor %vm3056, 1
        %vm3073 = vmxor %vm3057, 1
        %vm3074 = vmxor %vm3058, 1
        %vm3075 = vmxor %vm3059, 1
        %vm3076 = vmxor %vm3060, 1
        %vm3077 = vmxor %vm3061, 1
        %vm3078 = vmxor %vm3062, 1
        %vm3079 = vmxor %vm3063, 1
        %vm3080 = vmand %vm805, %vm3064
        %vm3081 = vmand %vm806, %vm3065
        %vm3082 = vmand %vm807, %vm3066
        %vm3083 = vmand %vm808, %vm3067
        %vm3084 = vmand %vm809, %vm3068
        %vm3085 = vmand %vm810, %vm3069
        %vm3086 = vmand %vm811, %vm3070
        %vm3087 = vmand %vm812, %vm3071
        %vm3088 = vmand %vm813, %vm3072
        %vm3089 = vmand %vm814, %vm3073
        %vm3090 = vmand %vm815, %vm3074
        %vm3091 = vmand %vm816, %vm3075
        %vm3092 = vmand %vm817, %vm3076
        %vm3093 = vmand %vm818, %vm3077
        %vm3094 = vmand %vm819, %vm3078
        %vm3095 = vmand %vm820, %vm3079
        %v3096 = vmax.f32 %v1104, %v1124
        %v3097 = vmax.f32 %v1109, %v1129
        %v3098 = vmax.f32 %v1114, %v1134
        %v3099 = vmax.f32 %v1119, %v1139
        %v3100 = vmax.f32 %v3096, %v1144
        %v3101 = vmax.f32 %v3097, %v1149
        %v3102 = vmax.f32 %v3098, %v1154
        %v3103 = vmax.f32 %v3099, %v1159
        %v3104 = vmax.f32 %v3100, %v1164
        %v3105 = vmax.f32 %v3101, %v1169
        %v3106 = vmax.f32 %v3102, %v1174
        %v3107 = vmax.f32 %v3103, %v1179
        %v3108 = vmax.f32 %v3104, %v3105
        %v3109 = vmax.f32 %v3106, %v3107
        %v3110 = vmax.f32 %v3108, %v3109
        %v3111 = vrot.slane %v3110, 4
        %v3112 = vmax.f32 %v3110, %v3111
        %v3113 = vrot.slane %v3112, 2
        %v3114 = vmax.f32 %v3112, %v3113
        %v3115 = vrot.slane %v3114, 1
        %v3116 = vmax.f32 %v3114, %v3115
        %vm3117 = vcmp.eq.f32.partialorder %v1104, %v3116
        %vm3118 = vcmp.eq.f32.partialorder %v1109, %v3116
        %vm3119 = vcmp.eq.f32.partialorder %v1114, %v3116
        %vm3120 = vcmp.eq.f32.partialorder %v1119, %v3116
        %vm3121 = vcmp.eq.f32.partialorder %v1124, %v3116
        %vm3122 = vcmp.eq.f32.partialorder %v1129, %v3116
        %vm3123 = vcmp.eq.f32.partialorder %v1134, %v3116
        %vm3124 = vcmp.eq.f32.partialorder %v1139, %v3116
        %vm3125 = vcmp.eq.f32.partialorder %v1144, %v3116
        %vm3126 = vcmp.eq.f32.partialorder %v1149, %v3116
        %vm3127 = vcmp.eq.f32.partialorder %v1154, %v3116
        %vm3128 = vcmp.eq.f32.partialorder %v1159, %v3116
        %vm3129 = vcmp.eq.f32.partialorder %v1164, %v3116
        %vm3130 = vcmp.eq.f32.partialorder %v1169, %v3116
        %vm3131 = vcmp.eq.f32.partialorder %v1174, %v3116
        %vm3132 = vcmp.eq.f32.partialorder %v1179, %v3116
        %v3133 = vsel %vm3117, %v471, 128
        %v3134 = vsel %vm3118, %v472, 128
        %v3135 = vsel %vm3119, %v473, 128
        %v3136 = vsel %vm3120, %v474, 128
        %v3137 = vsel %vm3121, %v475, 128
        %v3138 = vsel %vm3122, %v476, 128
        %v3139 = vsel %vm3123, %v477, 128
        %v3140 = vsel %vm3124, %v478, 128
        %v3141 = vsel %vm3125, %v479, 128
        %v3142 = vsel %vm3126, %v480, 128
        %v3143 = vsel %vm3127, %v481, 128
        %v3144 = vsel %vm3128, %v482, 128
        %v3145 = vsel %vm3129, %v483, 128
        %v3146 = vsel %vm3130, %v484, 128
        %v3147 = vsel %vm3131, %v485, 128
        %v3148 = vsel %vm3132, %v486, 128
        %vm3149 = vcmp.lt.s32.totalorder %v3133, %v3137
        %v3150 = vsel %vm3149, %v3133, %v3137
        %vm3151 = vcmp.lt.s32.totalorder %v3134, %v3138
        %v3152 = vsel %vm3151, %v3134, %v3138
        %vm3153 = vcmp.lt.s32.totalorder %v3135, %v3139
        %v3154 = vsel %vm3153, %v3135, %v3139
        %vm3155 = vcmp.lt.s32.totalorder %v3136, %v3140
        %v3156 = vsel %vm3155, %v3136, %v3140
        %vm3157 = vcmp.lt.s32.totalorder %v3150, %v3141
        %v3158 = vsel %vm3157, %v3150, %v3141
        %vm3159 = vcmp.lt.s32.totalorder %v3152, %v3142
        %v3160 = vsel %vm3159, %v3152, %v3142
        %vm3161 = vcmp.lt.s32.totalorder %v3154, %v3143
        %v3162 = vsel %vm3161, %v3154, %v3143
        %vm3163 = vcmp.lt.s32.totalorder %v3156, %v3144
        %v3164 = vsel %vm3163, %v3156, %v3144
        %vm3165 = vcmp.lt.s32.totalorder %v3158, %v3145
        %v3166 = vsel %vm3165, %v3158, %v3145
        %vm3167 = vcmp.lt.s32.totalorder %v3160, %v3146
        %v3168 = vsel %vm3167, %v3160, %v3146
        %vm3169 = vcmp.lt.s32.totalorder %v3162, %v3147
        %v3170 = vsel %vm3169, %v3162, %v3147
        %vm3171 = vcmp.lt.s32.totalorder %v3164, %v3148
        %v3172 = vsel %vm3171, %v3164, %v3148
        %vm3173 = vcmp.lt.s32.totalorder %v3166, %v3168
        %v3174 = vsel %vm3173, %v3166, %v3168
        %vm3175 = vcmp.lt.s32.totalorder %v3170, %v3172
        %v3176 = vsel %vm3175, %v3170, %v3172
        %vm3177 = vcmp.lt.s32.totalorder %v3174, %v3176
        %v3178 = vsel %vm3177, %v3174, %v3176
        %v3179 = vrot.slane %v3178, 4
        %vm3180 = vcmp.lt.s32.totalorder %v3178, %v3179
        %v3181 = vsel %vm3180, %v3178, %v3179
        %v3182 = vrot.slane %v3181, 2
        %vm3183 = vcmp.lt.s32.totalorder %v3181, %v3182
        %v3184 = vsel %vm3183, %v3181, %v3182
        %v3185 = vrot.slane %v3184, 1
        %vm3186 = vcmp.lt.s32.totalorder %v3184, %v3185
        %v3187 = vsel %vm3186, %v3184, %v3185
        %vm3188 = vcmp.eq.s32.totalorder %v3187, %v3043
        %v3189 = vsel %vm3188, 1, 0
        %v3190 = vcvt.s32.f32 %v3189
        %v3191 = vmul.f32 %v3116, 10.0
        %v3192 = vsub.f32 %v1527, %v3191
        %v3193 = vsub.f32 %v1528, %v3191
        %v3194 = vsub.f32 %v1529, %v3191
        %v3195 = vsub.f32 %v1530, %v3191
        %v3196 = vsub.f32 %v1531, %v3191
        %v3197 = vsub.f32 %v1532, %v3191
        %v3198 = vsub.f32 %v1533, %v3191
        %v3199 = vsub.f32 %v1534, %v3191
        %v3200 = vsub.f32 %v1535, %v3191
        %v3201 = vsub.f32 %v1536, %v3191
        %v3202 = vsub.f32 %v1537, %v3191
        %v3203 = vsub.f32 %v1538, %v3191
        %v3204 = vsub.f32 %v1539, %v3191
        %v3205 = vsub.f32 %v1540, %v3191
        %v3206 = vsub.f32 %v1541, %v3191
        %v3207 = vsub.f32 %v1542, %v3191
        %v3208 = vmul.f32 %v3192, 1.442695
        %v3209 = vpow.pop %v3208
        %v3210 = vmul.f32 %v3193, 1.442695
        %v3211 = vpow.pop %v3210
        %v3212 = vmul.f32 %v3194, 1.442695
        %v3213 = vpow.pop %v3212
        %v3214 = vmul.f32 %v3195, 1.442695
        %v3215 = vpow.pop %v3214
        %v3216 = vmul.f32 %v3196, 1.442695
        %v3217 = vpow.pop %v3216
        %v3218 = vmul.f32 %v3197, 1.442695
        %v3219 = vpow.pop %v3218
        %v3220 = vmul.f32 %v3198, 1.442695
        %v3221 = vpow.pop %v3220
        %v3222 = vmul.f32 %v3199, 1.442695
        %v3223 = vpow.pop %v3222
        %v3224 = vmul.f32 %v3200, 1.442695
        %v3225 = vpow.pop %v3224
        %v3226 = vmul.f32 %v3201, 1.442695
        %v3227 = vpow.pop %v3226
        %v3228 = vmul.f32 %v3202, 1.442695
        %v3229 = vpow.pop %v3228
        %v3230 = vmul.f32 %v3203, 1.442695
        %v3231 = vpow.pop %v3230
        %v3232 = vmul.f32 %v3204, 1.442695
        %v3233 = vpow.pop %v3232
        %v3234 = vmul.f32 %v3205, 1.442695
        %v3235 = vpow.pop %v3234
        %v3236 = vmul.f32 %v3206, 1.442695
        %v3237 = vpow.pop %v3236
        %v3238 = vmul.f32 %v3207, 1.442695
        %v3239 = vpow.pop %v3238
        %v3240 = vadd.f32 %v3209, %v3211
        %v3241 = vadd.f32 %v3240, %v3213
        %v3242 = vadd.f32 %v3241, %v3215
        %v3243 = vadd.f32 %v3242, %v3217
        %v3244 = vadd.f32 %v3243, %v3219
        %v3245 = vadd.f32 %v3244, %v3221
        %v3246 = vadd.f32 %v3245, %v3223
        %v3247 = vadd.f32 %v3246, %v3225
        %v3248 = vadd.f32 %v3247, %v3227
        %v3249 = vadd.f32 %v3248, %v3229
        %v3250 = vadd.f32 %v3249, %v3231
        %v3251 = vadd.f32 %v3250, %v3233
        %v3252 = vadd.f32 %v3251, %v3235
        %v3253 = vadd.f32 %v3252, %v3237
        %v3254 = vadd.f32 %v3253, %v3239
        %v3255 = vrot.slane %v3254, 4
        %v3256 = vadd.f32 %v3254, %v3255
        %v3257 = vrot.slane %v3256, 2
        %v3258 = vadd.f32 %v3256, %v3257
        %v3259 = vrot.slane %v3258, 1
        %v3260 = vadd.f32 %v3258, %v3259
        %v3261 = vlog2.pop %v3260
        %v3262 = vmul.f32 %v3261, 0.6931472
        %v3263 = vadd.f32 %v3191, %v3262
        %v3264 = vsel %vm3048, %v1527, 0.0
        %v3265 = vsel %vm3049, %v1528, 0.0
        %v3266 = vsel %vm3050, %v1529, 0.0
        %v3267 = vsel %vm3051, %v1530, 0.0
        %v3268 = vsel %vm3052, %v1531, 0.0
        %v3269 = vsel %vm3053, %v1532, 0.0
        %v3270 = vsel %vm3054, %v1533, 0.0
        %v3271 = vsel %vm3055, %v1534, 0.0
        %v3272 = vsel %vm3056, %v1535, 0.0
        %v3273 = vsel %vm3057, %v1536, 0.0
        %v3274 = vsel %vm3058, %v1537, 0.0
        %v3275 = vsel %vm3059, %v1538, 0.0
        %v3276 = vsel %vm3060, %v1539, 0.0
        %v3277 = vsel %vm3061, %v1540, 0.0
        %v3278 = vsel %vm3062, %v1541, 0.0
        %v3279 = vsel %vm3063, %v1542, 0.0
        %v3280 = vadd.f32 %v3264, %v3265
        %v3281 = vadd.f32 %v3280, %v3266
        %v3282 = vadd.f32 %v3281, %v3267
        %v3283 = vadd.f32 %v3282, %v3268
        %v3284 = vadd.f32 %v3283, %v3269
        %v3285 = vadd.f32 %v3284, %v3270
        %v3286 = vadd.f32 %v3285, %v3271
        %v3287 = vadd.f32 %v3286, %v3272
        %v3288 = vadd.f32 %v3287, %v3273
        %v3289 = vadd.f32 %v3288, %v3274
        %v3290 = vadd.f32 %v3289, %v3275
        %v3291 = vadd.f32 %v3290, %v3276
        %v3292 = vadd.f32 %v3291, %v3277
        %v3293 = vadd.f32 %v3292, %v3278
        %v3294 = vadd.f32 %v3293, %v3279
        %v3295 = vrot.slane %v3294, 4
        %v3296 = vadd.f32 %v3294, %v3295
        %v3297 = vrot.slane %v3296, 2
        %v3298 = vadd.f32 %v3296, %v3297
        %v3299 = vrot.slane %v3298, 1
        %v3300 = vadd.f32 %v3298, %v3299
        %v3301 = vsub.f32 %v3263, %v3300
        %v3302 = vsel %vm3080, -1e+08, %v1449
        %v3303 = vsel %vm3081, -1e+08, %v1454
        %v3304 = vsel %vm3082, -1e+08, %v1459
        %v3305 = vsel %vm3083, -1e+08, %v1464
        %v3306 = vsel %vm3084, -1e+08, %v1469
        %v3307 = vsel %vm3085, -1e+08, %v1474
        %v3308 = vsel %vm3086, -1e+08, %v1479
        %v3309 = vsel %vm3087, -1e+08, %v1484
        %v3310 = vsel %vm3088, -1e+08, %v1489
        %v3311 = vsel %vm3089, -1e+08, %v1494
        %v3312 = vsel %vm3090, -1e+08, %v1499
        %v3313 = vsel %vm3091, -1e+08, %v1504
        %v3314 = vsel %vm3092, -1e+08, %v1509
        %v3315 = vsel %vm3093, -1e+08, %v1514
        %v3316 = vsel %vm3094, -1e+08, %v1519
        %v3317 = vsel %vm3095, -1e+08, %v1524
        %v3318 = vmul.f32 %v3302, 10.0
        %v3319 = vmul.f32 %v3303, 10.0
        %v3320 = vmul.f32 %v3304, 10.0
        %v3321 = vmul.f32 %v3305, 10.0
        %v3322 = vmul.f32 %v3306, 10.0
        %v3323 = vmul.f32 %v3307, 10.0
        %v3324 = vmul.f32 %v3308, 10.0
        %v3325 = vmul.f32 %v3309, 10.0
        %v3326 = vmul.f32 %v3310, 10.0
        %v3327 = vmul.f32 %v3311, 10.0
        %v3328 = vmul.f32 %v3312, 10.0
        %v3329 = vmul.f32 %v3313, 10.0
        %v3330 = vmul.f32 %v3314, 10.0
        %v3331 = vmul.f32 %v3315, 10.0
        %v3332 = vmul.f32 %v3316, 10.0
        %v3333 = vmul.f32 %v3317, 10.0
        %v3334 = vmax.f32 %v3318, %v3322
        %v3335 = vmax.f32 %v3319, %v3323
        %v3336 = vmax.f32 %v3320, %v3324
        %v3337 = vmax.f32 %v3321, %v3325
        %v3338 = vmax.f32 %v3334, %v3326
        %v3339 = vmax.f32 %v3335, %v3327
        %v3340 = vmax.f32 %v3336, %v3328
        %v3341 = vmax.f32 %v3337, %v3329
        %v3342 = vmax.f32 %v3338, %v3330
        %v3343 = vmax.f32 %v3339, %v3331
        %v3344 = vmax.f32 %v3340, %v3332
        %v3345 = vmax.f32 %v3341, %v3333
        %v3346 = vmax.f32 %v3342, %v3343
        %v3347 = vmax.f32 %v3344, %v3345
        %v3348 = vmax.f32 %v3346, %v3347
        %v3349 = vrot.slane %v3348, 4
        %v3350 = vmax.f32 %v3348, %v3349
        %v3351 = vrot.slane %v3350, 2
        %v3352 = vmax.f32 %v3350, %v3351
        %v3353 = vrot.slane %v3352, 1
        %v3354 = vmax.f32 %v3352, %v3353
        %v3355 = vsub.f32 %v3318, %v3354
        %v3356 = vsub.f32 %v3319, %v3354
        %v3357 = vsub.f32 %v3320, %v3354
        %v3358 = vsub.f32 %v3321, %v3354
        %v3359 = vsub.f32 %v3322, %v3354
        %v3360 = vsub.f32 %v3323, %v3354
        %v3361 = vsub.f32 %v3324, %v3354
        %v3362 = vsub.f32 %v3325, %v3354
        %v3363 = vsub.f32 %v3326, %v3354
        %v3364 = vsub.f32 %v3327, %v3354
        %v3365 = vsub.f32 %v3328, %v3354
        %v3366 = vsub.f32 %v3329, %v3354
        %v3367 = vsub.f32 %v3330, %v3354
        %v3368 = vsub.f32 %v3331, %v3354
        %v3369 = vsub.f32 %v3332, %v3354
        %v3370 = vsub.f32 %v3333, %v3354
        %v3371 = vmul.f32 %v3355, 1.442695
        %v3372 = vpow.pop %v3371
        %v3373 = vmul.f32 %v3356, 1.442695
        %v3374 = vpow.pop %v3373
        %v3375 = vmul.f32 %v3357, 1.442695
        %v3376 = vpow.pop %v3375
        %v3377 = vmul.f32 %v3358, 1.442695
        %v3378 = vpow.pop %v3377
        %v3379 = vmul.f32 %v3359, 1.442695
        %v3380 = vpow.pop %v3379
        %v3381 = vmul.f32 %v3360, 1.442695
        %v3382 = vpow.pop %v3381
        %v3383 = vmul.f32 %v3361, 1.442695
        %v3384 = vpow.pop %v3383
        %v3385 = vmul.f32 %v3362, 1.442695
        %v3386 = vpow.pop %v3385
        %v3387 = vmul.f32 %v3363, 1.442695
        %v3388 = vpow.pop %v3387
        %v3389 = vmul.f32 %v3364, 1.442695
        %v3390 = vpow.pop %v3389
        %v3391 = vmul.f32 %v3365, 1.442695
        %v3392 = vpow.pop %v3391
        %v3393 = vmul.f32 %v3366, 1.442695
        %v3394 = vpow.pop %v3393
        %v3395 = vmul.f32 %v3367, 1.442695
        %v3396 = vpow.pop %v3395
        %v3397 = vmul.f32 %v3368, 1.442695
        %v3398 = vpow.pop %v3397
        %v3399 = vmul.f32 %v3369, 1.442695
        %v3400 = vpow.pop %v3399
        %v3401 = vmul.f32 %v3370, 1.442695
        %v3402 = vpow.pop %v3401
        %v3403 = vadd.f32 %v3372, %v3374
        %v3404 = vadd.f32 %v3403, %v3376
        %v3405 = vadd.f32 %v3404, %v3378
        %v3406 = vadd.f32 %v3405, %v3380
        %v3407 = vadd.f32 %v3406, %v3382
        %v3408 = vadd.f32 %v3407, %v3384
        %v3409 = vadd.f32 %v3408, %v3386
        %v3410 = vadd.f32 %v3409, %v3388
        %v3411 = vadd.f32 %v3410, %v3390
        %v3412 = vadd.f32 %v3411, %v3392
        %v3413 = vadd.f32 %v3412, %v3394
        %v3414 = vadd.f32 %v3413, %v3396
        %v3415 = vadd.f32 %v3414, %v3398
        %v3416 = vadd.f32 %v3415, %v3400
        %v3417 = vadd.f32 %v3416, %v3402
        %v3418 = vrot.slane %v3417, 4
        %v3419 = vadd.f32 %v3417, %v3418
        %v3420 = vrot.slane %v3419, 2
        %v3421 = vadd.f32 %v3419, %v3420
        %v3422 = vrot.slane %v3421, 1
        %v3423 = vadd.f32 %v3421, %v3422
        %v3424 = vlog2.pop %v3423
        %v3425 = vmul.f32 %v3424, 0.6931472
        %v3426 = vadd.f32 %v3354, %v3425
        %v3427 = vsel %vm3048, %v3318, 0.0
        %v3428 = vsel %vm3049, %v3319, 0.0
        %v3429 = vsel %vm3050, %v3320, 0.0
        %v3430 = vsel %vm3051, %v3321, 0.0
        %v3431 = vsel %vm3052, %v3322, 0.0
        %v3432 = vsel %vm3053, %v3323, 0.0
        %v3433 = vsel %vm3054, %v3324, 0.0
        %v3434 = vsel %vm3055, %v3325, 0.0
        %v3435 = vsel %vm3056, %v3326, 0.0
        %v3436 = vsel %vm3057, %v3327, 0.0
        %v3437 = vsel %vm3058, %v3328, 0.0
        %v3438 = vsel %vm3059, %v3329, 0.0
        %v3439 = vsel %vm3060, %v3330, 0.0
        %v3440 = vsel %vm3061, %v3331, 0.0
        %v3441 = vsel %vm3062, %v3332, 0.0
        %v3442 = vsel %vm3063, %v3333, 0.0
        %v3443 = vadd.f32 %v3427, %v3428
        %v3444 = vadd.f32 %v3443, %v3429
        %v3445 = vadd.f32 %v3444, %v3430
        %v3446 = vadd.f32 %v3445, %v3431
        %v3447 = vadd.f32 %v3446, %v3432
        %v3448 = vadd.f32 %v3447, %v3433
        %v3449 = vadd.f32 %v3448, %v3434
        %v3450 = vadd.f32 %v3449, %v3435
        %v3451 = vadd.f32 %v3450, %v3436
        %v3452 = vadd.f32 %v3451, %v3437
        %v3453 = vadd.f32 %v3452, %v3438
        %v3454 = vadd.f32 %v3453, %v3439
        %v3455 = vadd.f32 %v3454, %v3440
        %v3456 = vadd.f32 %v3455, %v3441
        %v3457 = vadd.f32 %v3456, %v3442
        %v3458 = vrot.slane %v3457, 4
        %v3459 = vadd.f32 %v3457, %v3458
        %v3460 = vrot.slane %v3459, 2
        %v3461 = vadd.f32 %v3459, %v3460
        %v3462 = vrot.slane %v3461, 1
        %v3463 = vadd.f32 %v3461, %v3462
        %v3464 = vsub.f32 %v3426, %v3463
        %v3465 = vmul.f32 %v3301, %v3047
        %vm3466 = vcmask 1040384
        %v3467 = vsel %vm3466, %v3465, 0.0
        %3468 = vadd.xlane.f32.xlu0 %v3467
        %v3469 = vpop.xlane.xlu0 %3468
        %v3470 = vrot.slane %v3469, 4
        %v3471 = vadd.f32 %v3469, %v3470
        %v3472 = vrot.slane %v3471, 2
        %v3473 = vadd.f32 %v3471, %v3472
        %v3474 = vrot.slane %v3473, 1
        %v3475 = vadd.f32 %v3473, %v3474
        %s3476 = vtos %v3475
        %v3477 = vmul.f32 %v3464, %v3047
        %v3478 = vsel %vm3466, %v3477, 0.0
        %3479 = vadd.xlane.f32.xlu0 %v3478
        %v3480 = vpop.xlane.xlu0 %3479
        %v3481 = vrot.slane %v3480, 4
        %v3482 = vadd.f32 %v3480, %v3481
        %v3483 = vrot.slane %v3482, 2
        %v3484 = vadd.f32 %v3482, %v3483
        %v3485 = vrot.slane %v3484, 1
        %v3486 = vadd.f32 %v3484, %v3485
        %s3487 = vtos %v3486
        %v3488 = vmul.f32 %v3190, %v3047
        %v3489 = vsel %vm3466, %v3488, 0.0
        %3490 = vadd.xlane.f32.xlu0 %v3489
        %v3491 = vpop.xlane.xlu0 %3490
        %v3492 = vrot.slane %v3491, 4
        %v3493 = vadd.f32 %v3491, %v3492
        %v3494 = vrot.slane %v3493, 2
        %v3495 = vadd.f32 %v3493, %v3494
        %v3496 = vrot.slane %v3495, 1
        %v3497 = vadd.f32 %v3495, %v3496
        %s3498 = vtos %v3497
        %v3499 = vsel %vm3466, %v3047, 0.0
        %3500 = vadd.xlane.f32.xlu0 %v3499
        %v3501 = vpop.xlane.xlu0 %3500
        %v3502 = vrot.slane %v3501, 4
        %v3503 = vadd.f32 %v3501, %v3502
        %v3504 = vrot.slane %v3503, 2
        %v3505 = vadd.f32 %v3503, %v3504
        %v3506 = vrot.slane %v3505, 1
        %v3507 = vadd.f32 %v3505, %v3506
        %s3508 = vtos %v3507
        %vm3509 = vcmp.eq.s32.totalorder %v469, 0
        %v3510 = vstv %s2799
        %v3511 = vsel %vm3509, %v3510, 0.0
        %vm3512 = vcmp.eq.s32.totalorder %v469, 1
        %v3513 = vstv %s2855
        %v3514 = vsel %vm3512, %v3513, 0.0
        %v3515 = vadd.f32 %v3511, %v3514
        %vm3516 = vcmp.eq.s32.totalorder %v469, 2
        %v3517 = vstv %s2911
        %v3518 = vsel %vm3516, %v3517, 0.0
        %v3519 = vadd.f32 %v3515, %v3518
        %vm3520 = vcmp.eq.s32.totalorder %v469, 3
        %v3521 = vstv %s2951
        %v3522 = vsel %vm3520, %v3521, 0.0
        %v3523 = vadd.f32 %v3519, %v3522
        %vm3524 = vcmp.eq.s32.totalorder %v469, 4
        %v3525 = vstv %s3476
        %v3526 = vsel %vm3524, %v3525, 0.0
        %v3527 = vadd.f32 %v3523, %v3526
        %vm3528 = vcmp.eq.s32.totalorder %v469, 5
        %v3529 = vstv %s3487
        %v3530 = vsel %vm3528, %v3529, 0.0
        %v3531 = vadd.f32 %v3527, %v3530
        %vm3532 = vcmp.eq.s32.totalorder %v469, 6
        %v3533 = vstv %s3498
        %v3534 = vsel %vm3532, %v3533, 0.0
        %v3535 = vadd.f32 %v3531, %v3534
        %vm3536 = vcmp.eq.s32.totalorder %v469, 7
        %v3537 = vstv %s3508
        %v3538 = vsel %vm3536, %v3537, 0.0
        %v3539 = vadd.f32 %v3535, %v3538
        %vm3540 = vcmask 57344
        %3541 = vst.msk [vmem:[%s396] sm:$0x1] %vm3540, %v3539
        %s3542 = sand.u32 %s238, 1
        %s3543 = scalar_lea.sflag [#allocation3], %s3542
        %s3544 = sand.u32 %s238, 1
        %s3545 = scalar_lea.vmem [#allocation2], %s3544
        // Predicated region
        $region53: #{tpu_custom_call.1} parent=51 // pred_check
          %p3546 = pneg %p248
        $region54: #{tpu_custom_call.1} parent=51 // pred_check_branch
          %3548 = sbr.rel (%p3546) target = $region56
        $region55: #{tpu_custom_call.1} parent=51 // pred_region
          %s3550 = ssub.s32 16, 16
          %3551 = vsyncadd %s3543, %s3550
          %s3552 = smul.addr %s22, 16
          %s3553 = scalar_lea.hbm %s8, %s3552
          %s3555 = sshll.u32 %s3545, 4
          %s3556 = int_to_ptr.vmem [resolvable:$true] %s3555
          %3558 = dma.vmem_to_hbm [thread:$0]  %s3556, 16, %s3553, %s3543
        $region56: #{tpu_custom_call.1} parent=51 // pred_fallthru
          _
      $region52: #{tpu_custom_call.1} parent=5 // pred_fallthru
        _
      %p3559 = scmp.le.s32.totalorder 2, %s17
      // Predicated region
      $region57: #{tpu_custom_call.1} parent=5 // pred_check
        %p3560 = pneg %p3559
      $region58: #{tpu_custom_call.1} parent=5 // pred_check_branch
        %3562 = sbr.rel (%p3560) target = $region60
      $region59: #{tpu_custom_call.1} parent=5 // pred_region
        %s3563 = ssub.s32 %s17, 2
        // Predicated region
        $region61: #{tpu_custom_call.1} parent=59 // pred_check
          %p3564 = pneg %p254
        $region62: #{tpu_custom_call.1} parent=59 // pred_check_branch
          %3566 = sbr.rel (%p3564) target = $region64
        $region63: #{tpu_custom_call.1} parent=59 // pred_region
          %s3567 = sand.u32 %s239, 1
          %s3568 = scalar_lea.sflag [#allocation3], %s3567
          %s3569 = sand.u32 %s239, 1
          %s3570 = scalar_lea.vmem [#allocation2], %s3569
          %3571 = dma.done %s3568, 16
        $region64: #{tpu_custom_call.1} parent=59 // pred_fallthru
          _
      $region60: #{tpu_custom_call.1} parent=5 // pred_fallthru
        _
    $region6: #{tpu_custom_call.1} parent=1 // loop_footer
      %s21 = sadd.s32 1, %s17
    $region7: #{tpu_custom_call.1} parent=1 // loop_footer_branch
      %16 = sbr.rel target = $region3
    $region8: #{tpu_custom_call.1} parent=1 // loop_exit
      _
    %3572 = vsyncpa [#allocation3], 1
    %s3573 = scalar_lea.sflag [#allocation3], 1
    %3574 = vsyncpa %s3573, 1

</llo_original>
